<compile_context>
chip_gen: v5e
topology: v5e:2x2
jax: 0.10.0
libtpu: 0.0.40
codegen_flags: <defaults>
</compile_context>

<pallas_src>
import functools

import jax
import jax.numpy as jnp
from jax.experimental import pallas as pl
from jax.experimental.pallas import tpu as pltpu

LANE = 128                                  # every channel dim padded to one lane width
VMEM_LIMIT_BYTES = 48 * 1024 * 1024         # safe on v5e/v6e (128 MiB) and v7x (64 MiB)
BN_EPS = 1e-3


# ----------------------------------------------------------------------------
# Pallas kernels
# ----------------------------------------------------------------------------
def _conv_tap_kernel(*refs, K, s, Wc, L, act, depthwise, fuse_proj, act2):
    """KxK conv (stride s) + folded BN + activation (+ optional fused 1x1 proj).

    Inputs are the s*s stride-phases of the spatially padded image, flattened
    to (Hc*Wc, Cin) per sample.  Each of the K*K taps is a contiguous row
    slice of one phase, so the reduction happens entirely in VMEM/registers
    (no im2col in HBM).  Standard convs use bf16 MXU dots with f32
    accumulation; the depthwise variant is f32 VPU multiply-accumulate.
    With fuse_proj the pointwise projection conv (+ its folded BN) runs in the
    same epilogue, so the expanded activation never leaves VMEM (FusedMBConv).
    """
    n_ph = s * s
    idx = n_ph
    w_ref = refs[idx]; idx += 1
    bias_ref = refs[idx]; idx += 1
    if fuse_proj:
        w2_ref = refs[idx]; idx += 1
        b2_ref = refs[idx]; idx += 1
    o_ref = refs[idx]

    if depthwise:
        phases = [refs[i][0] for i in range(n_ph)]                        # f32 (VPU)
    else:
        phases = [refs[i][0].astype(jnp.bfloat16) for i in range(n_ph)]   # bf16 MXU operands
    cexp = w_ref.shape[-1]
    acc = jnp.zeros((L, cexp), jnp.float32)
    for di in range(K):
        for dj in range(K):
            ph = phases[(di % s) * s + (dj % s)]
            off = (di // s) * Wc + (dj // s)
            tap = ph[off:off + L, :]
            t = di * K + dj
            if depthwise:
                acc = acc + tap * w_ref[t:t + 1, :]
            else:
                acc = acc + jnp.dot(tap, w_ref[t],
                                    preferred_element_type=jnp.float32)
    y = acc + bias_ref[...]                    # folded BN shift (f32 epilogue)
    if act == "silu":
        y = y * jax.nn.sigmoid(y)
    if fuse_proj:
        y = jnp.dot(y.astype(jnp.bfloat16), w2_ref[...],
                    preferred_element_type=jnp.float32) + b2_ref[...]
        if act2 == "silu":
            y = y * jax.nn.sigmoid(y)
    o_ref[0] = y.astype(o_ref.dtype)


def _matmul_bn_act_kernel(a_ref, w_ref, bias_ref, o_ref, *, act):
    """Row-tiled 1x1-conv / FC matmul, BN folded into weights+bias, fused act."""
    y = jnp.dot(a_ref[...].astype(jnp.bfloat16), w_ref[...],
                preferred_element_type=jnp.float32)
    y = y + bias_ref[...]
    if act == "silu":
        y = y * jax.nn.sigmoid(y)
    o_ref[...] = y.astype(o_ref.dtype)


def _mbconv_tail_kernel(h_ref, se1_w, se1_b, se2_w, se2_b,
                        proj_w, proj_b, head_w, head_b, cls_w, cls_b, o_ref):
    """Fused MBConv tail + classifier head, one sample per grid step.

    SE squeeze (GAP) -> FC+SiLU -> FC+sigmoid gate -> gated 1x1 projection
    conv + BN -> head 1x1 conv + BN + SiLU -> GAP -> Linear(., 4).  Every
    intermediate stays in VMEM; only the (1, 128) padded logits go to HBM.
    """
    h = h_ref[0]                                                     # (HW, C) f32
    pooled = jnp.mean(h, axis=0, keepdims=True)                      # squeeze
    y = jnp.dot(pooled.astype(jnp.bfloat16), se1_w[...],
                preferred_element_type=jnp.float32) + se1_b[...]
    y = y * jax.nn.sigmoid(y)
    g = jnp.dot(y.astype(jnp.bfloat16), se2_w[...],
                preferred_element_type=jnp.float32) + se2_b[...]
    gate = jax.nn.sigmoid(g)                                         # (1, C)
    x = h * gate                                                     # excite (VPU)
    x = jnp.dot(x.astype(jnp.bfloat16), proj_w[...],
                preferred_element_type=jnp.float32) + proj_b[...]    # project + BN
    y2 = jnp.dot(x.astype(jnp.bfloat16), head_w[...],
                 preferred_element_type=jnp.float32) + head_b[...]   # head conv + BN
    y2 = y2 * jax.nn.sigmoid(y2)
    pooled2 = jnp.mean(y2, axis=0, keepdims=True)                    # global avg pool
    logits = jnp.dot(pooled2.astype(jnp.bfloat16), cls_w[...],
                     preferred_element_type=jnp.float32) + cls_b[...]
    o_ref[0] = logits


# ----------------------------------------------------------------------------
# Pallas wrappers
# ----------------------------------------------------------------------------
def _row_tile(m):
    # Largest row tile that divides m and keeps (16,128) bf16 tiling legal;
    # falls back to the full row count for tiny inputs.
    for t in (512, 256, 128, 64, 32):
        if m % t == 0:
            return t
    return m


def _compiler_params():
    return pltpu.CompilerParams(dimension_semantics=("parallel",),
                                vmem_limit_bytes=VMEM_LIMIT_BYTES)


def _pad_axis(a, axis, size):
    pad = size - a.shape[axis]
    if pad <= 0:
        return a
    widths = [(0, 0)] * a.ndim
    widths[axis] = (0, pad)
    return jnp.pad(a, widths)


def conv_bn_act(x, w, bias, *, K, stride, padding, act, depthwise=False,
                proj_w=None, proj_b=None, act2="none", out_dtype=jnp.float32):
    """KxK conv + folded BN + activation, gridded over batch ("parallel").

    The spatially padded input is split into its stride phases in the wrapper
    (total bytes == input, never K*K x), flattened, and the kernel accumulates
    the K*K taps as contiguous row slices.  When proj_w is given, a pointwise
    projection conv (+ folded BN) is fused into the epilogue (FusedMBConv).
    The output is computed on a flat (L, Cout) slab and re-windowed to NHWC by
    a cheap reshape/slice outside.
    """
    N, H, W, Cin = x.shape
    s = stride
    Hp, Wp = H + 2 * padding, W + 2 * padding
    Ho, Wo = (Hp - K) // s + 1, (Wp - K) // s + 1
    qmax = (K - 1) // s
    Hc, Wc = Ho + qmax, Wo + qmax
    L = (Ho - 1) * Wc + Wo                    # flat output rows per sample

    xp = jnp.pad(x, ((0, 0), (padding, padding), (padding, padding), (0, 0)))
    phases = []
    for a in range(s):
        for b in range(s):
            ph = xp[:, a::s, b::s, :][:, :Hc, :Wc, :]
            ph = _pad_axis(_pad_axis(ph, 1, Hc), 2, Wc)
            phases.append(ph.reshape(N, Hc * Wc, Cin))

    fuse_proj = proj_w is not None
    cout = proj_w.shape[-1] if fuse_proj else w.shape[-1]
    kernel = functools.partial(_conv_tap_kernel, K=K, s=s, Wc=Wc, L=L, act=act,
                               depthwise=depthwise, fuse_proj=fuse_proj, act2=act2)
    phase_spec = pl.BlockSpec((1, Hc * Wc, Cin), lambda n: (n, 0, 0))
    in_specs = [phase_spec] * (s * s) + [
        pl.BlockSpec(w.shape, lambda n: (0,) * w.ndim),
        pl.BlockSpec(bias.shape, lambda n: (0, 0)),
    ]
    args = list(phases) + [w, bias]
    if fuse_proj:
        in_specs += [pl.BlockSpec(proj_w.shape, lambda n: (0, 0)),
                     pl.BlockSpec(proj_b.shape, lambda n: (0, 0))]
        args += [proj_w, proj_b]

    out = pl.pallas_call(
        kernel,
        out_shape=jax.ShapeDtypeStruct((N, L, cout), out_dtype),
        grid=(N,),
        in_specs=in_specs,
        out_specs=pl.BlockSpec((1, L, cout), lambda n: (n, 0, 0)),
        compiler_params=_compiler_params(),
    )(*args)

    out = jnp.pad(out, ((0, 0), (0, Ho * Wc - L), (0, 0)))
    return out.reshape(N, Ho, Wc, cout)[:, :, :Wo, :]


def matmul_bn_act(a, w, bias, act="none", out_dtype=jnp.float32):
    """1x1 conv / FC as a row-tiled matmul with fused BN bias + activation."""
    m, k = a.shape
    n_out = w.shape[1]
    tm = _row_tile(m)
    return pl.pallas_call(
        functools.partial(_matmul_bn_act_kernel, act=act),
        out_shape=jax.ShapeDtypeStruct((m, n_out), out_dtype),
        grid=(m // tm,),
        in_specs=[pl.BlockSpec((tm, k), lambda i: (i, 0)),
                  pl.BlockSpec((k, n_out), lambda i: (0, 0)),
                  pl.BlockSpec((1, n_out), lambda i: (0, 0))],
        out_specs=pl.BlockSpec((tm, n_out), lambda i: (i, 0)),
        compiler_params=_compiler_params(),
    )(a, w, bias)


def mbconv_tail(h, kp):
    """Fused SE + gated projection + head conv + GAP + classifier (per sample)."""
    n, hw, c = h.shape
    wspec = lambda i: (0, 0)
    return pl.pallas_call(
        _mbconv_tail_kernel,
        out_shape=jax.ShapeDtypeStruct((n, 1, LANE), jnp.float32),
        grid=(n,),
        in_specs=[pl.BlockSpec((1, hw, c), lambda i: (i, 0, 0)),
                  pl.BlockSpec(kp["se1_w"].shape, wspec),
                  pl.BlockSpec(kp["se1_b"].shape, wspec),
                  pl.BlockSpec(kp["se2_w"].shape, wspec),
                  pl.BlockSpec(kp["se2_b"].shape, wspec),
                  pl.BlockSpec(kp["m_proj_w"].shape, wspec),
                  pl.BlockSpec(kp["m_proj_b"].shape, wspec),
                  pl.BlockSpec(kp["head_w"].shape, wspec),
                  pl.BlockSpec(kp["head_b"].shape, wspec),
                  pl.BlockSpec(kp["cls_w"].shape, wspec),
                  pl.BlockSpec(kp["cls_b"].shape, wspec)],
        out_specs=pl.BlockSpec((1, 1, LANE), lambda i: (i, 0, 0)),
        compiler_params=_compiler_params(),
    )(h, kp["se1_w"], kp["se1_b"], kp["se2_w"], kp["se2_b"],
      kp["m_proj_w"], kp["m_proj_b"], kp["head_w"], kp["head_b"],
      kp["cls_w"], kp["cls_b"])


# ----------------------------------------------------------------------------
# Mini EfficientNetV2 parameters (deterministic, synthetic, PyTorch layout)
# ----------------------------------------------------------------------------
C_STEM, C1, C_FEXP, C2, C_MEXP, SE_RED, FEAT, NUM_CLASSES = 16, 24, 32, 32, 96, 24, 64, 4


def init_params(key):
    keys = iter(jax.random.split(key, 64))

    def w(shape, scale=0.1):
        return (scale * jax.random.normal(next(keys), shape)).astype(jnp.float32)

    def bn(c):
        return dict(
            gamma=(1.0 + 0.1 * jax.random.normal(next(keys), (c,))).astype(jnp.float32),
            beta=(0.1 * jax.random.normal(next(keys), (c,))).astype(jnp.float32),
            mean=(0.1 * jax.random.normal(next(keys), (c,))).astype(jnp.float32),
            var=(1.0 + jnp.abs(jax.random.normal(next(keys), (c,)))).astype(jnp.float32),
        )

    return {
        "stem_w": w((C_STEM, 3, 3, 3)), "stem_bn": bn(C_STEM),
        "f_exp_w": w((C_FEXP, C_STEM, 3, 3)), "f_exp_bn": bn(C_FEXP),
        "f_proj_w": w((C1, C_FEXP, 1, 1)), "f_proj_bn": bn(C1),
        "m_exp_w": w((C_MEXP, C1, 1, 1)), "m_exp_bn": bn(C_MEXP),
        "m_dw_w": w((C_MEXP, 1, 3, 3)), "m_dw_bn": bn(C_MEXP),
        "se_fc1_w": w((C_MEXP, SE_RED)), "se_fc1_b": w((SE_RED,)),
        "se_fc2_w": w((SE_RED, C_MEXP)), "se_fc2_b": w((C_MEXP,)),
        "m_proj_w": w((C2, C_MEXP, 1, 1)), "m_proj_bn": bn(C2),
        "head_w": w((FEAT, C2, 1, 1)), "head_bn": bn(FEAT),
        # nn.Linear(in_features, 4): stored as (in, out) for right-multiply.
        "cls_w": w((FEAT, NUM_CLASSES)), "cls_b": w((NUM_CLASSES,)),
    }


# ----------------------------------------------------------------------------
# Fold BatchNorm into weights/bias, pad channel dims to 128 lanes, cast
# MXU weights to bf16 (fold in f32 first, then cast).
# ----------------------------------------------------------------------------
def _fold_bn(bn):
    scale = bn["gamma"] / jnp.sqrt(bn["var"] + BN_EPS)
    shift = bn["beta"] - bn["mean"] * scale
    return scale, shift


def _prep_conv(w_oihw, bn, pad_cin=None):
    scale, shift = _fold_bn(bn)
    cout, cin, kh, kw = w_oihw.shape
    wf = w_oihw * scale[:, None, None, None]
    wf = jnp.transpose(wf, (2, 3, 1, 0)).reshape(kh * kw, cin, cout)
    wf = _pad_axis(wf, 2, LANE)
    if pad_cin is not None:
        wf = _pad_axis(wf, 1, pad_cin)
    bias = _pad_axis(shift, 0, LANE).reshape(1, LANE).astype(jnp.float32)
    return wf.astype(jnp.bfloat16), bias


def _prep_1x1(w_oihw, bn):
    scale, shift = _fold_bn(bn)
    wf = (w_oihw[:, :, 0, 0] * scale[:, None]).T            # (Cin, Cout)
    wf = _pad_axis(_pad_axis(wf, 0, LANE), 1, LANE)
    bias = _pad_axis(shift, 0, LANE).reshape(1, LANE).astype(jnp.float32)
    return wf.astype(jnp.bfloat16), bias


def _prep_dw(w, bn):
    scale, shift = _fold_bn(bn)
    c, _, kh, kw = w.shape
    wf = jnp.transpose(w[:, 0] * scale[:, None, None], (1, 2, 0)).reshape(kh * kw, c)
    wf = _pad_axis(wf, 1, LANE).astype(jnp.float32)          # VPU path stays f32
    bias = _pad_axis(shift, 0, LANE).reshape(1, LANE).astype(jnp.float32)
    return wf, bias


def _prep_fc(w, b):
    wf = _pad_axis(_pad_axis(w, 0, LANE), 1, LANE)
    bias = _pad_axis(b, 0, LANE).reshape(1, LANE).astype(jnp.float32)
    return wf.astype(jnp.bfloat16), bias


def prepare_params(p):
    kp = {}
    kp["stem_w"], kp["stem_b"] = _prep_conv(p["stem_w"], p["stem_bn"])
    kp["f_exp_w"], kp["f_exp_b"] = _prep_conv(p["f_exp_w"], p["f_exp_bn"], pad_cin=LANE)
    kp["f_proj_w"], kp["f_proj_b"] = _prep_1x1(p["f_proj_w"], p["f_proj_bn"])
    kp["m_exp_w"], kp["m_exp_b"] = _prep_1x1(p["m_exp_w"], p["m_exp_bn"])
    kp["m_dw_w"], kp["m_dw_b"] = _prep_dw(p["m_dw_w"], p["m_dw_bn"])
    kp["se1_w"], kp["se1_b"] = _prep_fc(p["se_fc1_w"], p["se_fc1_b"])
    kp["se2_w"], kp["se2_b"] = _prep_fc(p["se_fc2_w"], p["se_fc2_b"])
    kp["m_proj_w"], kp["m_proj_b"] = _prep_1x1(p["m_proj_w"], p["m_proj_bn"])
    kp["head_w"], kp["head_b"] = _prep_1x1(p["head_w"], p["head_bn"])
    kp["cls_w"], kp["cls_b"] = _prep_fc(p["cls_w"], p["cls_b"])
    return kp


# ----------------------------------------------------------------------------
# Forward pass (semantics of CustomEffNet.forward: backbone -> Linear(., 4))
# ----------------------------------------------------------------------------
def custom_effnet_forward(x_nchw, kp):
    x = jnp.transpose(x_nchw, (0, 2, 3, 1)).astype(jnp.float32)   # NCHW -> NHWC

    # Stem: conv3x3 s2 + folded BN + SiLU
    x = conv_bn_act(x, kp["stem_w"], kp["stem_b"], K=3, stride=2, padding=1,
                    act="silu", out_dtype=jnp.bfloat16)

    # FusedMBConv, ONE kernel: conv3x3 expand + BN + SiLU, 1x1 project + BN
    x = conv_bn_act(x, kp["f_exp_w"], kp["f_exp_b"], K=3, stride=1, padding=1,
                    act="silu", proj_w=kp["f_proj_w"], proj_b=kp["f_proj_b"],
                    act2="none", out_dtype=jnp.bfloat16)

    # MBConv with SE: 1x1 expand + BN + SiLU, dw3x3 s2 + BN + SiLU
    n, hh, ww, c = x.shape
    h = matmul_bn_act(x.reshape(n * hh * ww, c), kp["m_exp_w"], kp["m_exp_b"],
                      act="silu", out_dtype=jnp.float32).reshape(n, hh, ww, LANE)
    h = conv_bn_act(h, kp["m_dw_w"], kp["m_dw_b"], K=3, stride=2, padding=1,
                    act="silu", depthwise=True, out_dtype=jnp.float32)

    # Fused tail, ONE kernel per sample:
    # SE gate -> gated 1x1 project + BN -> head 1x1 conv + BN + SiLU -> GAP -> Linear(., 4)
    nh, oh, ow, ch = h.shape
    logits_pad = mbconv_tail(h.reshape(nh, oh * ow, ch), kp)          # (N, 1, 128)
    return logits_pad[:, 0, :NUM_CLASSES]


# ----------------------------------------------------------------------------
# Pure-JAX (XLA) reference with the raw f32 parameters, for validation
# ----------------------------------------------------------------------------
def reference_forward(x_nchw, p):
    x = jnp.transpose(x_nchw, (0, 2, 3, 1)).astype(jnp.float32)

    def bn(h, b):
        scale = b["gamma"] / jnp.sqrt(b["var"] + BN_EPS)
        return h * scale + (b["beta"] - b["mean"] * scale)

    def conv(h, w, stride, padding, groups=1):
        return jax.lax.conv_general_dilated(
            h, jnp.transpose(w, (2, 3, 1, 0)), (stride, stride),
            [(padding, padding), (padding, padding)],
            dimension_numbers=("NHWC", "HWIO", "NHWC"),
            feature_group_count=groups)

    silu = lambda v: v * jax.nn.sigmoid(v)

    x = silu(bn(conv(x, p["stem_w"], 2, 1), p["stem_bn"]))
    h = silu(bn(conv(x, p["f_exp_w"], 1, 1), p["f_exp_bn"]))
    x = bn(conv(h, p["f_proj_w"], 1, 0), p["f_proj_bn"])
    h = silu(bn(conv(x, p["m_exp_w"], 1, 0), p["m_exp_bn"]))
    h = silu(bn(conv(h, p["m_dw_w"], 2, 1, groups=p["m_dw_w"].shape[0]), p["m_dw_bn"]))
    s = jnp.mean(h, axis=(1, 2))
    s = silu(s @ p["se_fc1_w"] + p["se_fc1_b"])
    s = jax.nn.sigmoid(s @ p["se_fc2_w"] + p["se_fc2_b"])
    h = h * s[:, None, None, :]
    x = bn(conv(h, p["m_proj_w"], 1, 0), p["m_proj_bn"])
    x = silu(bn(conv(x, p["head_w"], 1, 0), p["head_bn"]))
    x = jnp.mean(x, axis=(1, 2))
    return x @ p["cls_w"] + p["cls_b"]


if __name__ == "__main__":
    key = jax.random.PRNGKey(0)
    pkey, xkey = jax.random.split(key)
    params = init_params(pkey)
    kparams = prepare_params(params)
    x = jax.random.normal(xkey, (2, 3, 16, 16), dtype=jnp.float32)  # NCHW like PyTorch

    fwd = jax.jit(custom_effnet_forward)
    logits = fwd(x, kparams)
    jax.block_until_ready(logits)
    assert logits.shape == (2, NUM_CLASSES) and logits.dtype == jnp.float32
    assert bool(jnp.all(jnp.isfinite(logits)))

    ref = reference_forward(x, params)
    assert bool(jnp.allclose(logits, ref, rtol=3e-2, atol=3e-2)), (logits, ref)
    print("KERNEL_OK")
</pallas_src>

<mosaic_0001>
module attributes {stable_mosaic.version = 11 : i64} {
  func.func @_conv_tap_kernel(%arg0: i32, %arg1: memref<1x81x3xf32, #tpu.memory_space<vmem>>, %arg2: memref<1x81x3xf32, #tpu.memory_space<vmem>>, %arg3: memref<1x81x3xf32, #tpu.memory_space<vmem>>, %arg4: memref<1x81x3xf32, #tpu.memory_space<vmem>>, %arg5: memref<9x3x128xbf16, #tpu.memory_space<vmem>>, %arg6: memref<1x128xf32, #tpu.memory_space<vmem>>, %arg7: memref<1x71x128xbf16, #tpu.memory_space<vmem>>) attributes {dimension_semantics = [#tpu.dimension_semantics<parallel>], iteration_bounds = array<i64: 2>, scalar_prefetch = 0 : i64, scratch_operands = 0 : i64, tpu.core_type = #tpu.core_type<tc>, window_params = [{transform_indices = @transform_0, window_bounds = array<i64: 1, 81, 3>}, {transform_indices = @transform_1, window_bounds = array<i64: 1, 81, 3>}, {transform_indices = @transform_2, window_bounds = array<i64: 1, 81, 3>}, {transform_indices = @transform_3, window_bounds = array<i64: 1, 81, 3>}, {pipeline_mode = #tpu.pipeline_mode<synchronous>, transform_indices = @transform_4, window_bounds = array<i64: 9, 3, 128>}, {pipeline_mode = #tpu.pipeline_mode<synchronous>, transform_indices = @transform_5, window_bounds = array<i64: 1, 128>}, {transform_indices = @transform_6, window_bounds = array<i64: 1, 71, 128>}]} {
    %c0 = arith.constant 0 : index
    %c0_0 = arith.constant 0 : index
    %c0_1 = arith.constant 0 : index
    %0 = vector.load %arg1[%c0, %c0_0, %c0_1] : memref<1x81x3xf32, #tpu.memory_space<vmem>>, vector<1x81x3xf32>
    %1 = vector.shape_cast %0 : vector<1x81x3xf32> to vector<81x3xf32>
    %2 = arith.truncf %1 : vector<81x3xf32> to vector<81x3xbf16>
    %c0_2 = arith.constant 0 : index
    %c0_3 = arith.constant 0 : index
    %c0_4 = arith.constant 0 : index
    %3 = vector.load %arg2[%c0_2, %c0_3, %c0_4] : memref<1x81x3xf32, #tpu.memory_space<vmem>>, vector<1x81x3xf32>
    %4 = vector.shape_cast %3 : vector<1x81x3xf32> to vector<81x3xf32>
    %5 = arith.truncf %4 : vector<81x3xf32> to vector<81x3xbf16>
    %c0_5 = arith.constant 0 : index
    %c0_6 = arith.constant 0 : index
    %c0_7 = arith.constant 0 : index
    %6 = vector.load %arg3[%c0_5, %c0_6, %c0_7] : memref<1x81x3xf32, #tpu.memory_space<vmem>>, vector<1x81x3xf32>
    %7 = vector.shape_cast %6 : vector<1x81x3xf32> to vector<81x3xf32>
    %8 = arith.truncf %7 : vector<81x3xf32> to vector<81x3xbf16>
    %c0_8 = arith.constant 0 : index
    %c0_9 = arith.constant 0 : index
    %c0_10 = arith.constant 0 : index
    %9 = vector.load %arg4[%c0_8, %c0_9, %c0_10] : memref<1x81x3xf32, #tpu.memory_space<vmem>>, vector<1x81x3xf32>
    %10 = vector.shape_cast %9 : vector<1x81x3xf32> to vector<81x3xf32>
    %11 = arith.truncf %10 : vector<81x3xf32> to vector<81x3xbf16>
    %cst = arith.constant 0.000000e+00 : f32
    %12 = vector.broadcast %cst : f32 to vector<71x128xf32>
    %13 = vector.extract_strided_slice %2 {offsets = [0, 0], sizes = [71, 3], strides = [1, 1]} : vector<81x3xbf16> to vector<71x3xbf16>
    %c0_11 = arith.constant 0 : index
    %c0_12 = arith.constant 0 : index
    %c0_13 = arith.constant 0 : index
    %14 = vector.load %arg5[%c0_11, %c0_12, %c0_13] : memref<9x3x128xbf16, #tpu.memory_space<vmem>>, vector<1x3x128xbf16>
    %15 = vector.shape_cast %14 : vector<1x3x128xbf16> to vector<3x128xbf16>
    %cst_14 = arith.constant dense<0.000000e+00> : vector<71x128xf32>
    %16 = tpu.matmul %13, %15, %cst_14 {dimension_numbers = #tpu.dot_dimension_numbers<[1], [0], [0], [1], [0, 0, 1, 1], [], []>} : vector<71x3xbf16>, vector<3x128xbf16>, vector<71x128xf32> -> vector<71x128xf32>
    %17 = arith.addf %12, %16 : vector<71x128xf32>
    %18 = vector.extract_strided_slice %5 {offsets = [0, 0], sizes = [71, 3], strides = [1, 1]} : vector<81x3xbf16> to vector<71x3xbf16>
    %c1 = arith.constant 1 : index
    %c0_15 = arith.constant 0 : index
    %c0_16 = arith.constant 0 : index
    %19 = vector.load %arg5[%c1, %c0_15, %c0_16] : memref<9x3x128xbf16, #tpu.memory_space<vmem>>, vector<1x3x128xbf16>
    %20 = vector.shape_cast %19 : vector<1x3x128xbf16> to vector<3x128xbf16>
    %cst_17 = arith.constant dense<0.000000e+00> : vector<71x128xf32>
    %21 = tpu.matmul %18, %20, %cst_17 {dimension_numbers = #tpu.dot_dimension_numbers<[1], [0], [0], [1], [0, 0, 1, 1], [], []>} : vector<71x3xbf16>, vector<3x128xbf16>, vector<71x128xf32> -> vector<71x128xf32>
    %22 = arith.addf %17, %21 : vector<71x128xf32>
    %23 = vector.extract_strided_slice %2 {offsets = [1, 0], sizes = [71, 3], strides = [1, 1]} : vector<81x3xbf16> to vector<71x3xbf16>
    %c2 = arith.constant 2 : index
    %c0_18 = arith.constant 0 : index
    %c0_19 = arith.constant 0 : index
    %24 = vector.load %arg5[%c2, %c0_18, %c0_19] : memref<9x3x128xbf16, #tpu.memory_space<vmem>>, vector<1x3x128xbf16>
    %25 = vector.shape_cast %24 : vector<1x3x128xbf16> to vector<3x128xbf16>
    %cst_20 = arith.constant dense<0.000000e+00> : vector<71x128xf32>
    %26 = tpu.matmul %23, %25, %cst_20 {dimension_numbers = #tpu.dot_dimension_numbers<[1], [0], [0], [1], [0, 0, 1, 1], [], []>} : vector<71x3xbf16>, vector<3x128xbf16>, vector<71x128xf32> -> vector<71x128xf32>
    %27 = arith.addf %22, %26 : vector<71x128xf32>
    %28 = vector.extract_strided_slice %8 {offsets = [0, 0], sizes = [71, 3], strides = [1, 1]} : vector<81x3xbf16> to vector<71x3xbf16>
    %c3 = arith.constant 3 : index
    %c0_21 = arith.constant 0 : index
    %c0_22 = arith.constant 0 : index
    %29 = vector.load %arg5[%c3, %c0_21, %c0_22] : memref<9x3x128xbf16, #tpu.memory_space<vmem>>, vector<1x3x128xbf16>
    %30 = vector.shape_cast %29 : vector<1x3x128xbf16> to vector<3x128xbf16>
    %cst_23 = arith.constant dense<0.000000e+00> : vector<71x128xf32>
    %31 = tpu.matmul %28, %30, %cst_23 {dimension_numbers = #tpu.dot_dimension_numbers<[1], [0], [0], [1], [0, 0, 1, 1], [], []>} : vector<71x3xbf16>, vector<3x128xbf16>, vector<71x128xf32> -> vector<71x128xf32>
    %32 = arith.addf %27, %31 : vector<71x128xf32>
    %33 = vector.extract_strided_slice %11 {offsets = [0, 0], sizes = [71, 3], strides = [1, 1]} : vector<81x3xbf16> to vector<71x3xbf16>
    %c4 = arith.constant 4 : index
    %c0_24 = arith.constant 0 : index
    %c0_25 = arith.constant 0 : index
    %34 = vector.load %arg5[%c4, %c0_24, %c0_25] : memref<9x3x128xbf16, #tpu.memory_space<vmem>>, vector<1x3x128xbf16>
    %35 = vector.shape_cast %34 : vector<1x3x128xbf16> to vector<3x128xbf16>
    %cst_26 = arith.constant dense<0.000000e+00> : vector<71x128xf32>
    %36 = tpu.matmul %33, %35, %cst_26 {dimension_numbers = #tpu.dot_dimension_numbers<[1], [0], [0], [1], [0, 0, 1, 1], [], []>} : vector<71x3xbf16>, vector<3x128xbf16>, vector<71x128xf32> -> vector<71x128xf32>
    %37 = arith.addf %32, %36 : vector<71x128xf32>
    %38 = vector.extract_strided_slice %8 {offsets = [1, 0], sizes = [71, 3], strides = [1, 1]} : vector<81x3xbf16> to vector<71x3xbf16>
    %c5 = arith.constant 5 : index
    %c0_27 = arith.constant 0 : index
    %c0_28 = arith.constant 0 : index
    %39 = vector.load %arg5[%c5, %c0_27, %c0_28] : memref<9x3x128xbf16, #tpu.memory_space<vmem>>, vector<1x3x128xbf16>
    %40 = vector.shape_cast %39 : vector<1x3x128xbf16> to vector<3x128xbf16>
    %cst_29 = arith.constant dense<0.000000e+00> : vector<71x128xf32>
    %41 = tpu.matmul %38, %40, %cst_29 {dimension_numbers = #tpu.dot_dimension_numbers<[1], [0], [0], [1], [0, 0, 1, 1], [], []>} : vector<71x3xbf16>, vector<3x128xbf16>, vector<71x128xf32> -> vector<71x128xf32>
    %42 = arith.addf %37, %41 : vector<71x128xf32>
    %43 = vector.extract_strided_slice %2 {offsets = [9, 0], sizes = [71, 3], strides = [1, 1]} : vector<81x3xbf16> to vector<71x3xbf16>
    %c6 = arith.constant 6 : index
    %c0_30 = arith.constant 0 : index
    %c0_31 = arith.constant 0 : index
    %44 = vector.load %arg5[%c6, %c0_30, %c0_31] : memref<9x3x128xbf16, #tpu.memory_space<vmem>>, vector<1x3x128xbf16>
    %45 = vector.shape_cast %44 : vector<1x3x128xbf16> to vector<3x128xbf16>
    %cst_32 = arith.constant dense<0.000000e+00> : vector<71x128xf32>
    %46 = tpu.matmul %43, %45, %cst_32 {dimension_numbers = #tpu.dot_dimension_numbers<[1], [0], [0], [1], [0, 0, 1, 1], [], []>} : vector<71x3xbf16>, vector<3x128xbf16>, vector<71x128xf32> -> vector<71x128xf32>
    %47 = arith.addf %42, %46 : vector<71x128xf32>
    %48 = vector.extract_strided_slice %5 {offsets = [9, 0], sizes = [71, 3], strides = [1, 1]} : vector<81x3xbf16> to vector<71x3xbf16>
    %c7 = arith.constant 7 : index
    %c0_33 = arith.constant 0 : index
    %c0_34 = arith.constant 0 : index
    %49 = vector.load %arg5[%c7, %c0_33, %c0_34] : memref<9x3x128xbf16, #tpu.memory_space<vmem>>, vector<1x3x128xbf16>
    %50 = vector.shape_cast %49 : vector<1x3x128xbf16> to vector<3x128xbf16>
    %cst_35 = arith.constant dense<0.000000e+00> : vector<71x128xf32>
    %51 = tpu.matmul %48, %50, %cst_35 {dimension_numbers = #tpu.dot_dimension_numbers<[1], [0], [0], [1], [0, 0, 1, 1], [], []>} : vector<71x3xbf16>, vector<3x128xbf16>, vector<71x128xf32> -> vector<71x128xf32>
    %52 = arith.addf %47, %51 : vector<71x128xf32>
    %53 = vector.extract_strided_slice %2 {offsets = [10, 0], sizes = [71, 3], strides = [1, 1]} : vector<81x3xbf16> to vector<71x3xbf16>
    %c8 = arith.constant 8 : index
    %c0_36 = arith.constant 0 : index
    %c0_37 = arith.constant 0 : index
    %54 = vector.load %arg5[%c8, %c0_36, %c0_37] : memref<9x3x128xbf16, #tpu.memory_space<vmem>>, vector<1x3x128xbf16>
    %55 = vector.shape_cast %54 : vector<1x3x128xbf16> to vector<3x128xbf16>
    %cst_38 = arith.constant dense<0.000000e+00> : vector<71x128xf32>
    %56 = tpu.matmul %53, %55, %cst_38 {dimension_numbers = #tpu.dot_dimension_numbers<[1], [0], [0], [1], [0, 0, 1, 1], [], []>} : vector<71x3xbf16>, vector<3x128xbf16>, vector<71x128xf32> -> vector<71x128xf32>
    %57 = arith.addf %52, %56 : vector<71x128xf32>
    %c0_39 = arith.constant 0 : index
    %c0_40 = arith.constant 0 : index
    %58 = vector.load %arg6[%c0_39, %c0_40] : memref<1x128xf32, #tpu.memory_space<vmem>>, vector<1x128xf32>
    %59 = vector.broadcast %58 : vector<1x128xf32> to vector<71x128xf32>
    %60 = arith.addf %57, %59 : vector<71x128xf32>
    %61 = arith.negf %60 : vector<71x128xf32>
    %62 = math.exp %61 : vector<71x128xf32>
    %cst_41 = arith.constant 1.000000e+00 : f32
    %63 = vector.broadcast %cst_41 : f32 to vector<71x128xf32>
    %64 = arith.addf %63, %62 : vector<71x128xf32>
    %65 = arith.divf %63, %64 : vector<71x128xf32>
    %66 = arith.mulf %60, %65 : vector<71x128xf32>
    %67 = arith.truncf %66 : vector<71x128xf32> to vector<71x128xbf16>
    %c0_42 = arith.constant 0 : index
    %c0_43 = arith.constant 0 : index
    %c0_44 = arith.constant 0 : index
    %68 = vector.load %arg7[%c0_42, %c0_43, %c0_44] : memref<1x71x128xbf16, #tpu.memory_space<vmem>>, vector<1x71x128xbf16>
    %69 = vector.shape_cast %68 : vector<1x71x128xbf16> to vector<71x128xbf16>
    %70 = vector.shape_cast %67 : vector<71x128xbf16> to vector<1x71x128xbf16>
    tpu.vector_store %arg7[%c0_42, %c0_43, %c0_44], %70 {strides = array<i32>} : memref<1x71x128xbf16, #tpu.memory_space<vmem>>, vector<1x71x128xbf16>,
    return
  }
  func.func @transform_0(%arg0: i32) -> (i32, i32, i32) {
    %c0_i32 = arith.constant 0 : i32
    %c0_i32_0 = arith.constant 0 : i32
    %c0_i32_1 = arith.constant 0 : i32
    return %arg0, %c0_i32, %c0_i32_0 : i32, i32, i32
  }
  func.func @transform_1(%arg0: i32) -> (i32, i32, i32) {
    %c0_i32 = arith.constant 0 : i32
    %c0_i32_0 = arith.constant 0 : i32
    %c0_i32_1 = arith.constant 0 : i32
    return %arg0, %c0_i32, %c0_i32_0 : i32, i32, i32
  }
  func.func @transform_2(%arg0: i32) -> (i32, i32, i32) {
    %c0_i32 = arith.constant 0 : i32
    %c0_i32_0 = arith.constant 0 : i32
    %c0_i32_1 = arith.constant 0 : i32
    return %arg0, %c0_i32, %c0_i32_0 : i32, i32, i32
  }
  func.func @transform_3(%arg0: i32) -> (i32, i32, i32) {
    %c0_i32 = arith.constant 0 : i32
    %c0_i32_0 = arith.constant 0 : i32
    %c0_i32_1 = arith.constant 0 : i32
    return %arg0, %c0_i32, %c0_i32_0 : i32, i32, i32
  }
  func.func @transform_4(%arg0: i32) -> (i32, i32, i32) {
    %c0_i32 = arith.constant 0 : i32
    %c0_i32_0 = arith.constant 0 : i32
    %c0_i32_1 = arith.constant 0 : i32
    %c0_i32_2 = arith.constant 0 : i32
    return %c0_i32, %c0_i32_0, %c0_i32_1 : i32, i32, i32
  }
  func.func @transform_5(%arg0: i32) -> (i32, i32) {
    %c0_i32 = arith.constant 0 : i32
    %c0_i32_0 = arith.constant 0 : i32
    %c0_i32_1 = arith.constant 0 : i32
    return %c0_i32, %c0_i32_0 : i32, i32
  }
  func.func @transform_6(%arg0: i32) -> (i32, i32, i32) {
    %c0_i32 = arith.constant 0 : i32
    %c0_i32_0 = arith.constant 0 : i32
    %c0_i32_1 = arith.constant 0 : i32
    return %arg0, %c0_i32, %c0_i32_0 : i32, i32, i32
  }
}

module attributes {stable_mosaic.version = 11 : i64} {
  func.func @_conv_tap_kernel(%arg0: i32, %arg1: memref<1x100x128xbf16, #tpu.memory_space<vmem>>, %arg2: memref<9x128x128xbf16, #tpu.memory_space<vmem>>, %arg3: memref<1x128xf32, #tpu.memory_space<vmem>>, %arg4: memref<128x128xbf16, #tpu.memory_space<vmem>>, %arg5: memref<1x128xf32, #tpu.memory_space<vmem>>, %arg6: memref<1x78x128xbf16, #tpu.memory_space<vmem>>) attributes {dimension_semantics = [#tpu.dimension_semantics<parallel>], iteration_bounds = array<i64: 2>, scalar_prefetch = 0 : i64, scratch_operands = 0 : i64, tpu.core_type = #tpu.core_type<tc>, window_params = [{transform_indices = @transform_0, window_bounds = array<i64: 1, 100, 128>}, {pipeline_mode = #tpu.pipeline_mode<synchronous>, transform_indices = @transform_1, window_bounds = array<i64: 9, 128, 128>}, {pipeline_mode = #tpu.pipeline_mode<synchronous>, transform_indices = @transform_2, window_bounds = array<i64: 1, 128>}, {pipeline_mode = #tpu.pipeline_mode<synchronous>, transform_indices = @transform_3, window_bounds = array<i64: 128, 128>}, {pipeline_mode = #tpu.pipeline_mode<synchronous>, transform_indices = @transform_4, window_bounds = array<i64: 1, 128>}, {transform_indices = @transform_5, window_bounds = array<i64: 1, 78, 128>}]} {
    %c0 = arith.constant 0 : index
    %c0_0 = arith.constant 0 : index
    %c0_1 = arith.constant 0 : index
    %0 = vector.load %arg1[%c0, %c0_0, %c0_1] : memref<1x100x128xbf16, #tpu.memory_space<vmem>>, vector<1x100x128xbf16>
    %1 = vector.shape_cast %0 : vector<1x100x128xbf16> to vector<100x128xbf16>
    %cst = arith.constant 0.000000e+00 : f32
    %2 = vector.broadcast %cst : f32 to vector<78x128xf32>
    %3 = vector.extract_strided_slice %1 {offsets = [0, 0], sizes = [78, 128], strides = [1, 1]} : vector<100x128xbf16> to vector<78x128xbf16>
    %c0_2 = arith.constant 0 : index
    %c0_3 = arith.constant 0 : index
    %c0_4 = arith.constant 0 : index
    %4 = vector.load %arg2[%c0_2, %c0_3, %c0_4] : memref<9x128x128xbf16, #tpu.memory_space<vmem>>, vector<1x128x128xbf16>
    %5 = vector.shape_cast %4 : vector<1x128x128xbf16> to vector<128x128xbf16>
    %cst_5 = arith.constant dense<0.000000e+00> : vector<78x128xf32>
    %6 = tpu.matmul %3, %5, %cst_5 {dimension_numbers = #tpu.dot_dimension_numbers<[1], [0], [0], [1], [0, 0, 1, 1], [], []>} : vector<78x128xbf16>, vector<128x128xbf16>, vector<78x128xf32> -> vector<78x128xf32>
    %7 = arith.addf %2, %6 : vector<78x128xf32>
    %8 = vector.extract_strided_slice %1 {offsets = [1, 0], sizes = [78, 128], strides = [1, 1]} : vector<100x128xbf16> to vector<78x128xbf16>
    %c1 = arith.constant 1 : index
    %c0_6 = arith.constant 0 : index
    %c0_7 = arith.constant 0 : index
    %9 = vector.load %arg2[%c1, %c0_6, %c0_7] : memref<9x128x128xbf16, #tpu.memory_space<vmem>>, vector<1x128x128xbf16>
    %10 = vector.shape_cast %9 : vector<1x128x128xbf16> to vector<128x128xbf16>
    %cst_8 = arith.constant dense<0.000000e+00> : vector<78x128xf32>
    %11 = tpu.matmul %8, %10, %cst_8 {dimension_numbers = #tpu.dot_dimension_numbers<[1], [0], [0], [1], [0, 0, 1, 1], [], []>} : vector<78x128xbf16>, vector<128x128xbf16>, vector<78x128xf32> -> vector<78x128xf32>
    %12 = arith.addf %7, %11 : vector<78x128xf32>
    %13 = vector.extract_strided_slice %1 {offsets = [2, 0], sizes = [78, 128], strides = [1, 1]} : vector<100x128xbf16> to vector<78x128xbf16>
    %c2 = arith.constant 2 : index
    %c0_9 = arith.constant 0 : index
    %c0_10 = arith.constant 0 : index
    %14 = vector.load %arg2[%c2, %c0_9, %c0_10] : memref<9x128x128xbf16, #tpu.memory_space<vmem>>, vector<1x128x128xbf16>
    %15 = vector.shape_cast %14 : vector<1x128x128xbf16> to vector<128x128xbf16>
    %cst_11 = arith.constant dense<0.000000e+00> : vector<78x128xf32>
    %16 = tpu.matmul %13, %15, %cst_11 {dimension_numbers = #tpu.dot_dimension_numbers<[1], [0], [0], [1], [0, 0, 1, 1], [], []>} : vector<78x128xbf16>, vector<128x128xbf16>, vector<78x128xf32> -> vector<78x128xf32>
    %17 = arith.addf %12, %16 : vector<78x128xf32>
    %18 = vector.extract_strided_slice %1 {offsets = [10, 0], sizes = [78, 128], strides = [1, 1]} : vector<100x128xbf16> to vector<78x128xbf16>
    %c3 = arith.constant 3 : index
    %c0_12 = arith.constant 0 : index
    %c0_13 = arith.constant 0 : index
    %19 = vector.load %arg2[%c3, %c0_12, %c0_13] : memref<9x128x128xbf16, #tpu.memory_space<vmem>>, vector<1x128x128xbf16>
    %20 = vector.shape_cast %19 : vector<1x128x128xbf16> to vector<128x128xbf16>
    %cst_14 = arith.constant dense<0.000000e+00> : vector<78x128xf32>
    %21 = tpu.matmul %18, %20, %cst_14 {dimension_numbers = #tpu.dot_dimension_numbers<[1], [0], [0], [1], [0, 0, 1, 1], [], []>} : vector<78x128xbf16>, vector<128x128xbf16>, vector<78x128xf32> -> vector<78x128xf32>
    %22 = arith.addf %17, %21 : vector<78x128xf32>
    %23 = vector.extract_strided_slice %1 {offsets = [11, 0], sizes = [78, 128], strides = [1, 1]} : vector<100x128xbf16> to vector<78x128xbf16>
    %c4 = arith.constant 4 : index
    %c0_15 = arith.constant 0 : index
    %c0_16 = arith.constant 0 : index
    %24 = vector.load %arg2[%c4, %c0_15, %c0_16] : memref<9x128x128xbf16, #tpu.memory_space<vmem>>, vector<1x128x128xbf16>
    %25 = vector.shape_cast %24 : vector<1x128x128xbf16> to vector<128x128xbf16>
    %cst_17 = arith.constant dense<0.000000e+00> : vector<78x128xf32>
    %26 = tpu.matmul %23, %25, %cst_17 {dimension_numbers = #tpu.dot_dimension_numbers<[1], [0], [0], [1], [0, 0, 1, 1], [], []>} : vector<78x128xbf16>, vector<128x128xbf16>, vector<78x128xf32> -> vector<78x128xf32>
    %27 = arith.addf %22, %26 : vector<78x128xf32>
    %28 = vector.extract_strided_slice %1 {offsets = [12, 0], sizes = [78, 128], strides = [1, 1]} : vector<100x128xbf16> to vector<78x128xbf16>
    %c5 = arith.constant 5 : index
    %c0_18 = arith.constant 0 : index
    %c0_19 = arith.constant 0 : index
    %29 = vector.load %arg2[%c5, %c0_18, %c0_19] : memref<9x128x128xbf16, #tpu.memory_space<vmem>>, vector<1x128x128xbf16>
    %30 = vector.shape_cast %29 : vector<1x128x128xbf16> to vector<128x128xbf16>
    %cst_20 = arith.constant dense<0.000000e+00> : vector<78x128xf32>
    %31 = tpu.matmul %28, %30, %cst_20 {dimension_numbers = #tpu.dot_dimension_numbers<[1], [0], [0], [1], [0, 0, 1, 1], [], []>} : vector<78x128xbf16>, vector<128x128xbf16>, vector<78x128xf32> -> vector<78x128xf32>
    %32 = arith.addf %27, %31 : vector<78x128xf32>
    %33 = vector.extract_strided_slice %1 {offsets = [20, 0], sizes = [78, 128], strides = [1, 1]} : vector<100x128xbf16> to vector<78x128xbf16>
    %c6 = arith.constant 6 : index
    %c0_21 = arith.constant 0 : index
    %c0_22 = arith.constant 0 : index
    %34 = vector.load %arg2[%c6, %c0_21, %c0_22] : memref<9x128x128xbf16, #tpu.memory_space<vmem>>, vector<1x128x128xbf16>
    %35 = vector.shape_cast %34 : vector<1x128x128xbf16> to vector<128x128xbf16>
    %cst_23 = arith.constant dense<0.000000e+00> : vector<78x128xf32>
    %36 = tpu.matmul %33, %35, %cst_23 {dimension_numbers = #tpu.dot_dimension_numbers<[1], [0], [0], [1], [0, 0, 1, 1], [], []>} : vector<78x128xbf16>, vector<128x128xbf16>, vector<78x128xf32> -> vector<78x128xf32>
    %37 = arith.addf %32, %36 : vector<78x128xf32>
    %38 = vector.extract_strided_slice %1 {offsets = [21, 0], sizes = [78, 128], strides = [1, 1]} : vector<100x128xbf16> to vector<78x128xbf16>
    %c7 = arith.constant 7 : index
    %c0_24 = arith.constant 0 : index
    %c0_25 = arith.constant 0 : index
    %39 = vector.load %arg2[%c7, %c0_24, %c0_25] : memref<9x128x128xbf16, #tpu.memory_space<vmem>>, vector<1x128x128xbf16>
    %40 = vector.shape_cast %39 : vector<1x128x128xbf16> to vector<128x128xbf16>
    %cst_26 = arith.constant dense<0.000000e+00> : vector<78x128xf32>
    %41 = tpu.matmul %38, %40, %cst_26 {dimension_numbers = #tpu.dot_dimension_numbers<[1], [0], [0], [1], [0, 0, 1, 1], [], []>} : vector<78x128xbf16>, vector<128x128xbf16>, vector<78x128xf32> -> vector<78x128xf32>
    %42 = arith.addf %37, %41 : vector<78x128xf32>
    %43 = vector.extract_strided_slice %1 {offsets = [22, 0], sizes = [78, 128], strides = [1, 1]} : vector<100x128xbf16> to vector<78x128xbf16>
    %c8 = arith.constant 8 : index
    %c0_27 = arith.constant 0 : index
    %c0_28 = arith.constant 0 : index
    %44 = vector.load %arg2[%c8, %c0_27, %c0_28] : memref<9x128x128xbf16, #tpu.memory_space<vmem>>, vector<1x128x128xbf16>
    %45 = vector.shape_cast %44 : vector<1x128x128xbf16> to vector<128x128xbf16>
    %cst_29 = arith.constant dense<0.000000e+00> : vector<78x128xf32>
    %46 = tpu.matmul %43, %45, %cst_29 {dimension_numbers = #tpu.dot_dimension_numbers<[1], [0], [0], [1], [0, 0, 1, 1], [], []>} : vector<78x128xbf16>, vector<128x128xbf16>, vector<78x128xf32> -> vector<78x128xf32>
    %47 = arith.addf %42, %46 : vector<78x128xf32>
    %c0_30 = arith.constant 0 : index
    %c0_31 = arith.constant 0 : index
    %48 = vector.load %arg3[%c0_30, %c0_31] : memref<1x128xf32, #tpu.memory_space<vmem>>, vector<1x128xf32>
    %49 = vector.broadcast %48 : vector<1x128xf32> to vector<78x128xf32>
    %50 = arith.addf %47, %49 : vector<78x128xf32>
    %51 = arith.negf %50 : vector<78x128xf32>
    %52 = math.exp %51 : vector<78x128xf32>
    %cst_32 = arith.constant 1.000000e+00 : f32
    %53 = vector.broadcast %cst_32 : f32 to vector<78x128xf32>
    %54 = arith.addf %53, %52 : vector<78x128xf32>
    %55 = arith.divf %53, %54 : vector<78x128xf32>
    %56 = arith.mulf %50, %55 : vector<78x128xf32>
    %57 = arith.truncf %56 : vector<78x128xf32> to vector<78x128xbf16>
    %c0_33 = arith.constant 0 : index
    %c0_34 = arith.constant 0 : index
    %58 = vector.load %arg4[%c0_33, %c0_34] : memref<128x128xbf16, #tpu.memory_space<vmem>>, vector<128x128xbf16>
    %cst_35 = arith.constant dense<0.000000e+00> : vector<78x128xf32>
    %59 = tpu.matmul %57, %58, %cst_35 {dimension_numbers = #tpu.dot_dimension_numbers<[1], [0], [0], [1], [0, 0, 1, 1], [], []>} : vector<78x128xbf16>, vector<128x128xbf16>, vector<78x128xf32> -> vector<78x128xf32>
    %c0_36 = arith.constant 0 : index
    %c0_37 = arith.constant 0 : index
    %60 = vector.load %arg5[%c0_36, %c0_37] : memref<1x128xf32, #tpu.memory_space<vmem>>, vector<1x128xf32>
    %61 = vector.broadcast %60 : vector<1x128xf32> to vector<78x128xf32>
    %62 = arith.addf %59, %61 : vector<78x128xf32>
    %63 = arith.truncf %62 : vector<78x128xf32> to vector<78x128xbf16>
    %c0_38 = arith.constant 0 : index
    %c0_39 = arith.constant 0 : index
    %c0_40 = arith.constant 0 : index
    %64 = vector.load %arg6[%c0_38, %c0_39, %c0_40] : memref<1x78x128xbf16, #tpu.memory_space<vmem>>, vector<1x78x128xbf16>
    %65 = vector.shape_cast %64 : vector<1x78x128xbf16> to vector<78x128xbf16>
    %66 = vector.shape_cast %63 : vector<78x128xbf16> to vector<1x78x128xbf16>
    tpu.vector_store %arg6[%c0_38, %c0_39, %c0_40], %66 {strides = array<i32>} : memref<1x78x128xbf16, #tpu.memory_space<vmem>>, vector<1x78x128xbf16>,
    return
  }
  func.func @transform_0(%arg0: i32) -> (i32, i32, i32) {
    %c0_i32 = arith.constant 0 : i32
    %c0_i32_0 = arith.constant 0 : i32
    %c0_i32_1 = arith.constant 0 : i32
    return %arg0, %c0_i32, %c0_i32_0 : i32, i32, i32
  }
  func.func @transform_1(%arg0: i32) -> (i32, i32, i32) {
    %c0_i32 = arith.constant 0 : i32
    %c0_i32_0 = arith.constant 0 : i32
    %c0_i32_1 = arith.constant 0 : i32
    %c0_i32_2 = arith.constant 0 : i32
    return %c0_i32, %c0_i32_0, %c0_i32_1 : i32, i32, i32
  }
  func.func @transform_2(%arg0: i32) -> (i32, i32) {
    %c0_i32 = arith.constant 0 : i32
    %c0_i32_0 = arith.constant 0 : i32
    %c0_i32_1 = arith.constant 0 : i32
    return %c0_i32, %c0_i32_0 : i32, i32
  }
  func.func @transform_3(%arg0: i32) -> (i32, i32) {
    %c0_i32 = arith.constant 0 : i32
    %c0_i32_0 = arith.constant 0 : i32
    %c0_i32_1 = arith.constant 0 : i32
    return %c0_i32, %c0_i32_0 : i32, i32
  }
  func.func @transform_4(%arg0: i32) -> (i32, i32) {
    %c0_i32 = arith.constant 0 : i32
    %c0_i32_0 = arith.constant 0 : i32
    %c0_i32_1 = arith.constant 0 : i32
    return %c0_i32, %c0_i32_0 : i32, i32
  }
  func.func @transform_5(%arg0: i32) -> (i32, i32, i32) {
    %c0_i32 = arith.constant 0 : i32
    %c0_i32_0 = arith.constant 0 : i32
    %c0_i32_1 = arith.constant 0 : i32
    return %arg0, %c0_i32, %c0_i32_0 : i32, i32, i32
  }
}

module attributes {stable_mosaic.version = 11 : i64} {
  func.func @_matmul_bn_act_kernel(%arg0: i32, %arg1: memref<128x128xbf16, #tpu.memory_space<vmem>>, %arg2: memref<128x128xbf16, #tpu.memory_space<vmem>>, %arg3: memref<1x128xf32, #tpu.memory_space<vmem>>, %arg4: memref<128x128xf32, #tpu.memory_space<vmem>>) attributes {dimension_semantics = [#tpu.dimension_semantics<parallel>], iteration_bounds = array<i64: 1>, scalar_prefetch = 0 : i64, scratch_operands = 0 : i64, tpu.core_type = #tpu.core_type<tc>, window_params = [{transform_indices = @transform_0, window_bounds = array<i64: 128, 128>}, {pipeline_mode = #tpu.pipeline_mode<synchronous>, transform_indices = @transform_1, window_bounds = array<i64: 128, 128>}, {pipeline_mode = #tpu.pipeline_mode<synchronous>, transform_indices = @transform_2, window_bounds = array<i64: 1, 128>}, {transform_indices = @transform_3, window_bounds = array<i64: 128, 128>}]} {
    %c0 = arith.constant 0 : index
    %c0_0 = arith.constant 0 : index
    %0 = vector.load %arg1[%c0, %c0_0] : memref<128x128xbf16, #tpu.memory_space<vmem>>, vector<128x128xbf16>
    %c0_1 = arith.constant 0 : index
    %c0_2 = arith.constant 0 : index
    %1 = vector.load %arg2[%c0_1, %c0_2] : memref<128x128xbf16, #tpu.memory_space<vmem>>, vector<128x128xbf16>
    %cst = arith.constant dense<0.000000e+00> : vector<128x128xf32>
    %2 = tpu.matmul %0, %1, %cst {dimension_numbers = #tpu.dot_dimension_numbers<[1], [0], [0], [1], [0, 0, 1, 1], [], []>} : vector<128x128xbf16>, vector<128x128xbf16>, vector<128x128xf32> -> vector<128x128xf32>
    %c0_3 = arith.constant 0 : index
    %c0_4 = arith.constant 0 : index
    %3 = vector.load %arg3[%c0_3, %c0_4] : memref<1x128xf32, #tpu.memory_space<vmem>>, vector<1x128xf32>
    %4 = vector.broadcast %3 : vector<1x128xf32> to vector<128x128xf32>
    %5 = arith.addf %2, %4 : vector<128x128xf32>
    %6 = arith.negf %5 : vector<128x128xf32>
    %7 = math.exp %6 : vector<128x128xf32>
    %cst_5 = arith.constant 1.000000e+00 : f32
    %8 = vector.broadcast %cst_5 : f32 to vector<128x128xf32>
    %9 = arith.addf %8, %7 : vector<128x128xf32>
    %10 = arith.divf %8, %9 : vector<128x128xf32>
    %11 = arith.mulf %5, %10 : vector<128x128xf32>
    %c0_6 = arith.constant 0 : index
    %c0_7 = arith.constant 0 : index
    %12 = vector.load %arg4[%c0_6, %c0_7] : memref<128x128xf32, #tpu.memory_space<vmem>>, vector<128x128xf32>
    tpu.vector_store %arg4[%c0_6, %c0_7], %11 {strides = array<i32>} : memref<128x128xf32, #tpu.memory_space<vmem>>, vector<128x128xf32>,
    return
  }
  func.func @transform_0(%arg0: i32) -> (i32, i32) {
    %c0_i32 = arith.constant 0 : i32
    %c0_i32_0 = arith.constant 0 : i32
    return %arg0, %c0_i32 : i32, i32
  }
  func.func @transform_1(%arg0: i32) -> (i32, i32) {
    %c0_i32 = arith.constant 0 : i32
    %c0_i32_0 = arith.constant 0 : i32
    %c0_i32_1 = arith.constant 0 : i32
    return %c0_i32, %c0_i32_0 : i32, i32
  }
  func.func @transform_2(%arg0: i32) -> (i32, i32) {
    %c0_i32 = arith.constant 0 : i32
    %c0_i32_0 = arith.constant 0 : i32
    %c0_i32_1 = arith.constant 0 : i32
    return %c0_i32, %c0_i32_0 : i32, i32
  }
  func.func @transform_3(%arg0: i32) -> (i32, i32) {
    %c0_i32 = arith.constant 0 : i32
    %c0_i32_0 = arith.constant 0 : i32
    return %arg0, %c0_i32 : i32, i32
  }
}

module attributes {stable_mosaic.version = 11 : i64} {
  func.func @_conv_tap_kernel(%arg0: i32, %arg1: memref<1x25x128xf32, #tpu.memory_space<vmem>>, %arg2: memref<1x25x128xf32, #tpu.memory_space<vmem>>, %arg3: memref<1x25x128xf32, #tpu.memory_space<vmem>>, %arg4: memref<1x25x128xf32, #tpu.memory_space<vmem>>, %arg5: memref<9x128xf32, #tpu.memory_space<vmem>>, %arg6: memref<1x128xf32, #tpu.memory_space<vmem>>, %arg7: memref<1x19x128xf32, #tpu.memory_space<vmem>>) attributes {dimension_semantics = [#tpu.dimension_semantics<parallel>], iteration_bounds = array<i64: 2>, scalar_prefetch = 0 : i64, scratch_operands = 0 : i64, tpu.core_type = #tpu.core_type<tc>, window_params = [{transform_indices = @transform_0, window_bounds = array<i64: 1, 25, 128>}, {transform_indices = @transform_1, window_bounds = array<i64: 1, 25, 128>}, {transform_indices = @transform_2, window_bounds = array<i64: 1, 25, 128>}, {transform_indices = @transform_3, window_bounds = array<i64: 1, 25, 128>}, {pipeline_mode = #tpu.pipeline_mode<synchronous>, transform_indices = @transform_4, window_bounds = array<i64: 9, 128>}, {pipeline_mode = #tpu.pipeline_mode<synchronous>, transform_indices = @transform_5, window_bounds = array<i64: 1, 128>}, {transform_indices = @transform_6, window_bounds = array<i64: 1, 19, 128>}]} {
    %c0 = arith.constant 0 : index
    %c0_0 = arith.constant 0 : index
    %c0_1 = arith.constant 0 : index
    %0 = vector.load %arg1[%c0, %c0_0, %c0_1] : memref<1x25x128xf32, #tpu.memory_space<vmem>>, vector<1x25x128xf32>
    %1 = vector.shape_cast %0 : vector<1x25x128xf32> to vector<25x128xf32>
    %c0_2 = arith.constant 0 : index
    %c0_3 = arith.constant 0 : index
    %c0_4 = arith.constant 0 : index
    %2 = vector.load %arg2[%c0_2, %c0_3, %c0_4] : memref<1x25x128xf32, #tpu.memory_space<vmem>>, vector<1x25x128xf32>
    %3 = vector.shape_cast %2 : vector<1x25x128xf32> to vector<25x128xf32>
    %c0_5 = arith.constant 0 : index
    %c0_6 = arith.constant 0 : index
    %c0_7 = arith.constant 0 : index
    %4 = vector.load %arg3[%c0_5, %c0_6, %c0_7] : memref<1x25x128xf32, #tpu.memory_space<vmem>>, vector<1x25x128xf32>
    %5 = vector.shape_cast %4 : vector<1x25x128xf32> to vector<25x128xf32>
    %c0_8 = arith.constant 0 : index
    %c0_9 = arith.constant 0 : index
    %c0_10 = arith.constant 0 : index
    %6 = vector.load %arg4[%c0_8, %c0_9, %c0_10] : memref<1x25x128xf32, #tpu.memory_space<vmem>>, vector<1x25x128xf32>
    %7 = vector.shape_cast %6 : vector<1x25x128xf32> to vector<25x128xf32>
    %cst = arith.constant 0.000000e+00 : f32
    %8 = vector.broadcast %cst : f32 to vector<19x128xf32>
    %9 = vector.extract_strided_slice %1 {offsets = [0, 0], sizes = [19, 128], strides = [1, 1]} : vector<25x128xf32> to vector<19x128xf32>
    %c0_11 = arith.constant 0 : index
    %c0_12 = arith.constant 0 : index
    %10 = vector.load %arg5[%c0_11, %c0_12] : memref<9x128xf32, #tpu.memory_space<vmem>>, vector<1x128xf32>
    %11 = vector.broadcast %10 : vector<1x128xf32> to vector<19x128xf32>
    %12 = arith.mulf %9, %11 : vector<19x128xf32>
    %13 = arith.addf %8, %12 : vector<19x128xf32>
    %14 = vector.extract_strided_slice %3 {offsets = [0, 0], sizes = [19, 128], strides = [1, 1]} : vector<25x128xf32> to vector<19x128xf32>
    %c1 = arith.constant 1 : index
    %c0_13 = arith.constant 0 : index
    %15 = vector.load %arg5[%c1, %c0_13] : memref<9x128xf32, #tpu.memory_space<vmem>>, vector<1x128xf32>
    %16 = vector.broadcast %15 : vector<1x128xf32> to vector<19x128xf32>
    %17 = arith.mulf %14, %16 : vector<19x128xf32>
    %18 = arith.addf %13, %17 : vector<19x128xf32>
    %19 = vector.extract_strided_slice %1 {offsets = [1, 0], sizes = [19, 128], strides = [1, 1]} : vector<25x128xf32> to vector<19x128xf32>
    %c2 = arith.constant 2 : index
    %c0_14 = arith.constant 0 : index
    %20 = vector.load %arg5[%c2, %c0_14] : memref<9x128xf32, #tpu.memory_space<vmem>>, vector<1x128xf32>
    %21 = vector.broadcast %20 : vector<1x128xf32> to vector<19x128xf32>
    %22 = arith.mulf %19, %21 : vector<19x128xf32>
    %23 = arith.addf %18, %22 : vector<19x128xf32>
    %24 = vector.extract_strided_slice %5 {offsets = [0, 0], sizes = [19, 128], strides = [1, 1]} : vector<25x128xf32> to vector<19x128xf32>
    %c3 = arith.constant 3 : index
    %c0_15 = arith.constant 0 : index
    %25 = vector.load %arg5[%c3, %c0_15] : memref<9x128xf32, #tpu.memory_space<vmem>>, vector<1x128xf32>
    %26 = vector.broadcast %25 : vector<1x128xf32> to vector<19x128xf32>
    %27 = arith.mulf %24, %26 : vector<19x128xf32>
    %28 = arith.addf %23, %27 : vector<19x128xf32>
    %29 = vector.extract_strided_slice %7 {offsets = [0, 0], sizes = [19, 128], strides = [1, 1]} : vector<25x128xf32> to vector<19x128xf32>
    %c4 = arith.constant 4 : index
    %c0_16 = arith.constant 0 : index
    %30 = vector.load %arg5[%c4, %c0_16] : memref<9x128xf32, #tpu.memory_space<vmem>>, vector<1x128xf32>
    %31 = vector.broadcast %30 : vector<1x128xf32> to vector<19x128xf32>
    %32 = arith.mulf %29, %31 : vector<19x128xf32>
    %33 = arith.addf %28, %32 : vector<19x128xf32>
    %34 = vector.extract_strided_slice %5 {offsets = [1, 0], sizes = [19, 128], strides = [1, 1]} : vector<25x128xf32> to vector<19x128xf32>
    %c5 = arith.constant 5 : index
    %c0_17 = arith.constant 0 : index
    %35 = vector.load %arg5[%c5, %c0_17] : memref<9x128xf32, #tpu.memory_space<vmem>>, vector<1x128xf32>
    %36 = vector.broadcast %35 : vector<1x128xf32> to vector<19x128xf32>
    %37 = arith.mulf %34, %36 : vector<19x128xf32>
    %38 = arith.addf %33, %37 : vector<19x128xf32>
    %39 = vector.extract_strided_slice %1 {offsets = [5, 0], sizes = [19, 128], strides = [1, 1]} : vector<25x128xf32> to vector<19x128xf32>
    %c6 = arith.constant 6 : index
    %c0_18 = arith.constant 0 : index
    %40 = vector.load %arg5[%c6, %c0_18] : memref<9x128xf32, #tpu.memory_space<vmem>>, vector<1x128xf32>
    %41 = vector.broadcast %40 : vector<1x128xf32> to vector<19x128xf32>
    %42 = arith.mulf %39, %41 : vector<19x128xf32>
    %43 = arith.addf %38, %42 : vector<19x128xf32>
    %44 = vector.extract_strided_slice %3 {offsets = [5, 0], sizes = [19, 128], strides = [1, 1]} : vector<25x128xf32> to vector<19x128xf32>
    %c7 = arith.constant 7 : index
    %c0_19 = arith.constant 0 : index
    %45 = vector.load %arg5[%c7, %c0_19] : memref<9x128xf32, #tpu.memory_space<vmem>>, vector<1x128xf32>
    %46 = vector.broadcast %45 : vector<1x128xf32> to vector<19x128xf32>
    %47 = arith.mulf %44, %46 : vector<19x128xf32>
    %48 = arith.addf %43, %47 : vector<19x128xf32>
    %49 = vector.extract_strided_slice %1 {offsets = [6, 0], sizes = [19, 128], strides = [1, 1]} : vector<25x128xf32> to vector<19x128xf32>
    %c8 = arith.constant 8 : index
    %c0_20 = arith.constant 0 : index
    %50 = vector.load %arg5[%c8, %c0_20] : memref<9x128xf32, #tpu.memory_space<vmem>>, vector<1x128xf32>
    %51 = vector.broadcast %50 : vector<1x128xf32> to vector<19x128xf32>
    %52 = arith.mulf %49, %51 : vector<19x128xf32>
    %53 = arith.addf %48, %52 : vector<19x128xf32>
    %c0_21 = arith.constant 0 : index
    %c0_22 = arith.constant 0 : index
    %54 = vector.load %arg6[%c0_21, %c0_22] : memref<1x128xf32, #tpu.memory_space<vmem>>, vector<1x128xf32>
    %55 = vector.broadcast %54 : vector<1x128xf32> to vector<19x128xf32>
    %56 = arith.addf %53, %55 : vector<19x128xf32>
    %57 = arith.negf %56 : vector<19x128xf32>
    %58 = math.exp %57 : vector<19x128xf32>
    %cst_23 = arith.constant 1.000000e+00 : f32
    %59 = vector.broadcast %cst_23 : f32 to vector<19x128xf32>
    %60 = arith.addf %59, %58 : vector<19x128xf32>
    %61 = arith.divf %59, %60 : vector<19x128xf32>
    %62 = arith.mulf %56, %61 : vector<19x128xf32>
    %c0_24 = arith.constant 0 : index
    %c0_25 = arith.constant 0 : index
    %c0_26 = arith.constant 0 : index
    %63 = vector.load %arg7[%c0_24, %c0_25, %c0_26] : memref<1x19x128xf32, #tpu.memory_space<vmem>>, vector<1x19x128xf32>
    %64 = vector.shape_cast %63 : vector<1x19x128xf32> to vector<19x128xf32>
    %65 = vector.shape_cast %62 : vector<19x128xf32> to vector<1x19x128xf32>
    tpu.vector_store %arg7[%c0_24, %c0_25, %c0_26], %65 {strides = array<i32>} : memref<1x19x128xf32, #tpu.memory_space<vmem>>, vector<1x19x128xf32>,
    return
  }
  func.func @transform_0(%arg0: i32) -> (i32, i32, i32) {
    %c0_i32 = arith.constant 0 : i32
    %c0_i32_0 = arith.constant 0 : i32
    %c0_i32_1 = arith.constant 0 : i32
    return %arg0, %c0_i32, %c0_i32_0 : i32, i32, i32
  }
  func.func @transform_1(%arg0: i32) -> (i32, i32, i32) {
    %c0_i32 = arith.constant 0 : i32
    %c0_i32_0 = arith.constant 0 : i32
    %c0_i32_1 = arith.constant 0 : i32
    return %arg0, %c0_i32, %c0_i32_0 : i32, i32, i32
  }
  func.func @transform_2(%arg0: i32) -> (i32, i32, i32) {
    %c0_i32 = arith.constant 0 : i32
    %c0_i32_0 = arith.constant 0 : i32
    %c0_i32_1 = arith.constant 0 : i32
    return %arg0, %c0_i32, %c0_i32_0 : i32, i32, i32
  }
  func.func @transform_3(%arg0: i32) -> (i32, i32, i32) {
    %c0_i32 = arith.constant 0 : i32
    %c0_i32_0 = arith.constant 0 : i32
    %c0_i32_1 = arith.constant 0 : i32
    return %arg0, %c0_i32, %c0_i32_0 : i32, i32, i32
  }
  func.func @transform_4(%arg0: i32) -> (i32, i32) {
    %c0_i32 = arith.constant 0 : i32
    %c0_i32_0 = arith.constant 0 : i32
    %c0_i32_1 = arith.constant 0 : i32
    return %c0_i32, %c0_i32_0 : i32, i32
  }
  func.func @transform_5(%arg0: i32) -> (i32, i32) {
    %c0_i32 = arith.constant 0 : i32
    %c0_i32_0 = arith.constant 0 : i32
    %c0_i32_1 = arith.constant 0 : i32
    return %c0_i32, %c0_i32_0 : i32, i32
  }
  func.func @transform_6(%arg0: i32) -> (i32, i32, i32) {
    %c0_i32 = arith.constant 0 : i32
    %c0_i32_0 = arith.constant 0 : i32
    %c0_i32_1 = arith.constant 0 : i32
    return %arg0, %c0_i32, %c0_i32_0 : i32, i32, i32
  }
}

module attributes {stable_mosaic.version = 11 : i64} {
  func.func @_mbconv_tail_kernel(%arg0: i32, %arg1: memref<1x16x128xf32, #tpu.memory_space<vmem>>, %arg2: memref<128x128xbf16, #tpu.memory_space<vmem>>, %arg3: memref<1x128xf32, #tpu.memory_space<vmem>>, %arg4: memref<128x128xbf16, #tpu.memory_space<vmem>>, %arg5: memref<1x128xf32, #tpu.memory_space<vmem>>, %arg6: memref<128x128xbf16, #tpu.memory_space<vmem>>, %arg7: memref<1x128xf32, #tpu.memory_space<vmem>>, %arg8: memref<128x128xbf16, #tpu.memory_space<vmem>>, %arg9: memref<1x128xf32, #tpu.memory_space<vmem>>, %arg10: memref<128x128xbf16, #tpu.memory_space<vmem>>, %arg11: memref<1x128xf32, #tpu.memory_space<vmem>>, %arg12: memref<1x1x128xf32, #tpu.memory_space<vmem>>) attributes {dimension_semantics = [#tpu.dimension_semantics<parallel>], iteration_bounds = array<i64: 2>, scalar_prefetch = 0 : i64, scratch_operands = 0 : i64, tpu.core_type = #tpu.core_type<tc>, window_params = [{transform_indices = @transform_0, window_bounds = array<i64: 1, 16, 128>}, {pipeline_mode = #tpu.pipeline_mode<synchronous>, transform_indices = @transform_1, window_bounds = array<i64: 128, 128>}, {pipeline_mode = #tpu.pipeline_mode<synchronous>, transform_indices = @transform_2, window_bounds = array<i64: 1, 128>}, {pipeline_mode = #tpu.pipeline_mode<synchronous>, transform_indices = @transform_3, window_bounds = array<i64: 128, 128>}, {pipeline_mode = #tpu.pipeline_mode<synchronous>, transform_indices = @transform_4, window_bounds = array<i64: 1, 128>}, {pipeline_mode = #tpu.pipeline_mode<synchronous>, transform_indices = @transform_5, window_bounds = array<i64: 128, 128>}, {pipeline_mode = #tpu.pipeline_mode<synchronous>, transform_indices = @transform_6, window_bounds = array<i64: 1, 128>}, {pipeline_mode = #tpu.pipeline_mode<synchronous>, transform_indices = @transform_7, window_bounds = array<i64: 128, 128>}, {pipeline_mode = #tpu.pipeline_mode<synchronous>, transform_indices = @transform_8, window_bounds = array<i64: 1, 128>}, {pipeline_mode = #tpu.pipeline_mode<synchronous>, transform_indices = @transform_9, window_bounds = array<i64: 128, 128>}, {pipeline_mode = #tpu.pipeline_mode<synchronous>, transform_indices = @transform_10, window_bounds = array<i64: 1, 128>}, {transform_indices = @transform_11, window_bounds = array<i64: 1, 1, 128>}]} {
    %c0 = arith.constant 0 : index
    %c0_0 = arith.constant 0 : index
    %c0_1 = arith.constant 0 : index
    %0 = vector.load %arg1[%c0, %c0_0, %c0_1] : memref<1x16x128xf32, #tpu.memory_space<vmem>>, vector<1x16x128xf32>
    %1 = vector.shape_cast %0 : vector<1x16x128xf32> to vector<16x128xf32>
    %cst = arith.constant dense<0.000000e+00> : vector<128xf32>
    %2 = vector.multi_reduction <add>, %1, %cst [0] : vector<16x128xf32> to vector<128xf32>
    %3 = vector.shape_cast %2 : vector<128xf32> to vector<1x128xf32>
    %cst_2 = arith.constant 1.600000e+01 : f32
    %4 = vector.broadcast %cst_2 : f32 to vector<1x128xf32>
    %5 = arith.divf %3, %4 : vector<1x128xf32>
    %6 = arith.truncf %5 : vector<1x128xf32> to vector<1x128xbf16>
    %c0_3 = arith.constant 0 : index
    %c0_4 = arith.constant 0 : index
    %7 = vector.load %arg2[%c0_3, %c0_4] : memref<128x128xbf16, #tpu.memory_space<vmem>>, vector<128x128xbf16>
    %cst_5 = arith.constant dense<0.000000e+00> : vector<1x128xf32>
    %8 = tpu.matmul %6, %7, %cst_5 {dimension_numbers = #tpu.dot_dimension_numbers<[1], [0], [0], [1], [0, 0, 1, 1], [], []>} : vector<1x128xbf16>, vector<128x128xbf16>, vector<1x128xf32> -> vector<1x128xf32>
    %c0_6 = arith.constant 0 : index
    %c0_7 = arith.constant 0 : index
    %9 = vector.load %arg3[%c0_6, %c0_7] : memref<1x128xf32, #tpu.memory_space<vmem>>, vector<1x128xf32>
    %10 = arith.addf %8, %9 : vector<1x128xf32>
    %11 = arith.negf %10 : vector<1x128xf32>
    %12 = math.exp %11 : vector<1x128xf32>
    %cst_8 = arith.constant 1.000000e+00 : f32
    %13 = vector.broadcast %cst_8 : f32 to vector<1x128xf32>
    %14 = arith.addf %13, %12 : vector<1x128xf32>
    %15 = arith.divf %13, %14 : vector<1x128xf32>
    %16 = arith.mulf %10, %15 : vector<1x128xf32>
    %17 = arith.truncf %16 : vector<1x128xf32> to vector<1x128xbf16>
    %c0_9 = arith.constant 0 : index
    %c0_10 = arith.constant 0 : index
    %18 = vector.load %arg4[%c0_9, %c0_10] : memref<128x128xbf16, #tpu.memory_space<vmem>>, vector<128x128xbf16>
    %cst_11 = arith.constant dense<0.000000e+00> : vector<1x128xf32>
    %19 = tpu.matmul %17, %18, %cst_11 {dimension_numbers = #tpu.dot_dimension_numbers<[1], [0], [0], [1], [0, 0, 1, 1], [], []>} : vector<1x128xbf16>, vector<128x128xbf16>, vector<1x128xf32> -> vector<1x128xf32>
    %c0_12 = arith.constant 0 : index
    %c0_13 = arith.constant 0 : index
    %20 = vector.load %arg5[%c0_12, %c0_13] : memref<1x128xf32, #tpu.memory_space<vmem>>, vector<1x128xf32>
    %21 = arith.addf %19, %20 : vector<1x128xf32>
    %22 = arith.negf %21 : vector<1x128xf32>
    %23 = math.exp %22 : vector<1x128xf32>
    %cst_14 = arith.constant 1.000000e+00 : f32
    %24 = vector.broadcast %cst_14 : f32 to vector<1x128xf32>
    %25 = arith.addf %24, %23 : vector<1x128xf32>
    %26 = arith.divf %24, %25 : vector<1x128xf32>
    %27 = vector.broadcast %26 : vector<1x128xf32> to vector<16x128xf32>
    %28 = arith.mulf %1, %27 : vector<16x128xf32>
    %29 = arith.truncf %28 : vector<16x128xf32> to vector<16x128xbf16>
    %c0_15 = arith.constant 0 : index
    %c0_16 = arith.constant 0 : index
    %30 = vector.load %arg6[%c0_15, %c0_16] : memref<128x128xbf16, #tpu.memory_space<vmem>>, vector<128x128xbf16>
    %cst_17 = arith.constant dense<0.000000e+00> : vector<16x128xf32>
    %31 = tpu.matmul %29, %30, %cst_17 {dimension_numbers = #tpu.dot_dimension_numbers<[1], [0], [0], [1], [0, 0, 1, 1], [], []>} : vector<16x128xbf16>, vector<128x128xbf16>, vector<16x128xf32> -> vector<16x128xf32>
    %c0_18 = arith.constant 0 : index
    %c0_19 = arith.constant 0 : index
    %32 = vector.load %arg7[%c0_18, %c0_19] : memref<1x128xf32, #tpu.memory_space<vmem>>, vector<1x128xf32>
    %33 = vector.broadcast %32 : vector<1x128xf32> to vector<16x128xf32>
    %34 = arith.addf %31, %33 : vector<16x128xf32>
    %35 = arith.truncf %34 : vector<16x128xf32> to vector<16x128xbf16>
    %c0_20 = arith.constant 0 : index
    %c0_21 = arith.constant 0 : index
    %36 = vector.load %arg8[%c0_20, %c0_21] : memref<128x128xbf16, #tpu.memory_space<vmem>>, vector<128x128xbf16>
    %cst_22 = arith.constant dense<0.000000e+00> : vector<16x128xf32>
    %37 = tpu.matmul %35, %36, %cst_22 {dimension_numbers = #tpu.dot_dimension_numbers<[1], [0], [0], [1], [0, 0, 1, 1], [], []>} : vector<16x128xbf16>, vector<128x128xbf16>, vector<16x128xf32> -> vector<16x128xf32>
    %c0_23 = arith.constant 0 : index
    %c0_24 = arith.constant 0 : index
    %38 = vector.load %arg9[%c0_23, %c0_24] : memref<1x128xf32, #tpu.memory_space<vmem>>, vector<1x128xf32>
    %39 = vector.broadcast %38 : vector<1x128xf32> to vector<16x128xf32>
    %40 = arith.addf %37, %39 : vector<16x128xf32>
    %41 = arith.negf %40 : vector<16x128xf32>
    %42 = math.exp %41 : vector<16x128xf32>
    %cst_25 = arith.constant 1.000000e+00 : f32
    %43 = vector.broadcast %cst_25 : f32 to vector<16x128xf32>
    %44 = arith.addf %43, %42 : vector<16x128xf32>
    %45 = arith.divf %43, %44 : vector<16x128xf32>
    %46 = arith.mulf %40, %45 : vector<16x128xf32>
    %cst_26 = arith.constant dense<0.000000e+00> : vector<128xf32>
    %47 = vector.multi_reduction <add>, %46, %cst_26 [0] : vector<16x128xf32> to vector<128xf32>
    %48 = vector.shape_cast %47 : vector<128xf32> to vector<1x128xf32>
    %cst_27 = arith.constant 1.600000e+01 : f32
    %49 = vector.broadcast %cst_27 : f32 to vector<1x128xf32>
    %50 = arith.divf %48, %49 : vector<1x128xf32>
    %51 = arith.truncf %50 : vector<1x128xf32> to vector<1x128xbf16>
    %c0_28 = arith.constant 0 : index
    %c0_29 = arith.constant 0 : index
    %52 = vector.load %arg10[%c0_28, %c0_29] : memref<128x128xbf16, #tpu.memory_space<vmem>>, vector<128x128xbf16>
    %cst_30 = arith.constant dense<0.000000e+00> : vector<1x128xf32>
    %53 = tpu.matmul %51, %52, %cst_30 {dimension_numbers = #tpu.dot_dimension_numbers<[1], [0], [0], [1], [0, 0, 1, 1], [], []>} : vector<1x128xbf16>, vector<128x128xbf16>, vector<1x128xf32> -> vector<1x128xf32>
    %c0_31 = arith.constant 0 : index
    %c0_32 = arith.constant 0 : index
    %54 = vector.load %arg11[%c0_31, %c0_32] : memref<1x128xf32, #tpu.memory_space<vmem>>, vector<1x128xf32>
    %55 = arith.addf %53, %54 : vector<1x128xf32>
    %c0_33 = arith.constant 0 : index
    %c0_34 = arith.constant 0 : index
    %c0_35 = arith.constant 0 : index
    %56 = vector.load %arg12[%c0_33, %c0_34, %c0_35] : memref<1x1x128xf32, #tpu.memory_space<vmem>>, vector<1x1x128xf32>
    %57 = vector.shape_cast %56 : vector<1x1x128xf32> to vector<1x128xf32>
    %58 = vector.shape_cast %55 : vector<1x128xf32> to vector<1x1x128xf32>
    tpu.vector_store %arg12[%c0_33, %c0_34, %c0_35], %58 {strides = array<i32>} : memref<1x1x128xf32, #tpu.memory_space<vmem>>, vector<1x1x128xf32>,
    return
  }
  func.func @transform_0(%arg0: i32) -> (i32, i32, i32) {
    %c0_i32 = arith.constant 0 : i32
    %c0_i32_0 = arith.constant 0 : i32
    %c0_i32_1 = arith.constant 0 : i32
    return %arg0, %c0_i32, %c0_i32_0 : i32, i32, i32
  }
  func.func @transform_1(%arg0: i32) -> (i32, i32) {
    %c0_i32 = arith.constant 0 : i32
    %c0_i32_0 = arith.constant 0 : i32
    %c0_i32_1 = arith.constant 0 : i32
    return %c0_i32, %c0_i32_0 : i32, i32
  }
  func.func @transform_2(%arg0: i32) -> (i32, i32) {
    %c0_i32 = arith.constant 0 : i32
    %c0_i32_0 = arith.constant 0 : i32
    %c0_i32_1 = arith.constant 0 : i32
    return %c0_i32, %c0_i32_0 : i32, i32
  }
  func.func @transform_3(%arg0: i32) -> (i32, i32) {
    %c0_i32 = arith.constant 0 : i32
    %c0_i32_0 = arith.constant 0 : i32
    %c0_i32_1 = arith.constant 0 : i32
    return %c0_i32, %c0_i32_0 : i32, i32
  }
  func.func @transform_4(%arg0: i32) -> (i32, i32) {
    %c0_i32 = arith.constant 0 : i32
    %c0_i32_0 = arith.constant 0 : i32
    %c0_i32_1 = arith.constant 0 : i32
    return %c0_i32, %c0_i32_0 : i32, i32
  }
  func.func @transform_5(%arg0: i32) -> (i32, i32) {
    %c0_i32 = arith.constant 0 : i32
    %c0_i32_0 = arith.constant 0 : i32
    %c0_i32_1 = arith.constant 0 : i32
    return %c0_i32, %c0_i32_0 : i32, i32
  }
  func.func @transform_6(%arg0: i32) -> (i32, i32) {
    %c0_i32 = arith.constant 0 : i32
    %c0_i32_0 = arith.constant 0 : i32
    %c0_i32_1 = arith.constant 0 : i32
    return %c0_i32, %c0_i32_0 : i32, i32
  }
  func.func @transform_7(%arg0: i32) -> (i32, i32) {
    %c0_i32 = arith.constant 0 : i32
    %c0_i32_0 = arith.constant 0 : i32
    %c0_i32_1 = arith.constant 0 : i32
    return %c0_i32, %c0_i32_0 : i32, i32
  }
  func.func @transform_8(%arg0: i32) -> (i32, i32) {
    %c0_i32 = arith.constant 0 : i32
    %c0_i32_0 = arith.constant 0 : i32
    %c0_i32_1 = arith.constant 0 : i32
    return %c0_i32, %c0_i32_0 : i32, i32
  }
  func.func @transform_9(%arg0: i32) -> (i32, i32) {
    %c0_i32 = arith.constant 0 : i32
    %c0_i32_0 = arith.constant 0 : i32
    %c0_i32_1 = arith.constant 0 : i32
    return %c0_i32, %c0_i32_0 : i32, i32
  }
  func.func @transform_10(%arg0: i32) -> (i32, i32) {
    %c0_i32 = arith.constant 0 : i32
    %c0_i32_0 = arith.constant 0 : i32
    %c0_i32_1 = arith.constant 0 : i32
    return %c0_i32, %c0_i32_0 : i32, i32
  }
  func.func @transform_11(%arg0: i32) -> (i32, i32, i32) {
    %c0_i32 = arith.constant 0 : i32
    %c0_i32_0 = arith.constant 0 : i32
    %c0_i32_1 = arith.constant 0 : i32
    return %arg0, %c0_i32, %c0_i32_0 : i32, i32, i32
  }
}

</mosaic_0001>

<llo_original>
// kernel: custom_effnet_forward.5
$region0: #{custom_effnet_forward.5}
  #allocation0 [shape = 'u32[]', space=smem, size = 0x4, offset = 0x4, fixed_abs, tag = 'smem constant byte address 0x4 - core index']
  #allocation1 [shape = 'u32[72,128]{1,0:T(1,128)}', space=vmem, size = 0x9000, scoped, tag = 'internal scratch']
  %s0 = inlined_call_operand.vmem [shape: f32[2,81,3], index: 0, kind: input, shape index: {}]
  %s1 = inlined_call_operand.vmem [shape: f32[2,81,3], index: 1, kind: input, shape index: {}]
  %s2 = inlined_call_operand.vmem [shape: f32[2,81,3], index: 2, kind: input, shape index: {}]
  %s3 = inlined_call_operand.vmem [shape: f32[2,81,3], index: 3, kind: input, shape index: {}]
  %s4 = inlined_call_operand.vmem [shape: bf16[9,3,128], index: 4, kind: input, shape index: {}]
  %s5 = inlined_call_operand.vmem [shape: f32[1,128], index: 5, kind: input, shape index: {}]
  %s6 = inlined_call_operand.vmem [shape: bf16[2,71,128], index: 6, kind: output, shape index: {}]
  %s7 = sld [smem:[#allocation0]]
  $region57: #{custom_effnet_forward.5} parent=0
    _
  %s9 = ssub.s32 1, %s7
  %s10 = scalar_select 0, %s9, %s7
  loop: start=0, step=1, limit=4
  $region2: #{custom_effnet_forward.5} parent=0 // loop_pre_header
    _
  $region3: #{custom_effnet_forward.5} parent=0 // loop_header
    %s12 = sphi 0, %s16
    %p13 = scmp.ge.s32.totalorder %s12, 4
    %s22 = sphi 0, %s24
    %s25 = sphi 0, %s22
    %s26 = sphi 0, %s25
    %s42 = sphi 0, %s26
    %s48 = sphi 0, %s50
    %s51 = sphi 0, %s48
    %s52 = sphi 0, %s51
    %s68 = sphi 0, %s52
    %s74 = sphi 0, %s76
    %s77 = sphi 0, %s74
    %s78 = sphi 0, %s77
    %s94 = sphi 0, %s78
    %s100 = sphi 0, %s102
    %s103 = sphi 0, %s100
    %s104 = sphi 0, %s103
    %s120 = sphi 0, %s104
    %s124 = sphi 0, %s124
    %s126 = sphi 0, %s124
    %s127 = sphi 0, %s126
    %s141 = sphi 0, %s127
    %s145 = sphi 0, %s145
    %s147 = sphi 0, %s145
    %s148 = sphi 0, %s147
    %s162 = sphi 0, %s148
    %s168 = sphi 0, %s170
    %s171 = sphi 0, %s168
    %s172 = sphi 0, %s171
    %s188 = sphi 0, %s172
  $region4: #{custom_effnet_forward.5} parent=0 // loop_header_branch
    %15 = sbr.rel (%p13) target = $region8
  $region5: #{custom_effnet_forward.5} parent=0 // loop_body
    %s17 = ssub.s32 %s12, 1
    %s18 = ssub.s32 %s12, 2
    %s19 = sadd.s32 %s12, 1
    %s20 = ssub.s32 %s12, %s19
    %p21 = scmp.eq.s32.totalorder %s20, 0
    %s23 = sadd.s32 %s22, 1
    %s24 = scalar_select %p21, %s22, %s23
    %p27 = pneg %p21
    %p28 = scmp.eq.s32.totalorder %s12, 1
    %p29 = por %p27, %p28
    %p30 = scmp.ne.s32.totalorder %s22, %s25
    %p31 = scmp.eq.s32.totalorder %s12, 0
    %p32 = por %p30, %p31
    %p33 = scmp.ne.s32.totalorder %s22, %s25
    %p34 = scmp.eq.s32.totalorder %s17, 1
    %p35 = por %p33, %p34
    %p36 = scmp.ne.s32.totalorder %s25, %s26
    %p37 = scmp.eq.s32.totalorder %s17, 0
    %p38 = por %p36, %p37
    %p39 = scmp.ne.s32.totalorder %s25, %s26
    %p40 = scmp.eq.s32.totalorder %s18, 1
    %p41 = por %p39, %p40
    %p43 = scmp.ne.s32.totalorder %s26, %s42
    %p44 = scmp.eq.s32.totalorder %s18, 0
    %p45 = por %p43, %p44
    %s46 = ssub.s32 %s12, %s19
    %p47 = scmp.eq.s32.totalorder %s46, 0
    %s49 = sadd.s32 %s48, 1
    %s50 = scalar_select %p47, %s48, %s49
    %p53 = pneg %p47
    %p54 = scmp.eq.s32.totalorder %s12, 1
    %p55 = por %p53, %p54
    %p56 = scmp.ne.s32.totalorder %s48, %s51
    %p57 = scmp.eq.s32.totalorder %s12, 0
    %p58 = por %p56, %p57
    %p59 = scmp.ne.s32.totalorder %s48, %s51
    %p60 = scmp.eq.s32.totalorder %s17, 1
    %p61 = por %p59, %p60
    %p62 = scmp.ne.s32.totalorder %s51, %s52
    %p63 = scmp.eq.s32.totalorder %s17, 0
    %p64 = por %p62, %p63
    %p65 = scmp.ne.s32.totalorder %s51, %s52
    %p66 = scmp.eq.s32.totalorder %s18, 1
    %p67 = por %p65, %p66
    %p69 = scmp.ne.s32.totalorder %s52, %s68
    %p70 = scmp.eq.s32.totalorder %s18, 0
    %p71 = por %p69, %p70
    %s72 = ssub.s32 %s12, %s19
    %p73 = scmp.eq.s32.totalorder %s72, 0
    %s75 = sadd.s32 %s74, 1
    %s76 = scalar_select %p73, %s74, %s75
    %p79 = pneg %p73
    %p80 = scmp.eq.s32.totalorder %s12, 1
    %p81 = por %p79, %p80
    %p82 = scmp.ne.s32.totalorder %s74, %s77
    %p83 = scmp.eq.s32.totalorder %s12, 0
    %p84 = por %p82, %p83
    %p85 = scmp.ne.s32.totalorder %s74, %s77
    %p86 = scmp.eq.s32.totalorder %s17, 1
    %p87 = por %p85, %p86
    %p88 = scmp.ne.s32.totalorder %s77, %s78
    %p89 = scmp.eq.s32.totalorder %s17, 0
    %p90 = por %p88, %p89
    %p91 = scmp.ne.s32.totalorder %s77, %s78
    %p92 = scmp.eq.s32.totalorder %s18, 1
    %p93 = por %p91, %p92
    %p95 = scmp.ne.s32.totalorder %s78, %s94
    %p96 = scmp.eq.s32.totalorder %s18, 0
    %p97 = por %p95, %p96
    %s98 = ssub.s32 %s12, %s19
    %p99 = scmp.eq.s32.totalorder %s98, 0
    %s101 = sadd.s32 %s100, 1
    %s102 = scalar_select %p99, %s100, %s101
    %p105 = pneg %p99
    %p106 = scmp.eq.s32.totalorder %s12, 1
    %p107 = por %p105, %p106
    %p108 = scmp.ne.s32.totalorder %s100, %s103
    %p109 = scmp.eq.s32.totalorder %s12, 0
    %p110 = por %p108, %p109
    %p111 = scmp.ne.s32.totalorder %s100, %s103
    %p112 = scmp.eq.s32.totalorder %s17, 1
    %p113 = por %p111, %p112
    %p114 = scmp.ne.s32.totalorder %s103, %s104
    %p115 = scmp.eq.s32.totalorder %s17, 0
    %p116 = por %p114, %p115
    %p117 = scmp.ne.s32.totalorder %s103, %s104
    %p118 = scmp.eq.s32.totalorder %s18, 1
    %p119 = por %p117, %p118
    %p121 = scmp.ne.s32.totalorder %s104, %s120
    %p122 = scmp.eq.s32.totalorder %s18, 0
    %p123 = por %p121, %p122
    %s125 = sadd.s32 %s124, 1
    %p128 = scmp.eq.s32.totalorder %s12, 1
    %p129 = scmp.ne.s32.totalorder %s124, %s126
    %p130 = scmp.eq.s32.totalorder %s12, 0
    %p131 = por %p129, %p130
    %p132 = scmp.ne.s32.totalorder %s124, %s126
    %p133 = scmp.eq.s32.totalorder %s17, 1
    %p134 = por %p132, %p133
    %p135 = scmp.ne.s32.totalorder %s126, %s127
    %p136 = scmp.eq.s32.totalorder %s17, 0
    %p137 = por %p135, %p136
    %p138 = scmp.ne.s32.totalorder %s126, %s127
    %p139 = scmp.eq.s32.totalorder %s18, 1
    %p140 = por %p138, %p139
    %p142 = scmp.ne.s32.totalorder %s127, %s141
    %p143 = scmp.eq.s32.totalorder %s18, 0
    %p144 = por %p142, %p143
    %s146 = sadd.s32 %s145, 1
    %p149 = scmp.eq.s32.totalorder %s12, 1
    %p150 = scmp.ne.s32.totalorder %s145, %s147
    %p151 = scmp.eq.s32.totalorder %s12, 0
    %p152 = por %p150, %p151
    %p153 = scmp.ne.s32.totalorder %s145, %s147
    %p154 = scmp.eq.s32.totalorder %s17, 1
    %p155 = por %p153, %p154
    %p156 = scmp.ne.s32.totalorder %s147, %s148
    %p157 = scmp.eq.s32.totalorder %s17, 0
    %p158 = por %p156, %p157
    %p159 = scmp.ne.s32.totalorder %s147, %s148
    %p160 = scmp.eq.s32.totalorder %s18, 1
    %p161 = por %p159, %p160
    %p163 = scmp.ne.s32.totalorder %s148, %s162
    %p164 = scmp.eq.s32.totalorder %s18, 0
    %p165 = por %p163, %p164
    %s166 = ssub.s32 %s12, %s19
    %p167 = scmp.eq.s32.totalorder %s166, 0
    %s169 = sadd.s32 %s168, 1
    %s170 = scalar_select %p167, %s168, %s169
    %p173 = pneg %p167
    %p174 = scmp.eq.s32.totalorder %s12, 1
    %p175 = por %p173, %p174
    %p176 = scmp.ne.s32.totalorder %s168, %s171
    %p177 = scmp.eq.s32.totalorder %s12, 0
    %p178 = por %p176, %p177
    %p179 = scmp.ne.s32.totalorder %s168, %s171
    %p180 = scmp.eq.s32.totalorder %s17, 1
    %p181 = por %p179, %p180
    %p182 = scmp.ne.s32.totalorder %s171, %s172
    %p183 = scmp.eq.s32.totalorder %s17, 0
    %p184 = por %p182, %p183
    %p185 = scmp.ne.s32.totalorder %s171, %s172
    %p186 = scmp.eq.s32.totalorder %s18, 1
    %p187 = por %p185, %p186
    %p189 = scmp.ne.s32.totalorder %s172, %s188
    %p190 = scmp.eq.s32.totalorder %s18, 0
    %p191 = por %p189, %p190
    %p192 = scmp.le.s32.totalorder 1, %s12
    %p193 = scmp.lt.s32.totalorder %s12, 3
    %p194 = pnand %p192, %p193
    %p195 = pneg %p194
    // Predicated region
    $region9: #{custom_effnet_forward.5} parent=5 // pred_check
      _
    $region10: #{custom_effnet_forward.5} parent=5 // pred_check_branch
      %197 = sbr.rel (%p194) target = $region12
    $region11: #{custom_effnet_forward.5} parent=5 // pred_region
      %s198 = ssub.s32 %s12, 1
      // Predicated region
      $region13: #{custom_effnet_forward.5} parent=11 // pred_check
        %p199 = pneg %p137
      $region14: #{custom_effnet_forward.5} parent=11 // pred_check_branch
        %201 = sbr.rel (%p199) target = $region16
      $region15: #{custom_effnet_forward.5} parent=11 // pred_region
        _
      $region16: #{custom_effnet_forward.5} parent=11 // pred_fallthru
        _
      // Predicated region
      $region17: #{custom_effnet_forward.5} parent=11 // pred_check
        %p202 = pneg %p158
      $region18: #{custom_effnet_forward.5} parent=11 // pred_check_branch
        %204 = sbr.rel (%p202) target = $region20
      $region19: #{custom_effnet_forward.5} parent=11 // pred_region
        _
      $region20: #{custom_effnet_forward.5} parent=11 // pred_fallthru
        _
    $region12: #{custom_effnet_forward.5} parent=5 // pred_fallthru
      _
    %p205 = scmp.lt.s32.totalorder %s12, 2
    // Predicated region
    $region21: #{custom_effnet_forward.5} parent=5 // pred_check
      %p206 = pneg %p205
    $region22: #{custom_effnet_forward.5} parent=5 // pred_check_branch
      %208 = sbr.rel (%p206) target = $region24
    $region23: #{custom_effnet_forward.5} parent=5 // pred_region
      // Predicated region
      $region25: #{custom_effnet_forward.5} parent=23 // pred_check
        %p209 = pneg %p32
      $region26: #{custom_effnet_forward.5} parent=23 // pred_check_branch
        %211 = sbr.rel (%p209) target = $region28
      $region27: #{custom_effnet_forward.5} parent=23 // pred_region
        %p212 = scmp.lt.s32.totalorder %s12, 1
        %s213 = scalar_select %p212, %s12, 1
        %s214 = smul.addr %s213, 11
        %s215 = smul.addr %s214, 8
        %s216 = scalar_lea.vmem %s0, %s215
      $region28: #{custom_effnet_forward.5} parent=23 // pred_fallthru
        _
      // Predicated region
      $region29: #{custom_effnet_forward.5} parent=23 // pred_check
        %p217 = pneg %p58
      $region30: #{custom_effnet_forward.5} parent=23 // pred_check_branch
        %219 = sbr.rel (%p217) target = $region32
      $region31: #{custom_effnet_forward.5} parent=23 // pred_region
        %p220 = scmp.lt.s32.totalorder %s12, 1
        %s221 = scalar_select %p220, %s12, 1
        %s222 = smul.addr %s221, 11
        %s223 = smul.addr %s222, 8
        %s224 = scalar_lea.vmem %s1, %s223
      $region32: #{custom_effnet_forward.5} parent=23 // pred_fallthru
        _
      // Predicated region
      $region33: #{custom_effnet_forward.5} parent=23 // pred_check
        %p225 = pneg %p84
      $region34: #{custom_effnet_forward.5} parent=23 // pred_check_branch
        %227 = sbr.rel (%p225) target = $region36
      $region35: #{custom_effnet_forward.5} parent=23 // pred_region
        %p228 = scmp.lt.s32.totalorder %s12, 1
        %s229 = scalar_select %p228, %s12, 1
        %s230 = smul.addr %s229, 11
        %s231 = smul.addr %s230, 8
        %s232 = scalar_lea.vmem %s2, %s231
      $region36: #{custom_effnet_forward.5} parent=23 // pred_fallthru
        _
      // Predicated region
      $region37: #{custom_effnet_forward.5} parent=23 // pred_check
        %p233 = pneg %p110
      $region38: #{custom_effnet_forward.5} parent=23 // pred_check_branch
        %235 = sbr.rel (%p233) target = $region40
      $region39: #{custom_effnet_forward.5} parent=23 // pred_region
        %p236 = scmp.lt.s32.totalorder %s12, 1
        %s237 = scalar_select %p236, %s12, 1
        %s238 = smul.addr %s237, 11
        %s239 = smul.addr %s238, 8
        %s240 = scalar_lea.vmem %s3, %s239
      $region40: #{custom_effnet_forward.5} parent=23 // pred_fallthru
        _
    $region24: #{custom_effnet_forward.5} parent=5 // pred_fallthru
      _
    %p241 = scmp.le.s32.totalorder 1, %s12
    %p242 = scmp.lt.s32.totalorder %s12, 3
    %p243 = pnand %p241, %p242
    %p244 = pneg %p243
    // Predicated region
    $region41: #{custom_effnet_forward.5} parent=5 // pred_check
      _
    $region42: #{custom_effnet_forward.5} parent=5 // pred_check_branch
      %246 = sbr.rel (%p243) target = $region44
    $region43: #{custom_effnet_forward.5} parent=5 // pred_region
      %s247 = ssub.s32 %s12, 1
      %p248 = scmp.lt.s32.totalorder %s17, 1
      %s249 = scalar_select %p248, %s17, 1
      %s250 = smul.addr %s249, 11
      %s251 = smul.addr %s250, 8
      %s252 = scalar_lea.vmem %s0, %s251
      %p253 = pneg %p38
      %p254 = pneg %p35
      %p255 = scmp.lt.s32.totalorder %s17, 1
      %s256 = scalar_select %p255, %s17, 1
      %s257 = smul.addr %s256, 11
      %s258 = smul.addr %s257, 8
      %s259 = scalar_lea.vmem %s1, %s258
      %p260 = pneg %p64
      %p261 = pneg %p61
      %p262 = scmp.lt.s32.totalorder %s17, 1
      %s263 = scalar_select %p262, %s17, 1
      %s264 = smul.addr %s263, 11
      %s265 = smul.addr %s264, 8
      %s266 = scalar_lea.vmem %s2, %s265
      %p267 = pneg %p90
      %p268 = pneg %p87
      %p269 = scmp.lt.s32.totalorder %s17, 1
      %s270 = scalar_select %p269, %s17, 1
      %s271 = smul.addr %s270, 11
      %s272 = smul.addr %s271, 8
      %s273 = scalar_lea.vmem %s3, %s272
      %p274 = pneg %p116
      %p275 = pneg %p113
      %p276 = pneg %p137
      %p277 = pneg %p134
      %p278 = pneg %p158
      %p279 = pneg %p155
      %p280 = pneg %p184
      %p281 = pneg %p181
      %p282 = scmp.lt.s32.totalorder %s17, 1
      %s283 = scalar_select %p282, %s17, 1
      %s284 = smul.addr %s283, 9
      %s285 = smul.addr %s284, 4
      %s286 = scalar_lea.vmem %s6, %s285
      %p287 = scmp.lt.s32.totalorder %s17, 1
      %s288 = scalar_select %p287, %s17, 1
      %s289 = smul.addr %s288, 11
      %s290 = smul.addr %s289, 8
      %s291 = scalar_lea.vmem %s0, %s290
      %p292 = scmp.lt.s32.totalorder %s17, 1
      %s293 = scalar_select %p292, %s17, 1
      %s294 = smul.addr %s293, 11
      %s295 = smul.addr %s294, 8
      %s296 = scalar_lea.vmem %s1, %s295
      %p297 = scmp.lt.s32.totalorder %s17, 1
      %s298 = scalar_select %p297, %s17, 1
      %s299 = smul.addr %s298, 11
      %s300 = smul.addr %s299, 8
      %s301 = scalar_lea.vmem %s2, %s300
      %p302 = scmp.lt.s32.totalorder %s17, 1
      %s303 = scalar_select %p302, %s17, 1
      %s304 = smul.addr %s303, 11
      %s305 = smul.addr %s304, 8
      %s306 = scalar_lea.vmem %s3, %s305
      %p307 = scmp.lt.s32.totalorder %s17, 1
      %s308 = scalar_select %p307, %s17, 1
      %s309 = smul.addr %s308, 9
      %s310 = smul.addr %s309, 4
      %s311 = scalar_lea.vmem %s6, %s310
      %v313 = vld [vmem:[%s291] sm:$0xff]
      %v314 = vld [vmem:[%s291 + $0x8] sm:$0xff]
      %v315 = vld [vmem:[%s291 + $0x10] sm:$0xff]
      %v316 = vld [vmem:[%s291 + $0x18] sm:$0xff]
      %v317 = vld [vmem:[%s291 + $0x20] sm:$0xff]
      %v318 = vld [vmem:[%s291 + $0x28] sm:$0xff]
      %v319 = vld [vmem:[%s291 + $0x30] sm:$0xff]
      %v320 = vld [vmem:[%s291 + $0x38] sm:$0xff]
      %v321 = vld [vmem:[%s291 + $0x40] sm:$0xff]
      %v322 = vld [vmem:[%s291 + $0x48] sm:$0xff]
      %v323 = vld [vmem:[%s291 + $0x50] sm:$0x1]
      %v324 = vpack.c.bf16 %v313, %v313
      %v325 = vpack.c.bf16 %v314, %v314
      %v326 = vpack.c.bf16 %v315, %v315
      %v327 = vpack.c.bf16 %v316, %v316
      %v328 = vpack.c.bf16 %v317, %v317
      %v329 = vpack.c.bf16 %v318, %v318
      %v330 = vpack.c.bf16 %v319, %v319
      %v331 = vpack.c.bf16 %v320, %v320
      %v332 = vpack.c.bf16 %v321, %v321
      %v333 = vpack.c.bf16 %v322, %v322
      %v334 = vpack.c.bf16 %v323, %v323
      %v335 = vld [vmem:[%s296] sm:$0xff]
      %v336 = vld [vmem:[%s296 + $0x8] sm:$0xff]
      %v337 = vld [vmem:[%s296 + $0x10] sm:$0xff]
      %v338 = vld [vmem:[%s296 + $0x18] sm:$0xff]
      %v339 = vld [vmem:[%s296 + $0x20] sm:$0xff]
      %v340 = vld [vmem:[%s296 + $0x28] sm:$0xff]
      %v341 = vld [vmem:[%s296 + $0x30] sm:$0xff]
      %v342 = vld [vmem:[%s296 + $0x38] sm:$0xff]
      %v343 = vld [vmem:[%s296 + $0x40] sm:$0xff]
      %v344 = vld [vmem:[%s296 + $0x48] sm:$0xff]
      %v345 = vpack.c.bf16 %v335, %v335
      %v346 = vpack.c.bf16 %v336, %v336
      %v347 = vpack.c.bf16 %v337, %v337
      %v348 = vpack.c.bf16 %v338, %v338
      %v349 = vpack.c.bf16 %v339, %v339
      %v350 = vpack.c.bf16 %v340, %v340
      %v351 = vpack.c.bf16 %v341, %v341
      %v352 = vpack.c.bf16 %v342, %v342
      %v353 = vpack.c.bf16 %v343, %v343
      %v354 = vpack.c.bf16 %v344, %v344
      %v355 = vld [vmem:[%s301] sm:$0xff]
      %v356 = vld [vmem:[%s301 + $0x8] sm:$0xff]
      %v357 = vld [vmem:[%s301 + $0x10] sm:$0xff]
      %v358 = vld [vmem:[%s301 + $0x18] sm:$0xff]
      %v359 = vld [vmem:[%s301 + $0x20] sm:$0xff]
      %v360 = vld [vmem:[%s301 + $0x28] sm:$0xff]
      %v361 = vld [vmem:[%s301 + $0x30] sm:$0xff]
      %v362 = vld [vmem:[%s301 + $0x38] sm:$0xff]
      %v363 = vld [vmem:[%s301 + $0x40] sm:$0xff]
      %v364 = vpack.c.bf16 %v355, %v355
      %v365 = vpack.c.bf16 %v356, %v356
      %v366 = vpack.c.bf16 %v357, %v357
      %v367 = vpack.c.bf16 %v358, %v358
      %v368 = vpack.c.bf16 %v359, %v359
      %v369 = vpack.c.bf16 %v360, %v360
      %v370 = vpack.c.bf16 %v361, %v361
      %v371 = vpack.c.bf16 %v362, %v362
      %v372 = vpack.c.bf16 %v363, %v363
      %v373 = vld [vmem:[%s306] sm:$0xff]
      %v374 = vld [vmem:[%s306 + $0x8] sm:$0xff]
      %v375 = vld [vmem:[%s306 + $0x10] sm:$0xff]
      %v376 = vld [vmem:[%s306 + $0x18] sm:$0xff]
      %v377 = vld [vmem:[%s306 + $0x20] sm:$0xff]
      %v378 = vld [vmem:[%s306 + $0x28] sm:$0xff]
      %v379 = vld [vmem:[%s306 + $0x30] sm:$0xff]
      %v380 = vld [vmem:[%s306 + $0x38] sm:$0xff]
      %v381 = vld [vmem:[%s306 + $0x40] sm:$0xff]
      %v382 = vpack.c.bf16 %v373, %v373
      %v383 = vpack.c.bf16 %v374, %v374
      %v384 = vpack.c.bf16 %v375, %v375
      %v385 = vpack.c.bf16 %v376, %v376
      %v386 = vpack.c.bf16 %v377, %v377
      %v387 = vpack.c.bf16 %v378, %v378
      %v388 = vpack.c.bf16 %v379, %v379
      %v389 = vpack.c.bf16 %v380, %v380
      %v390 = vpack.c.bf16 %v381, %v381
      %v391 = vld [vmem:[%s4] sm:$0x3]
      %s392 = scalar_lea.vmem %s4, 2
      %v393 = vld [vmem:[%s392] sm:$0x3]
      %v403 = vunpack.c.l.b16 %v345
      %v404 = vunpack.c.l.b16 %v346
      %v405 = vunpack.c.l.b16 %v347
      %v406 = vunpack.c.l.b16 %v348
      %v407 = vunpack.c.l.b16 %v349
      %v408 = vunpack.c.l.b16 %v350
      %v409 = vunpack.c.l.b16 %v351
      %v410 = vunpack.c.l.b16 %v352
      %v411 = vunpack.c.l.b16 %v353
      %v412 = vpack.c.b16 %v404, %v403
      %v413 = vpack.c.b16 %v406, %v405
      %v414 = vpack.c.b16 %v408, %v407
      %v415 = vpack.c.b16 %v410, %v409
      %v416 = vpack.c.b16 %v411, %v411
      %vm417 = vcmask 23552
      %v419 = vsel %vm417, %v412, 0
      %v422 = vsel %vm417, %v413, 0
      %v425 = vsel %vm417, %v414, 0
      %v428 = vsel %vm417, %v415, 0
      %v431 = vsel %vm417, %v416, 0
      %vm433 = vcmask 1040384
      %vm434 = vcmask 1041408
      %v435 = vsel %vm433, 4294967295, 65535
      %v436 = vsel %vm434, %v435, 0
      %v438 = vand.u32 %v393, %v436
      %440 = vmatpush.bf16.msra.mxu0 0
      %441 = vmatpush.bf16.msra.mxu0 0
      %442 = vmatpush.bf16.msra.mxu0 0
      %443 = vmatpush.bf16.msra.mxu0 0
      %444 = vmatpush.bf16.msra.mxu0 0
      %445 = vmatpush.bf16.msra.mxu0 0
      %446 = vmatpush.bf16.msra.mxu0 0
      %447 = vmatpush.bf16.msra.mxu0 %v438
      %448 = vmatmul.bf16.gmra.mxu0 %v419
      %v449 = vpop.f32.mrf.mxu0
      %v450 = vadd.f32 0.0, %v449
      %v451 = vpop.f32.mrf.mxu0
      %v452 = vadd.f32 0.0, %v451
      %453 = vmatmul.bf16.gmra.mxu0 %v422
      %v454 = vpop.f32.mrf.mxu0
      %v455 = vadd.f32 0.0, %v454
      %v456 = vpop.f32.mrf.mxu0
      %v457 = vadd.f32 0.0, %v456
      %458 = vmatmul.bf16.gmra.mxu0 %v425
      %v459 = vpop.f32.mrf.mxu0
      %v460 = vadd.f32 0.0, %v459
      %v461 = vpop.f32.mrf.mxu0
      %v462 = vadd.f32 0.0, %v461
      %463 = vmatmul.bf16.gmra.mxu0 %v428
      %v464 = vpop.f32.mrf.mxu0
      %v465 = vadd.f32 0.0, %v464
      %v466 = vpop.f32.mrf.mxu0
      %v467 = vadd.f32 0.0, %v466
      %468 = vmatmul.bf16.gmra.mxu0 %v431
      %v469 = vpop.f32.mrf.mxu0
      %v470 = vadd.f32 0.0, %v469
      %v471 = vpop.f32.mrf.mxu0
      %472 = vdwg.mxu0
      %v482 = vunpack.c.l.b16 %v324
      %v483 = vunpack.c.l.b16 %v325
      %v484 = vunpack.c.l.b16 %v326
      %v485 = vunpack.c.l.b16 %v327
      %v486 = vunpack.c.l.b16 %v328
      %v487 = vunpack.c.l.b16 %v329
      %v488 = vunpack.c.l.b16 %v330
      %v489 = vunpack.c.l.b16 %v331
      %v490 = vunpack.c.l.b16 %v332
      %v491 = vpack.c.b16 %v483, %v482
      %v492 = vpack.c.b16 %v485, %v484
      %v493 = vpack.c.b16 %v487, %v486
      %v494 = vpack.c.b16 %v489, %v488
      %v495 = vpack.c.b16 %v490, %v490
      %v497 = vsel %vm417, %v491, 0
      %v500 = vsel %vm417, %v492, 0
      %v503 = vsel %vm417, %v493, 0
      %v506 = vsel %vm417, %v494, 0
      %v509 = vsel %vm417, %v495, 0
      %v512 = vand.u32 %v391, %v436
      %514 = vmatpush.bf16.msra.mxu0 0
      %515 = vmatpush.bf16.msra.mxu0 0
      %516 = vmatpush.bf16.msra.mxu0 0
      %517 = vmatpush.bf16.msra.mxu0 0
      %518 = vmatpush.bf16.msra.mxu0 0
      %519 = vmatpush.bf16.msra.mxu0 0
      %520 = vmatpush.bf16.msra.mxu0 0
      %521 = vmatpush.bf16.msra.mxu0 %v512
      %522 = vmatmul.bf16.gmra.mxu0 %v497
      %v523 = vpop.f32.mrf.mxu0
      %v524 = vadd.f32 %v450, %v523
      %v525 = vpop.f32.mrf.mxu0
      %v526 = vadd.f32 %v452, %v525
      %527 = vmatmul.bf16.gmra.mxu0 %v500
      %v528 = vpop.f32.mrf.mxu0
      %v529 = vadd.f32 %v455, %v528
      %v530 = vpop.f32.mrf.mxu0
      %v531 = vadd.f32 %v457, %v530
      %532 = vmatmul.bf16.gmra.mxu0 %v503
      %v533 = vpop.f32.mrf.mxu0
      %v534 = vadd.f32 %v460, %v533
      %v535 = vpop.f32.mrf.mxu0
      %v536 = vadd.f32 %v462, %v535
      %537 = vmatmul.bf16.gmra.mxu0 %v506
      %v538 = vpop.f32.mrf.mxu0
      %v539 = vadd.f32 %v465, %v538
      %v540 = vpop.f32.mrf.mxu0
      %v541 = vadd.f32 %v467, %v540
      %542 = vmatmul.bf16.gmra.mxu0 %v509
      %v543 = vpop.f32.mrf.mxu0
      %v544 = vadd.f32 %v470, %v543
      %v545 = vpop.f32.mrf.mxu0
      %546 = vdwg.mxu0
      %s547 = scalar_lea.vmem %s4, 4
      %v548 = vld [vmem:[%s547] sm:$0x3]
      %vm549 = vsmask.f32 7424
      %v550 = vshrl.u32 %v491, 16
      %v552 = vshll.u32 %v491, 16
      %v554 = vrot.slane %v552, 1
      %v555 = vor.u32 %v550, %v554
      %v556 = vshll.u32 %v492, 16
      %v558 = vrot.slane %v556, 1
      %v559 = vsel %vm549, %v555, %v558
      %v560 = vshrl.u32 %v492, 16
      %v562 = vor.u32 %v560, %v558
      %v563 = vshll.u32 %v493, 16
      %v565 = vrot.slane %v563, 1
      %v566 = vsel %vm549, %v562, %v565
      %v567 = vshrl.u32 %v493, 16
      %v569 = vor.u32 %v567, %v565
      %v570 = vshll.u32 %v494, 16
      %v572 = vrot.slane %v570, 1
      %v573 = vsel %vm549, %v569, %v572
      %v574 = vshrl.u32 %v494, 16
      %v576 = vor.u32 %v574, %v572
      %v577 = vshll.u32 %v495, 16
      %v579 = vrot.slane %v577, 1
      %v580 = vsel %vm549, %v576, %v579
      %v581 = vshrl.u32 %v495, 16
      %v583 = vor.u32 %v581, %v579
      %v585 = vsel %vm417, %v559, 0
      %v588 = vsel %vm417, %v566, 0
      %v591 = vsel %vm417, %v573, 0
      %v594 = vsel %vm417, %v580, 0
      %v597 = vsel %vm417, %v583, 0
      %v600 = vand.u32 %v548, %v436
      %602 = vmatpush.bf16.msra.mxu0 0
      %603 = vmatpush.bf16.msra.mxu0 0
      %604 = vmatpush.bf16.msra.mxu0 0
      %605 = vmatpush.bf16.msra.mxu0 0
      %606 = vmatpush.bf16.msra.mxu0 0
      %607 = vmatpush.bf16.msra.mxu0 0
      %608 = vmatpush.bf16.msra.mxu0 0
      %609 = vmatpush.bf16.msra.mxu0 %v600
      %610 = vmatmul.bf16.gmra.mxu0 %v585
      %v611 = vpop.f32.mrf.mxu0
      %v612 = vadd.f32 0.0, %v611
      %v613 = vpop.f32.mrf.mxu0
      %v614 = vadd.f32 0.0, %v613
      %615 = vmatmul.bf16.gmra.mxu0 %v588
      %v616 = vpop.f32.mrf.mxu0
      %v617 = vadd.f32 0.0, %v616
      %v618 = vpop.f32.mrf.mxu0
      %v619 = vadd.f32 0.0, %v618
      %620 = vmatmul.bf16.gmra.mxu0 %v591
      %v621 = vpop.f32.mrf.mxu0
      %v622 = vadd.f32 0.0, %v621
      %v623 = vpop.f32.mrf.mxu0
      %v624 = vadd.f32 0.0, %v623
      %625 = vmatmul.bf16.gmra.mxu0 %v594
      %v626 = vpop.f32.mrf.mxu0
      %v627 = vadd.f32 0.0, %v626
      %v628 = vpop.f32.mrf.mxu0
      %v629 = vadd.f32 0.0, %v628
      %630 = vmatmul.bf16.gmra.mxu0 %v597
      %v631 = vpop.f32.mrf.mxu0
      %v632 = vadd.f32 0.0, %v631
      %v633 = vpop.f32.mrf.mxu0
      %634 = vdwg.mxu0
      %v635 = vadd.f32 %v524, %v612
      %v636 = vadd.f32 %v526, %v614
      %v637 = vadd.f32 %v529, %v617
      %v638 = vadd.f32 %v531, %v619
      %v639 = vadd.f32 %v534, %v622
      %v640 = vadd.f32 %v536, %v624
      %v641 = vadd.f32 %v539, %v627
      %v642 = vadd.f32 %v541, %v629
      %v643 = vadd.f32 %v544, %v632
      %s644 = scalar_lea.vmem %s4, 6
      %v645 = vld [vmem:[%s644] sm:$0x3]
      %v655 = vunpack.c.l.b16 %v364
      %v656 = vunpack.c.l.b16 %v365
      %v657 = vunpack.c.l.b16 %v366
      %v658 = vunpack.c.l.b16 %v367
      %v659 = vunpack.c.l.b16 %v368
      %v660 = vunpack.c.l.b16 %v369
      %v661 = vunpack.c.l.b16 %v370
      %v662 = vunpack.c.l.b16 %v371
      %v663 = vunpack.c.l.b16 %v372
      %v664 = vpack.c.b16 %v656, %v655
      %v665 = vpack.c.b16 %v658, %v657
      %v666 = vpack.c.b16 %v660, %v659
      %v667 = vpack.c.b16 %v662, %v661
      %v668 = vpack.c.b16 %v663, %v663
      %v670 = vsel %vm417, %v664, 0
      %v673 = vsel %vm417, %v665, 0
      %v676 = vsel %vm417, %v666, 0
      %v679 = vsel %vm417, %v667, 0
      %v682 = vsel %vm417, %v668, 0
      %v685 = vand.u32 %v645, %v436
      %687 = vmatpush.bf16.msra.mxu0 0
      %688 = vmatpush.bf16.msra.mxu0 0
      %689 = vmatpush.bf16.msra.mxu0 0
      %690 = vmatpush.bf16.msra.mxu0 0
      %691 = vmatpush.bf16.msra.mxu0 0
      %692 = vmatpush.bf16.msra.mxu0 0
      %693 = vmatpush.bf16.msra.mxu0 0
      %694 = vmatpush.bf16.msra.mxu0 %v685
      %695 = vmatmul.bf16.gmra.mxu0 %v670
      %v696 = vpop.f32.mrf.mxu0
      %v697 = vadd.f32 0.0, %v696
      %v698 = vpop.f32.mrf.mxu0
      %v699 = vadd.f32 0.0, %v698
      %700 = vmatmul.bf16.gmra.mxu0 %v673
      %v701 = vpop.f32.mrf.mxu0
      %v702 = vadd.f32 0.0, %v701
      %v703 = vpop.f32.mrf.mxu0
      %v704 = vadd.f32 0.0, %v703
      %705 = vmatmul.bf16.gmra.mxu0 %v676
      %v706 = vpop.f32.mrf.mxu0
      %v707 = vadd.f32 0.0, %v706
      %v708 = vpop.f32.mrf.mxu0
      %v709 = vadd.f32 0.0, %v708
      %710 = vmatmul.bf16.gmra.mxu0 %v679
      %v711 = vpop.f32.mrf.mxu0
      %v712 = vadd.f32 0.0, %v711
      %v713 = vpop.f32.mrf.mxu0
      %v714 = vadd.f32 0.0, %v713
      %715 = vmatmul.bf16.gmra.mxu0 %v682
      %v716 = vpop.f32.mrf.mxu0
      %v717 = vadd.f32 0.0, %v716
      %v718 = vpop.f32.mrf.mxu0
      %719 = vdwg.mxu0
      %v720 = vadd.f32 %v635, %v697
      %v721 = vadd.f32 %v636, %v699
      %v722 = vadd.f32 %v637, %v702
      %v723 = vadd.f32 %v638, %v704
      %v724 = vadd.f32 %v639, %v707
      %v725 = vadd.f32 %v640, %v709
      %v726 = vadd.f32 %v641, %v712
      %v727 = vadd.f32 %v642, %v714
      %v728 = vadd.f32 %v643, %v717
      %s729 = scalar_lea.vmem %s4, 8
      %v730 = vld [vmem:[%s729] sm:$0x3]
      %v740 = vunpack.c.l.b16 %v382
      %v741 = vunpack.c.l.b16 %v383
      %v742 = vunpack.c.l.b16 %v384
      %v743 = vunpack.c.l.b16 %v385
      %v744 = vunpack.c.l.b16 %v386
      %v745 = vunpack.c.l.b16 %v387
      %v746 = vunpack.c.l.b16 %v388
      %v747 = vunpack.c.l.b16 %v389
      %v748 = vunpack.c.l.b16 %v390
      %v749 = vpack.c.b16 %v741, %v740
      %v750 = vpack.c.b16 %v743, %v742
      %v751 = vpack.c.b16 %v745, %v744
      %v752 = vpack.c.b16 %v747, %v746
      %v753 = vpack.c.b16 %v748, %v748
      %v755 = vsel %vm417, %v749, 0
      %v758 = vsel %vm417, %v750, 0
      %v761 = vsel %vm417, %v751, 0
      %v764 = vsel %vm417, %v752, 0
      %v767 = vsel %vm417, %v753, 0
      %v770 = vand.u32 %v730, %v436
      %772 = vmatpush.bf16.msra.mxu0 0
      %773 = vmatpush.bf16.msra.mxu0 0
      %774 = vmatpush.bf16.msra.mxu0 0
      %775 = vmatpush.bf16.msra.mxu0 0
      %776 = vmatpush.bf16.msra.mxu0 0
      %777 = vmatpush.bf16.msra.mxu0 0
      %778 = vmatpush.bf16.msra.mxu0 0
      %779 = vmatpush.bf16.msra.mxu0 %v770
      %780 = vmatmul.bf16.gmra.mxu0 %v755
      %v781 = vpop.f32.mrf.mxu0
      %v782 = vadd.f32 0.0, %v781
      %v783 = vpop.f32.mrf.mxu0
      %v784 = vadd.f32 0.0, %v783
      %785 = vmatmul.bf16.gmra.mxu0 %v758
      %v786 = vpop.f32.mrf.mxu0
      %v787 = vadd.f32 0.0, %v786
      %v788 = vpop.f32.mrf.mxu0
      %v789 = vadd.f32 0.0, %v788
      %790 = vmatmul.bf16.gmra.mxu0 %v761
      %v791 = vpop.f32.mrf.mxu0
      %v792 = vadd.f32 0.0, %v791
      %v793 = vpop.f32.mrf.mxu0
      %v794 = vadd.f32 0.0, %v793
      %795 = vmatmul.bf16.gmra.mxu0 %v764
      %v796 = vpop.f32.mrf.mxu0
      %v797 = vadd.f32 0.0, %v796
      %v798 = vpop.f32.mrf.mxu0
      %v799 = vadd.f32 0.0, %v798
      %800 = vmatmul.bf16.gmra.mxu0 %v767
      %v801 = vpop.f32.mrf.mxu0
      %v802 = vadd.f32 0.0, %v801
      %v803 = vpop.f32.mrf.mxu0
      %804 = vdwg.mxu0
      %v805 = vadd.f32 %v720, %v782
      %v806 = vadd.f32 %v721, %v784
      %v807 = vadd.f32 %v722, %v787
      %v808 = vadd.f32 %v723, %v789
      %v809 = vadd.f32 %v724, %v792
      %v810 = vadd.f32 %v725, %v794
      %v811 = vadd.f32 %v726, %v797
      %v812 = vadd.f32 %v727, %v799
      %v813 = vadd.f32 %v728, %v802
      %s814 = scalar_lea.vmem %s4, 10
      %v815 = vld [vmem:[%s814] sm:$0x3]
      %v816 = vshrl.u32 %v664, 16
      %v818 = vshll.u32 %v664, 16
      %v820 = vrot.slane %v818, 1
      %v821 = vor.u32 %v816, %v820
      %v822 = vshll.u32 %v665, 16
      %v824 = vrot.slane %v822, 1
      %v825 = vsel %vm549, %v821, %v824
      %v826 = vshrl.u32 %v665, 16
      %v828 = vor.u32 %v826, %v824
      %v829 = vshll.u32 %v666, 16
      %v831 = vrot.slane %v829, 1
      %v832 = vsel %vm549, %v828, %v831
      %v833 = vshrl.u32 %v666, 16
      %v835 = vor.u32 %v833, %v831
      %v836 = vshll.u32 %v667, 16
      %v838 = vrot.slane %v836, 1
      %v839 = vsel %vm549, %v835, %v838
      %v840 = vshrl.u32 %v667, 16
      %v842 = vor.u32 %v840, %v838
      %v843 = vshll.u32 %v668, 16
      %v845 = vrot.slane %v843, 1
      %v846 = vsel %vm549, %v842, %v845
      %v847 = vshrl.u32 %v668, 16
      %v849 = vor.u32 %v847, %v845
      %v851 = vsel %vm417, %v825, 0
      %v854 = vsel %vm417, %v832, 0
      %v857 = vsel %vm417, %v839, 0
      %v860 = vsel %vm417, %v846, 0
      %v863 = vsel %vm417, %v849, 0
      %v866 = vand.u32 %v815, %v436
      %868 = vmatpush.bf16.msra.mxu0 0
      %869 = vmatpush.bf16.msra.mxu0 0
      %870 = vmatpush.bf16.msra.mxu0 0
      %871 = vmatpush.bf16.msra.mxu0 0
      %872 = vmatpush.bf16.msra.mxu0 0
      %873 = vmatpush.bf16.msra.mxu0 0
      %874 = vmatpush.bf16.msra.mxu0 0
      %875 = vmatpush.bf16.msra.mxu0 %v866
      %876 = vmatmul.bf16.gmra.mxu0 %v851
      %v877 = vpop.f32.mrf.mxu0
      %v878 = vadd.f32 0.0, %v877
      %v879 = vpop.f32.mrf.mxu0
      %v880 = vadd.f32 0.0, %v879
      %881 = vmatmul.bf16.gmra.mxu0 %v854
      %v882 = vpop.f32.mrf.mxu0
      %v883 = vadd.f32 0.0, %v882
      %v884 = vpop.f32.mrf.mxu0
      %v885 = vadd.f32 0.0, %v884
      %886 = vmatmul.bf16.gmra.mxu0 %v857
      %v887 = vpop.f32.mrf.mxu0
      %v888 = vadd.f32 0.0, %v887
      %v889 = vpop.f32.mrf.mxu0
      %v890 = vadd.f32 0.0, %v889
      %891 = vmatmul.bf16.gmra.mxu0 %v860
      %v892 = vpop.f32.mrf.mxu0
      %v893 = vadd.f32 0.0, %v892
      %v894 = vpop.f32.mrf.mxu0
      %v895 = vadd.f32 0.0, %v894
      %896 = vmatmul.bf16.gmra.mxu0 %v863
      %v897 = vpop.f32.mrf.mxu0
      %v898 = vadd.f32 0.0, %v897
      %v899 = vpop.f32.mrf.mxu0
      %900 = vdwg.mxu0
      %v901 = vadd.f32 %v805, %v878
      %v902 = vadd.f32 %v806, %v880
      %v903 = vadd.f32 %v807, %v883
      %v904 = vadd.f32 %v808, %v885
      %v905 = vadd.f32 %v809, %v888
      %v906 = vadd.f32 %v810, %v890
      %v907 = vadd.f32 %v811, %v893
      %v908 = vadd.f32 %v812, %v895
      %v909 = vadd.f32 %v813, %v898
      %s910 = scalar_lea.vmem %s4, 12
      %v911 = vld [vmem:[%s910] sm:$0x3]
      %v913 = vunpack.c.l.b16 %v333
      %v914 = vpack.c.b16 %v484, %v483
      %v915 = vpack.c.b16 %v486, %v485
      %v916 = vpack.c.b16 %v488, %v487
      %v917 = vpack.c.b16 %v490, %v489
      %v918 = vpack.c.b16 %v913, %v913
      %v920 = vshrl.u32 %v914, 16
      %v922 = vshll.u32 %v914, 16
      %v924 = vrot.slane %v922, 1
      %v925 = vor.u32 %v920, %v924
      %v927 = vshll.u32 %v915, 16
      %v929 = vrot.slane %v927, 1
      %v930 = vsel %vm549, %v925, %v929
      %v931 = vshrl.u32 %v915, 16
      %v933 = vor.u32 %v931, %v929
      %v935 = vshll.u32 %v916, 16
      %v937 = vrot.slane %v935, 1
      %v938 = vsel %vm549, %v933, %v937
      %v939 = vshrl.u32 %v916, 16
      %v941 = vor.u32 %v939, %v937
      %v943 = vshll.u32 %v917, 16
      %v945 = vrot.slane %v943, 1
      %v946 = vsel %vm549, %v941, %v945
      %v947 = vshrl.u32 %v917, 16
      %v949 = vor.u32 %v947, %v945
      %v951 = vshll.u32 %v918, 16
      %v953 = vrot.slane %v951, 1
      %v954 = vsel %vm549, %v949, %v953
      %v955 = vshrl.u32 %v918, 16
      %v957 = vor.u32 %v955, %v953
      %v959 = vsel %vm417, %v930, 0
      %v962 = vsel %vm417, %v938, 0
      %v965 = vsel %vm417, %v946, 0
      %v968 = vsel %vm417, %v954, 0
      %v971 = vsel %vm417, %v957, 0
      %v974 = vand.u32 %v911, %v436
      %976 = vmatpush.bf16.msra.mxu0 0
      %977 = vmatpush.bf16.msra.mxu0 0
      %978 = vmatpush.bf16.msra.mxu0 0
      %979 = vmatpush.bf16.msra.mxu0 0
      %980 = vmatpush.bf16.msra.mxu0 0
      %981 = vmatpush.bf16.msra.mxu0 0
      %982 = vmatpush.bf16.msra.mxu0 0
      %983 = vmatpush.bf16.msra.mxu0 %v974
      %984 = vmatmul.bf16.gmra.mxu0 %v959
      %v985 = vpop.f32.mrf.mxu0
      %v986 = vadd.f32 0.0, %v985
      %v987 = vpop.f32.mrf.mxu0
      %v988 = vadd.f32 0.0, %v987
      %989 = vmatmul.bf16.gmra.mxu0 %v962
      %v990 = vpop.f32.mrf.mxu0
      %v991 = vadd.f32 0.0, %v990
      %v992 = vpop.f32.mrf.mxu0
      %v993 = vadd.f32 0.0, %v992
      %994 = vmatmul.bf16.gmra.mxu0 %v965
      %v995 = vpop.f32.mrf.mxu0
      %v996 = vadd.f32 0.0, %v995
      %v997 = vpop.f32.mrf.mxu0
      %v998 = vadd.f32 0.0, %v997
      %999 = vmatmul.bf16.gmra.mxu0 %v968
      %v1000 = vpop.f32.mrf.mxu0
      %v1001 = vadd.f32 0.0, %v1000
      %v1002 = vpop.f32.mrf.mxu0
      %v1003 = vadd.f32 0.0, %v1002
      %1004 = vmatmul.bf16.gmra.mxu0 %v971
      %v1005 = vpop.f32.mrf.mxu0
      %v1006 = vadd.f32 0.0, %v1005
      %v1007 = vpop.f32.mrf.mxu0
      %1008 = vdwg.mxu0
      %v1009 = vadd.f32 %v901, %v986
      %v1010 = vadd.f32 %v902, %v988
      %v1011 = vadd.f32 %v903, %v991
      %v1012 = vadd.f32 %v904, %v993
      %v1013 = vadd.f32 %v905, %v996
      %v1014 = vadd.f32 %v906, %v998
      %v1015 = vadd.f32 %v907, %v1001
      %v1016 = vadd.f32 %v908, %v1003
      %v1017 = vadd.f32 %v909, %v1006
      %s1018 = scalar_lea.vmem %s4, 14
      %v1019 = vld [vmem:[%s1018] sm:$0x3]
      %v1021 = vunpack.c.l.b16 %v354
      %v1022 = vpack.c.b16 %v405, %v404
      %v1023 = vpack.c.b16 %v407, %v406
      %v1024 = vpack.c.b16 %v409, %v408
      %v1025 = vpack.c.b16 %v411, %v410
      %v1026 = vpack.c.b16 %v1021, %v1021
      %v1028 = vshrl.u32 %v1022, 16
      %v1030 = vshll.u32 %v1022, 16
      %v1032 = vrot.slane %v1030, 1
      %v1033 = vor.u32 %v1028, %v1032
      %v1035 = vshll.u32 %v1023, 16
      %v1037 = vrot.slane %v1035, 1
      %v1038 = vsel %vm549, %v1033, %v1037
      %v1039 = vshrl.u32 %v1023, 16
      %v1041 = vor.u32 %v1039, %v1037
      %v1043 = vshll.u32 %v1024, 16
      %v1045 = vrot.slane %v1043, 1
      %v1046 = vsel %vm549, %v1041, %v1045
      %v1047 = vshrl.u32 %v1024, 16
      %v1049 = vor.u32 %v1047, %v1045
      %v1051 = vshll.u32 %v1025, 16
      %v1053 = vrot.slane %v1051, 1
      %v1054 = vsel %vm549, %v1049, %v1053
      %v1055 = vshrl.u32 %v1025, 16
      %v1057 = vor.u32 %v1055, %v1053
      %v1059 = vshll.u32 %v1026, 16
      %v1061 = vrot.slane %v1059, 1
      %v1062 = vsel %vm549, %v1057, %v1061
      %v1063 = vshrl.u32 %v1026, 16
      %v1065 = vor.u32 %v1063, %v1061
      %v1067 = vsel %vm417, %v1038, 0
      %v1070 = vsel %vm417, %v1046, 0
      %v1073 = vsel %vm417, %v1054, 0
      %v1076 = vsel %vm417, %v1062, 0
      %v1079 = vsel %vm417, %v1065, 0
      %v1082 = vand.u32 %v1019, %v436
      %1084 = vmatpush.bf16.msra.mxu0 0
      %1085 = vmatpush.bf16.msra.mxu0 0
      %1086 = vmatpush.bf16.msra.mxu0 0
      %1087 = vmatpush.bf16.msra.mxu0 0
      %1088 = vmatpush.bf16.msra.mxu0 0
      %1089 = vmatpush.bf16.msra.mxu0 0
      %1090 = vmatpush.bf16.msra.mxu0 0
      %1091 = vmatpush.bf16.msra.mxu0 %v1082
      %1092 = vmatmul.bf16.gmra.mxu0 %v1067
      %v1093 = vpop.f32.mrf.mxu0
      %v1094 = vadd.f32 0.0, %v1093
      %v1095 = vpop.f32.mrf.mxu0
      %v1096 = vadd.f32 0.0, %v1095
      %1097 = vmatmul.bf16.gmra.mxu0 %v1070
      %v1098 = vpop.f32.mrf.mxu0
      %v1099 = vadd.f32 0.0, %v1098
      %v1100 = vpop.f32.mrf.mxu0
      %v1101 = vadd.f32 0.0, %v1100
      %1102 = vmatmul.bf16.gmra.mxu0 %v1073
      %v1103 = vpop.f32.mrf.mxu0
      %v1104 = vadd.f32 0.0, %v1103
      %v1105 = vpop.f32.mrf.mxu0
      %v1106 = vadd.f32 0.0, %v1105
      %1107 = vmatmul.bf16.gmra.mxu0 %v1076
      %v1108 = vpop.f32.mrf.mxu0
      %v1109 = vadd.f32 0.0, %v1108
      %v1110 = vpop.f32.mrf.mxu0
      %v1111 = vadd.f32 0.0, %v1110
      %1112 = vmatmul.bf16.gmra.mxu0 %v1079
      %v1113 = vpop.f32.mrf.mxu0
      %v1114 = vadd.f32 0.0, %v1113
      %v1115 = vpop.f32.mrf.mxu0
      %1116 = vdwg.mxu0
      %v1117 = vadd.f32 %v1009, %v1094
      %v1118 = vadd.f32 %v1010, %v1096
      %v1119 = vadd.f32 %v1011, %v1099
      %v1120 = vadd.f32 %v1012, %v1101
      %v1121 = vadd.f32 %v1013, %v1104
      %v1122 = vadd.f32 %v1014, %v1106
      %v1123 = vadd.f32 %v1015, %v1109
      %v1124 = vadd.f32 %v1016, %v1111
      %v1125 = vadd.f32 %v1017, %v1114
      %s1126 = scalar_lea.vmem %s4, 16
      %v1127 = vld [vmem:[%s1126] sm:$0x3]
      %v1129 = vunpack.c.l.b16 %v334
      %v1130 = vpack.c.b16 %v1129, %v913
      %vm1131 = vcmask 1046528
      %v1132 = vrot.slane %v914, 1
      %v1133 = vrot.slane %v915, 1
      %v1134 = vsel %vm1131, %v1132, %v1133
      %v1135 = vrot.slane %v916, 1
      %v1136 = vsel %vm1131, %v1133, %v1135
      %v1137 = vrot.slane %v917, 1
      %v1138 = vsel %vm1131, %v1135, %v1137
      %v1139 = vrot.slane %v1130, 1
      %v1140 = vsel %vm1131, %v1137, %v1139
      %v1142 = vsel %vm417, %v1134, 0
      %v1145 = vsel %vm417, %v1136, 0
      %v1148 = vsel %vm417, %v1138, 0
      %v1151 = vsel %vm417, %v1140, 0
      %v1154 = vsel %vm417, %v1139, 0
      %v1157 = vand.u32 %v1127, %v436
      %1159 = vmatpush.bf16.msra.mxu0 0
      %1160 = vmatpush.bf16.msra.mxu0 0
      %1161 = vmatpush.bf16.msra.mxu0 0
      %1162 = vmatpush.bf16.msra.mxu0 0
      %1163 = vmatpush.bf16.msra.mxu0 0
      %1164 = vmatpush.bf16.msra.mxu0 0
      %1165 = vmatpush.bf16.msra.mxu0 0
      %1166 = vmatpush.bf16.msra.mxu0 %v1157
      %1167 = vmatmul.bf16.gmra.mxu0 %v1142
      %v1168 = vpop.f32.mrf.mxu0
      %v1169 = vadd.f32 0.0, %v1168
      %v1170 = vpop.f32.mrf.mxu0
      %v1171 = vadd.f32 0.0, %v1170
      %1172 = vmatmul.bf16.gmra.mxu0 %v1145
      %v1173 = vpop.f32.mrf.mxu0
      %v1174 = vadd.f32 0.0, %v1173
      %v1175 = vpop.f32.mrf.mxu0
      %v1176 = vadd.f32 0.0, %v1175
      %1177 = vmatmul.bf16.gmra.mxu0 %v1148
      %v1178 = vpop.f32.mrf.mxu0
      %v1179 = vadd.f32 0.0, %v1178
      %v1180 = vpop.f32.mrf.mxu0
      %v1181 = vadd.f32 0.0, %v1180
      %1182 = vmatmul.bf16.gmra.mxu0 %v1151
      %v1183 = vpop.f32.mrf.mxu0
      %v1184 = vadd.f32 0.0, %v1183
      %v1185 = vpop.f32.mrf.mxu0
      %v1186 = vadd.f32 0.0, %v1185
      %1187 = vmatmul.bf16.gmra.mxu0 %v1154
      %v1188 = vpop.f32.mrf.mxu0
      %v1189 = vadd.f32 0.0, %v1188
      %v1190 = vpop.f32.mrf.mxu0
      %1191 = vdwg.mxu0
      %v1192 = vadd.f32 %v1117, %v1169
      %v1193 = vadd.f32 %v1118, %v1171
      %v1194 = vadd.f32 %v1119, %v1174
      %v1195 = vadd.f32 %v1120, %v1176
      %v1196 = vadd.f32 %v1121, %v1179
      %v1197 = vadd.f32 %v1122, %v1181
      %v1198 = vadd.f32 %v1123, %v1184
      %v1199 = vadd.f32 %v1124, %v1186
      %v1200 = vadd.f32 %v1125, %v1189
      %v1201 = vld [vmem:[%s5] sm:$0x1]
      %v1203 = vperm.slane %v1201, 0
      %v1205 = vadd.f32 %v1192, %v1203
      %v1206 = vadd.f32 %v1193, %v1203
      %v1207 = vadd.f32 %v1194, %v1203
      %v1208 = vadd.f32 %v1195, %v1203
      %v1209 = vadd.f32 %v1196, %v1203
      %v1210 = vadd.f32 %v1197, %v1203
      %v1211 = vadd.f32 %v1198, %v1203
      %v1212 = vadd.f32 %v1199, %v1203
      %v1213 = vadd.f32 %v1200, %v1203
      %v1214 = vxor.u32 %v1205, 2147483648
      %v1215 = vxor.u32 %v1206, 2147483648
      %v1216 = vxor.u32 %v1207, 2147483648
      %v1217 = vxor.u32 %v1208, 2147483648
      %v1218 = vxor.u32 %v1209, 2147483648
      %v1219 = vxor.u32 %v1210, 2147483648
      %v1220 = vxor.u32 %v1211, 2147483648
      %v1221 = vxor.u32 %v1212, 2147483648
      %v1222 = vxor.u32 %v1213, 2147483648
      %v1223 = vmul.f32 %v1214, 1.442695
      %v1224 = vpow.pop %v1223
      %v1225 = vmul.f32 %v1215, 1.442695
      %v1226 = vpow.pop %v1225
      %v1227 = vmul.f32 %v1216, 1.442695
      %v1228 = vpow.pop %v1227
      %v1229 = vmul.f32 %v1217, 1.442695
      %v1230 = vpow.pop %v1229
      %v1231 = vmul.f32 %v1218, 1.442695
      %v1232 = vpow.pop %v1231
      %v1233 = vmul.f32 %v1219, 1.442695
      %v1234 = vpow.pop %v1233
      %v1235 = vmul.f32 %v1220, 1.442695
      %v1236 = vpow.pop %v1235
      %v1237 = vmul.f32 %v1221, 1.442695
      %v1238 = vpow.pop %v1237
      %v1239 = vmul.f32 %v1222, 1.442695
      %v1240 = vpow.pop %v1239
      %v1241 = vadd.f32 %v1224, 1.0
      %v1242 = vadd.f32 %v1226, 1.0
      %v1243 = vadd.f32 %v1228, 1.0
      %v1244 = vadd.f32 %v1230, 1.0
      %v1245 = vadd.f32 %v1232, 1.0
      %v1246 = vadd.f32 %v1234, 1.0
      %v1247 = vadd.f32 %v1236, 1.0
      %v1248 = vadd.f32 %v1238, 1.0
      %v1249 = vadd.f32 %v1240, 1.0
      %v1250 = vrcp.pop %v1241
      %v1251 = vmul.f32 %v1241, %v1250
      %v1252 = vsub.f32 1.0, %v1251
      %v1253 = vmul.f32 %v1250, %v1252
      %v1254 = vadd.f32 %v1250, %v1253
      %vm1255 = vweird.f32 %v1241
      %vm1256 = vweird.f32 %v1250
      %vm1257 = vmor %vm1255, %vm1256
      %v1258 = vsel %vm1257, %v1250, %v1254
      %v1259 = vand.u32 2147483647, %v1241
      %vm1260 = vcmp.eq.f32.partialorder %v1259, 8.507059e+37
      %v1261 = vand.u32 %v1241, 2147483648
      %v1262 = vor.u32 1.1754944e-38, %v1261
      %v1263 = vsel %vm1260, %v1262, %v1258
      %v1264 = vmul.f32 1.0, %v1263
      %v1265 = vrcp.pop %v1242
      %v1266 = vmul.f32 %v1242, %v1265
      %v1267 = vsub.f32 1.0, %v1266
      %v1268 = vmul.f32 %v1265, %v1267
      %v1269 = vadd.f32 %v1265, %v1268
      %vm1270 = vweird.f32 %v1242
      %vm1271 = vweird.f32 %v1265
      %vm1272 = vmor %vm1270, %vm1271
      %v1273 = vsel %vm1272, %v1265, %v1269
      %v1274 = vand.u32 2147483647, %v1242
      %vm1275 = vcmp.eq.f32.partialorder %v1274, 8.507059e+37
      %v1276 = vand.u32 %v1242, 2147483648
      %v1277 = vor.u32 1.1754944e-38, %v1276
      %v1278 = vsel %vm1275, %v1277, %v1273
      %v1279 = vmul.f32 1.0, %v1278
      %v1280 = vrcp.pop %v1243
      %v1281 = vmul.f32 %v1243, %v1280
      %v1282 = vsub.f32 1.0, %v1281
      %v1283 = vmul.f32 %v1280, %v1282
      %v1284 = vadd.f32 %v1280, %v1283
      %vm1285 = vweird.f32 %v1243
      %vm1286 = vweird.f32 %v1280
      %vm1287 = vmor %vm1285, %vm1286
      %v1288 = vsel %vm1287, %v1280, %v1284
      %v1289 = vand.u32 2147483647, %v1243
      %vm1290 = vcmp.eq.f32.partialorder %v1289, 8.507059e+37
      %v1291 = vand.u32 %v1243, 2147483648
      %v1292 = vor.u32 1.1754944e-38, %v1291
      %v1293 = vsel %vm1290, %v1292, %v1288
      %v1294 = vmul.f32 1.0, %v1293
      %v1295 = vrcp.pop %v1244
      %v1296 = vmul.f32 %v1244, %v1295
      %v1297 = vsub.f32 1.0, %v1296
      %v1298 = vmul.f32 %v1295, %v1297
      %v1299 = vadd.f32 %v1295, %v1298
      %vm1300 = vweird.f32 %v1244
      %vm1301 = vweird.f32 %v1295
      %vm1302 = vmor %vm1300, %vm1301
      %v1303 = vsel %vm1302, %v1295, %v1299
      %v1304 = vand.u32 2147483647, %v1244
      %vm1305 = vcmp.eq.f32.partialorder %v1304, 8.507059e+37
      %v1306 = vand.u32 %v1244, 2147483648
      %v1307 = vor.u32 1.1754944e-38, %v1306
      %v1308 = vsel %vm1305, %v1307, %v1303
      %v1309 = vmul.f32 1.0, %v1308
      %v1310 = vrcp.pop %v1245
      %v1311 = vmul.f32 %v1245, %v1310
      %v1312 = vsub.f32 1.0, %v1311
      %v1313 = vmul.f32 %v1310, %v1312
      %v1314 = vadd.f32 %v1310, %v1313
      %vm1315 = vweird.f32 %v1245
      %vm1316 = vweird.f32 %v1310
      %vm1317 = vmor %vm1315, %vm1316
      %v1318 = vsel %vm1317, %v1310, %v1314
      %v1319 = vand.u32 2147483647, %v1245
      %vm1320 = vcmp.eq.f32.partialorder %v1319, 8.507059e+37
      %v1321 = vand.u32 %v1245, 2147483648
      %v1322 = vor.u32 1.1754944e-38, %v1321
      %v1323 = vsel %vm1320, %v1322, %v1318
      %v1324 = vmul.f32 1.0, %v1323
      %v1325 = vrcp.pop %v1246
      %v1326 = vmul.f32 %v1246, %v1325
      %v1327 = vsub.f32 1.0, %v1326
      %v1328 = vmul.f32 %v1325, %v1327
      %v1329 = vadd.f32 %v1325, %v1328
      %vm1330 = vweird.f32 %v1246
      %vm1331 = vweird.f32 %v1325
      %vm1332 = vmor %vm1330, %vm1331
      %v1333 = vsel %vm1332, %v1325, %v1329
      %v1334 = vand.u32 2147483647, %v1246
      %vm1335 = vcmp.eq.f32.partialorder %v1334, 8.507059e+37
      %v1336 = vand.u32 %v1246, 2147483648
      %v1337 = vor.u32 1.1754944e-38, %v1336
      %v1338 = vsel %vm1335, %v1337, %v1333
      %v1339 = vmul.f32 1.0, %v1338
      %v1340 = vrcp.pop %v1247
      %v1341 = vmul.f32 %v1247, %v1340
      %v1342 = vsub.f32 1.0, %v1341
      %v1343 = vmul.f32 %v1340, %v1342
      %v1344 = vadd.f32 %v1340, %v1343
      %vm1345 = vweird.f32 %v1247
      %vm1346 = vweird.f32 %v1340
      %vm1347 = vmor %vm1345, %vm1346
      %v1348 = vsel %vm1347, %v1340, %v1344
      %v1349 = vand.u32 2147483647, %v1247
      %vm1350 = vcmp.eq.f32.partialorder %v1349, 8.507059e+37
      %v1351 = vand.u32 %v1247, 2147483648
      %v1352 = vor.u32 1.1754944e-38, %v1351
      %v1353 = vsel %vm1350, %v1352, %v1348
      %v1354 = vmul.f32 1.0, %v1353
      %v1355 = vrcp.pop %v1248
      %v1356 = vmul.f32 %v1248, %v1355
      %v1357 = vsub.f32 1.0, %v1356
      %v1358 = vmul.f32 %v1355, %v1357
      %v1359 = vadd.f32 %v1355, %v1358
      %vm1360 = vweird.f32 %v1248
      %vm1361 = vweird.f32 %v1355
      %vm1362 = vmor %vm1360, %vm1361
      %v1363 = vsel %vm1362, %v1355, %v1359
      %v1364 = vand.u32 2147483647, %v1248
      %vm1365 = vcmp.eq.f32.partialorder %v1364, 8.507059e+37
      %v1366 = vand.u32 %v1248, 2147483648
      %v1367 = vor.u32 1.1754944e-38, %v1366
      %v1368 = vsel %vm1365, %v1367, %v1363
      %v1369 = vmul.f32 1.0, %v1368
      %v1370 = vrcp.pop %v1249
      %v1371 = vmul.f32 %v1249, %v1370
      %v1372 = vsub.f32 1.0, %v1371
      %v1373 = vmul.f32 %v1370, %v1372
      %v1374 = vadd.f32 %v1370, %v1373
      %vm1375 = vweird.f32 %v1249
      %vm1376 = vweird.f32 %v1370
      %vm1377 = vmor %vm1375, %vm1376
      %v1378 = vsel %vm1377, %v1370, %v1374
      %v1379 = vand.u32 2147483647, %v1249
      %vm1380 = vcmp.eq.f32.partialorder %v1379, 8.507059e+37
      %v1381 = vand.u32 %v1249, 2147483648
      %v1382 = vor.u32 1.1754944e-38, %v1381
      %v1383 = vsel %vm1380, %v1382, %v1378
      %v1384 = vmul.f32 1.0, %v1383
      %v1385 = vmul.f32 %v1205, %v1264
      %v1386 = vmul.f32 %v1206, %v1279
      %v1387 = vmul.f32 %v1207, %v1294
      %v1388 = vmul.f32 %v1208, %v1309
      %v1389 = vmul.f32 %v1209, %v1324
      %v1390 = vmul.f32 %v1210, %v1339
      %v1391 = vmul.f32 %v1211, %v1354
      %v1392 = vmul.f32 %v1212, %v1369
      %v1393 = vmul.f32 %v1213, %v1384
      %v1394 = vpack.c.bf16 %v1385, %v1385
      %v1395 = vpack.c.bf16 %v1386, %v1386
      %v1396 = vpack.c.bf16 %v1387, %v1387
      %v1397 = vpack.c.bf16 %v1388, %v1388
      %v1398 = vpack.c.bf16 %v1389, %v1389
      %v1399 = vpack.c.bf16 %v1390, %v1390
      %v1400 = vpack.c.bf16 %v1391, %v1391
      %v1401 = vpack.c.bf16 %v1392, %v1392
      %v1402 = vpack.c.bf16 %v1393, %v1393
      %1403 = vst [vmem:[%s311] sm:$0xf] %v1394
      %1404 = vst [vmem:[%s311 + $0x4] sm:$0xf] %v1395
      %1405 = vst [vmem:[%s311 + $0x8] sm:$0xf] %v1396
      %1406 = vst [vmem:[%s311 + $0xc] sm:$0xf] %v1397
      %1407 = vst [vmem:[%s311 + $0x10] sm:$0xf] %v1398
      %1408 = vst [vmem:[%s311 + $0x14] sm:$0xf] %v1399
      %1409 = vst [vmem:[%s311 + $0x18] sm:$0xf] %v1400
      %1410 = vst [vmem:[%s311 + $0x1c] sm:$0xf] %v1401
      %vm1411 = vcmask 1043456
      %vm1412 = vsmask.f32 3328
      %vm1413 = vmand %vm1411, %vm1412
      %v1414 = vld [vmem:[%s311 + $0x20] sm:$0xf]
      %v1415 = vsel %vm1413, %v1402, %v1414
      %1416 = vst [vmem:[%s311 + $0x20] sm:$0xf] %v1415
      %p1417 = scmp.lt.s32.totalorder %s17, 1
      %s1418 = scalar_select %p1417, %s17, 1
      %s1419 = smul.addr %s1418, 9
      %s1420 = smul.addr %s1419, 4
      %s1421 = scalar_lea.vmem %s6, %s1420
      // Predicated region
      $region45: #{custom_effnet_forward.5} parent=43 // pred_check
        %p1422 = pneg %p181
      $region46: #{custom_effnet_forward.5} parent=43 // pred_check_branch
        %1424 = sbr.rel (%p1422) target = $region48
      $region47: #{custom_effnet_forward.5} parent=43 // pred_region
        _
      $region48: #{custom_effnet_forward.5} parent=43 // pred_fallthru
        _
    $region44: #{custom_effnet_forward.5} parent=5 // pred_fallthru
      _
    %p1425 = scmp.le.s32.totalorder 2, %s12
    // Predicated region
    $region49: #{custom_effnet_forward.5} parent=5 // pred_check
      %p1426 = pneg %p1425
    $region50: #{custom_effnet_forward.5} parent=5 // pred_check_branch
      %1428 = sbr.rel (%p1426) target = $region52
    $region51: #{custom_effnet_forward.5} parent=5 // pred_region
      %s1429 = ssub.s32 %s12, 2
      // Predicated region
      $region53: #{custom_effnet_forward.5} parent=51 // pred_check
        %p1430 = pneg %p187
      $region54: #{custom_effnet_forward.5} parent=51 // pred_check_branch
        %1432 = sbr.rel (%p1430) target = $region56
      $region55: #{custom_effnet_forward.5} parent=51 // pred_region
        %p1433 = scmp.lt.s32.totalorder %s18, 1
        %s1434 = scalar_select %p1433, %s18, 1
        %s1435 = smul.addr %s1434, 9
        %s1436 = smul.addr %s1435, 4
        %s1437 = scalar_lea.vmem %s6, %s1436
      $region56: #{custom_effnet_forward.5} parent=51 // pred_fallthru
        _
    $region52: #{custom_effnet_forward.5} parent=5 // pred_fallthru
      _
  $region6: #{custom_effnet_forward.5} parent=0 // loop_footer
    %s16 = sadd.s32 1, %s12
  $region7: #{custom_effnet_forward.5} parent=0 // loop_footer_branch
    %11 = sbr.rel target = $region3
  $region8: #{custom_effnet_forward.5} parent=0 // loop_exit
    _

// kernel: custom_effnet_forward.7
$region0: #{custom_effnet_forward.7}
  #allocation0 [shape = 'u32[]', space=smem, size = 0x4, offset = 0x4, fixed_abs, tag = 'smem constant byte address 0x4 - core index']
  #allocation1 [shape = 'u32[72,128]{1,0:T(1,128)}', space=vmem, size = 0x9000, scoped, tag = 'internal scratch']
  %s0 = inlined_call_operand.vmem [shape: bf16[128,128], index: 0, kind: input, shape index: {}]
  %s1 = inlined_call_operand.vmem [shape: bf16[128,128], index: 1, kind: input, shape index: {}]
  %s2 = inlined_call_operand.vmem [shape: f32[1,128], index: 2, kind: input, shape index: {}]
  %s3 = inlined_call_operand.vmem [shape: f32[128,128], index: 3, kind: output, shape index: {}]
  %s4 = sld [smem:[#allocation0]]
  $region22: #{custom_effnet_forward.7} parent=0
    _
  %s6 = ssub.s32 1, %s4
  %s7 = scalar_select 0, %s6, %s4
  // Predicated region
  $region2: #{custom_effnet_forward.7} parent=0 // pred_check
    _
  $region3: #{custom_effnet_forward.7} parent=0 // pred_check_branch
    %9 = sbr.rel (0) target = $region5
  $region4: #{custom_effnet_forward.7} parent=0 // pred_region
    _
  $region5: #{custom_effnet_forward.7} parent=0 // pred_fallthru
    _
  // Predicated region
  $region6: #{custom_effnet_forward.7} parent=0 // pred_check
    _
  $region7: #{custom_effnet_forward.7} parent=0 // pred_check_branch
    %11 = sbr.rel (0) target = $region9
  $region8: #{custom_effnet_forward.7} parent=0 // pred_region
    _
  $region9: #{custom_effnet_forward.7} parent=0 // pred_fallthru
    _
  // Predicated region
  $region10: #{custom_effnet_forward.7} parent=0 // pred_check
    _
  $region11: #{custom_effnet_forward.7} parent=0 // pred_check_branch
    %13 = sbr.rel (0) target = $region13
  $region12: #{custom_effnet_forward.7} parent=0 // pred_region
    _
  $region13: #{custom_effnet_forward.7} parent=0 // pred_fallthru
    _
  %v14 = vld [vmem:[%s0] sm:$0xf]
  %v15 = vld [vmem:[%s0 + $0x4] sm:$0xf]
  %v16 = vld [vmem:[%s0 + $0x8] sm:$0xf]
  %v17 = vld [vmem:[%s0 + $0xc] sm:$0xf]
  %v18 = vld [vmem:[%s0 + $0x10] sm:$0xf]
  %v19 = vld [vmem:[%s0 + $0x14] sm:$0xf]
  %v20 = vld [vmem:[%s0 + $0x18] sm:$0xf]
  %v21 = vld [vmem:[%s0 + $0x1c] sm:$0xf]
  %v22 = vld [vmem:[%s0 + $0x20] sm:$0xf]
  %v23 = vld [vmem:[%s0 + $0x24] sm:$0xf]
  %v24 = vld [vmem:[%s0 + $0x28] sm:$0xf]
  %v25 = vld [vmem:[%s0 + $0x2c] sm:$0xf]
  %v26 = vld [vmem:[%s0 + $0x30] sm:$0xf]
  %v27 = vld [vmem:[%s0 + $0x34] sm:$0xf]
  %v28 = vld [vmem:[%s0 + $0x38] sm:$0xf]
  %v29 = vld [vmem:[%s0 + $0x3c] sm:$0xf]
  %v30 = vld [vmem:[%s1] sm:$0xf]
  %v31 = vld [vmem:[%s1 + $0x4] sm:$0xf]
  %v32 = vld [vmem:[%s1 + $0x8] sm:$0xf]
  %v33 = vld [vmem:[%s1 + $0xc] sm:$0xf]
  %v34 = vld [vmem:[%s1 + $0x10] sm:$0xf]
  %v35 = vld [vmem:[%s1 + $0x14] sm:$0xf]
  %v36 = vld [vmem:[%s1 + $0x18] sm:$0xf]
  %v37 = vld [vmem:[%s1 + $0x1c] sm:$0xf]
  %v38 = vld [vmem:[%s1 + $0x20] sm:$0xf]
  %v39 = vld [vmem:[%s1 + $0x24] sm:$0xf]
  %v40 = vld [vmem:[%s1 + $0x28] sm:$0xf]
  %v41 = vld [vmem:[%s1 + $0x2c] sm:$0xf]
  %v42 = vld [vmem:[%s1 + $0x30] sm:$0xf]
  %v43 = vld [vmem:[%s1 + $0x34] sm:$0xf]
  %v44 = vld [vmem:[%s1 + $0x38] sm:$0xf]
  %v45 = vld [vmem:[%s1 + $0x3c] sm:$0xf]
  %v46 = vld [vmem:[%s2] sm:$0x1]
  %v48 = vperm.slane %v46, 0
  %v66 = vunpack.c.l.b16 %v14
  %v67 = vunpack.c.l.b16 %v15
  %v68 = vunpack.c.l.b16 %v16
  %v69 = vunpack.c.l.b16 %v17
  %v70 = vunpack.c.l.b16 %v18
  %v71 = vunpack.c.l.b16 %v19
  %v72 = vunpack.c.l.b16 %v20
  %v73 = vunpack.c.l.b16 %v21
  %v74 = vunpack.c.l.b16 %v22
  %v75 = vunpack.c.l.b16 %v23
  %v76 = vunpack.c.l.b16 %v24
  %v77 = vunpack.c.l.b16 %v25
  %v78 = vunpack.c.l.b16 %v26
  %v79 = vunpack.c.l.b16 %v27
  %v80 = vunpack.c.l.b16 %v28
  %v81 = vunpack.c.l.b16 %v29
  %v82 = vpack.c.b16 %v67, %v66
  %v83 = vpack.c.b16 %v69, %v68
  %v84 = vpack.c.b16 %v71, %v70
  %v85 = vpack.c.b16 %v73, %v72
  %v86 = vpack.c.b16 %v75, %v74
  %v87 = vpack.c.b16 %v77, %v76
  %v88 = vpack.c.b16 %v79, %v78
  %v89 = vpack.c.b16 %v81, %v80
  %v114 = vunpack.c.l.b16 %v30
  %v115 = vunpack.c.l.b16 %v31
  %v116 = vunpack.c.l.b16 %v32
  %v117 = vunpack.c.l.b16 %v33
  %v118 = vunpack.c.l.b16 %v34
  %v119 = vunpack.c.l.b16 %v35
  %v120 = vunpack.c.l.b16 %v36
  %v121 = vunpack.c.l.b16 %v37
  %v122 = vunpack.c.l.b16 %v38
  %v123 = vunpack.c.l.b16 %v39
  %v124 = vunpack.c.l.b16 %v40
  %v125 = vunpack.c.l.b16 %v41
  %v126 = vunpack.c.l.b16 %v42
  %v127 = vunpack.c.l.b16 %v43
  %v128 = vunpack.c.l.b16 %v44
  %v129 = vunpack.c.l.b16 %v45
  %v130 = vpack.c.b16 %v115, %v114
  %v131 = vpack.c.b16 %v117, %v116
  %v132 = vpack.c.b16 %v119, %v118
  %v133 = vpack.c.b16 %v121, %v120
  %v134 = vpack.c.b16 %v123, %v122
  %v135 = vpack.c.b16 %v125, %v124
  %v136 = vpack.c.b16 %v127, %v126
  %v137 = vpack.c.b16 %v129, %v128
  %146 = vmatpush.bf16.msra.mxu0 %v137
  %147 = vmatpush.bf16.msra.mxu0 %v136
  %148 = vmatpush.bf16.msra.mxu0 %v135
  %149 = vmatpush.bf16.msra.mxu0 %v134
  %150 = vmatpush.bf16.msra.mxu0 %v133
  %151 = vmatpush.bf16.msra.mxu0 %v132
  %152 = vmatpush.bf16.msra.mxu0 %v131
  %153 = vmatpush.bf16.msra.mxu0 %v130
  %154 = vmatmul.bf16.gmra.mxu0 %v82
  %v155 = vpop.f32.mrf.mxu0
  %v156 = vadd.f32 %v48, %v155
  %v157 = vpop.f32.mrf.mxu0
  %v158 = vadd.f32 %v48, %v157
  %159 = vmatmul.bf16.gmra.mxu0 %v83
  %v160 = vpop.f32.mrf.mxu0
  %v161 = vadd.f32 %v48, %v160
  %v162 = vpop.f32.mrf.mxu0
  %v163 = vadd.f32 %v48, %v162
  %164 = vmatmul.bf16.gmra.mxu0 %v84
  %v165 = vpop.f32.mrf.mxu0
  %v166 = vadd.f32 %v48, %v165
  %v167 = vpop.f32.mrf.mxu0
  %v168 = vadd.f32 %v48, %v167
  %169 = vmatmul.bf16.gmra.mxu0 %v85
  %v170 = vpop.f32.mrf.mxu0
  %v171 = vadd.f32 %v48, %v170
  %v172 = vpop.f32.mrf.mxu0
  %v173 = vadd.f32 %v48, %v172
  %174 = vmatmul.bf16.gmra.mxu0 %v86
  %v175 = vpop.f32.mrf.mxu0
  %v176 = vadd.f32 %v48, %v175
  %v177 = vpop.f32.mrf.mxu0
  %v178 = vadd.f32 %v48, %v177
  %179 = vmatmul.bf16.gmra.mxu0 %v87
  %v180 = vpop.f32.mrf.mxu0
  %v181 = vadd.f32 %v48, %v180
  %v182 = vpop.f32.mrf.mxu0
  %v183 = vadd.f32 %v48, %v182
  %184 = vmatmul.bf16.gmra.mxu0 %v88
  %v185 = vpop.f32.mrf.mxu0
  %v186 = vadd.f32 %v48, %v185
  %v187 = vpop.f32.mrf.mxu0
  %v188 = vadd.f32 %v48, %v187
  %189 = vmatmul.bf16.gmra.mxu0 %v89
  %v190 = vpop.f32.mrf.mxu0
  %v191 = vadd.f32 %v48, %v190
  %v192 = vpop.f32.mrf.mxu0
  %v193 = vadd.f32 %v48, %v192
  %194 = vdwg.mxu0
  %v195 = vxor.u32 %v156, 2147483648
  %v196 = vxor.u32 %v158, 2147483648
  %v197 = vxor.u32 %v161, 2147483648
  %v198 = vxor.u32 %v163, 2147483648
  %v199 = vxor.u32 %v166, 2147483648
  %v200 = vxor.u32 %v168, 2147483648
  %v201 = vxor.u32 %v171, 2147483648
  %v202 = vxor.u32 %v173, 2147483648
  %v203 = vxor.u32 %v176, 2147483648
  %v204 = vxor.u32 %v178, 2147483648
  %v205 = vxor.u32 %v181, 2147483648
  %v206 = vxor.u32 %v183, 2147483648
  %v207 = vxor.u32 %v186, 2147483648
  %v208 = vxor.u32 %v188, 2147483648
  %v209 = vxor.u32 %v191, 2147483648
  %v210 = vxor.u32 %v193, 2147483648
  %v211 = vmul.f32 %v195, 1.442695
  %v212 = vpow.pop %v211
  %v213 = vmul.f32 %v196, 1.442695
  %v214 = vpow.pop %v213
  %v215 = vmul.f32 %v197, 1.442695
  %v216 = vpow.pop %v215
  %v217 = vmul.f32 %v198, 1.442695
  %v218 = vpow.pop %v217
  %v219 = vmul.f32 %v199, 1.442695
  %v220 = vpow.pop %v219
  %v221 = vmul.f32 %v200, 1.442695
  %v222 = vpow.pop %v221
  %v223 = vmul.f32 %v201, 1.442695
  %v224 = vpow.pop %v223
  %v225 = vmul.f32 %v202, 1.442695
  %v226 = vpow.pop %v225
  %v227 = vmul.f32 %v203, 1.442695
  %v228 = vpow.pop %v227
  %v229 = vmul.f32 %v204, 1.442695
  %v230 = vpow.pop %v229
  %v231 = vmul.f32 %v205, 1.442695
  %v232 = vpow.pop %v231
  %v233 = vmul.f32 %v206, 1.442695
  %v234 = vpow.pop %v233
  %v235 = vmul.f32 %v207, 1.442695
  %v236 = vpow.pop %v235
  %v237 = vmul.f32 %v208, 1.442695
  %v238 = vpow.pop %v237
  %v239 = vmul.f32 %v209, 1.442695
  %v240 = vpow.pop %v239
  %v241 = vmul.f32 %v210, 1.442695
  %v242 = vpow.pop %v241
  %v243 = vadd.f32 %v212, 1.0
  %v244 = vadd.f32 %v214, 1.0
  %v245 = vadd.f32 %v216, 1.0
  %v246 = vadd.f32 %v218, 1.0
  %v247 = vadd.f32 %v220, 1.0
  %v248 = vadd.f32 %v222, 1.0
  %v249 = vadd.f32 %v224, 1.0
  %v250 = vadd.f32 %v226, 1.0
  %v251 = vadd.f32 %v228, 1.0
  %v252 = vadd.f32 %v230, 1.0
  %v253 = vadd.f32 %v232, 1.0
  %v254 = vadd.f32 %v234, 1.0
  %v255 = vadd.f32 %v236, 1.0
  %v256 = vadd.f32 %v238, 1.0
  %v257 = vadd.f32 %v240, 1.0
  %v258 = vadd.f32 %v242, 1.0
  %v259 = vrcp.pop %v243
  %v260 = vmul.f32 %v243, %v259
  %v261 = vsub.f32 1.0, %v260
  %v262 = vmul.f32 %v259, %v261
  %v263 = vadd.f32 %v259, %v262
  %vm264 = vweird.f32 %v243
  %vm265 = vweird.f32 %v259
  %vm266 = vmor %vm264, %vm265
  %v267 = vsel %vm266, %v259, %v263
  %v268 = vand.u32 2147483647, %v243
  %vm269 = vcmp.eq.f32.partialorder %v268, 8.507059e+37
  %v270 = vand.u32 %v243, 2147483648
  %v271 = vor.u32 1.1754944e-38, %v270
  %v272 = vsel %vm269, %v271, %v267
  %v273 = vmul.f32 1.0, %v272
  %v274 = vrcp.pop %v244
  %v275 = vmul.f32 %v244, %v274
  %v276 = vsub.f32 1.0, %v275
  %v277 = vmul.f32 %v274, %v276
  %v278 = vadd.f32 %v274, %v277
  %vm279 = vweird.f32 %v244
  %vm280 = vweird.f32 %v274
  %vm281 = vmor %vm279, %vm280
  %v282 = vsel %vm281, %v274, %v278
  %v283 = vand.u32 2147483647, %v244
  %vm284 = vcmp.eq.f32.partialorder %v283, 8.507059e+37
  %v285 = vand.u32 %v244, 2147483648
  %v286 = vor.u32 1.1754944e-38, %v285
  %v287 = vsel %vm284, %v286, %v282
  %v288 = vmul.f32 1.0, %v287
  %v289 = vrcp.pop %v245
  %v290 = vmul.f32 %v245, %v289
  %v291 = vsub.f32 1.0, %v290
  %v292 = vmul.f32 %v289, %v291
  %v293 = vadd.f32 %v289, %v292
  %vm294 = vweird.f32 %v245
  %vm295 = vweird.f32 %v289
  %vm296 = vmor %vm294, %vm295
  %v297 = vsel %vm296, %v289, %v293
  %v298 = vand.u32 2147483647, %v245
  %vm299 = vcmp.eq.f32.partialorder %v298, 8.507059e+37
  %v300 = vand.u32 %v245, 2147483648
  %v301 = vor.u32 1.1754944e-38, %v300
  %v302 = vsel %vm299, %v301, %v297
  %v303 = vmul.f32 1.0, %v302
  %v304 = vrcp.pop %v246
  %v305 = vmul.f32 %v246, %v304
  %v306 = vsub.f32 1.0, %v305
  %v307 = vmul.f32 %v304, %v306
  %v308 = vadd.f32 %v304, %v307
  %vm309 = vweird.f32 %v246
  %vm310 = vweird.f32 %v304
  %vm311 = vmor %vm309, %vm310
  %v312 = vsel %vm311, %v304, %v308
  %v313 = vand.u32 2147483647, %v246
  %vm314 = vcmp.eq.f32.partialorder %v313, 8.507059e+37
  %v315 = vand.u32 %v246, 2147483648
  %v316 = vor.u32 1.1754944e-38, %v315
  %v317 = vsel %vm314, %v316, %v312
  %v318 = vmul.f32 1.0, %v317
  %v319 = vrcp.pop %v247
  %v320 = vmul.f32 %v247, %v319
  %v321 = vsub.f32 1.0, %v320
  %v322 = vmul.f32 %v319, %v321
  %v323 = vadd.f32 %v319, %v322
  %vm324 = vweird.f32 %v247
  %vm325 = vweird.f32 %v319
  %vm326 = vmor %vm324, %vm325
  %v327 = vsel %vm326, %v319, %v323
  %v328 = vand.u32 2147483647, %v247
  %vm329 = vcmp.eq.f32.partialorder %v328, 8.507059e+37
  %v330 = vand.u32 %v247, 2147483648
  %v331 = vor.u32 1.1754944e-38, %v330
  %v332 = vsel %vm329, %v331, %v327
  %v333 = vmul.f32 1.0, %v332
  %v334 = vrcp.pop %v248
  %v335 = vmul.f32 %v248, %v334
  %v336 = vsub.f32 1.0, %v335
  %v337 = vmul.f32 %v334, %v336
  %v338 = vadd.f32 %v334, %v337
  %vm339 = vweird.f32 %v248
  %vm340 = vweird.f32 %v334
  %vm341 = vmor %vm339, %vm340
  %v342 = vsel %vm341, %v334, %v338
  %v343 = vand.u32 2147483647, %v248
  %vm344 = vcmp.eq.f32.partialorder %v343, 8.507059e+37
  %v345 = vand.u32 %v248, 2147483648
  %v346 = vor.u32 1.1754944e-38, %v345
  %v347 = vsel %vm344, %v346, %v342
  %v348 = vmul.f32 1.0, %v347
  %v349 = vrcp.pop %v249
  %v350 = vmul.f32 %v249, %v349
  %v351 = vsub.f32 1.0, %v350
  %v352 = vmul.f32 %v349, %v351
  %v353 = vadd.f32 %v349, %v352
  %vm354 = vweird.f32 %v249
  %vm355 = vweird.f32 %v349
  %vm356 = vmor %vm354, %vm355
  %v357 = vsel %vm356, %v349, %v353
  %v358 = vand.u32 2147483647, %v249
  %vm359 = vcmp.eq.f32.partialorder %v358, 8.507059e+37
  %v360 = vand.u32 %v249, 2147483648
  %v361 = vor.u32 1.1754944e-38, %v360
  %v362 = vsel %vm359, %v361, %v357
  %v363 = vmul.f32 1.0, %v362
  %v364 = vrcp.pop %v250
  %v365 = vmul.f32 %v250, %v364
  %v366 = vsub.f32 1.0, %v365
  %v367 = vmul.f32 %v364, %v366
  %v368 = vadd.f32 %v364, %v367
  %vm369 = vweird.f32 %v250
  %vm370 = vweird.f32 %v364
  %vm371 = vmor %vm369, %vm370
  %v372 = vsel %vm371, %v364, %v368
  %v373 = vand.u32 2147483647, %v250
  %vm374 = vcmp.eq.f32.partialorder %v373, 8.507059e+37
  %v375 = vand.u32 %v250, 2147483648
  %v376 = vor.u32 1.1754944e-38, %v375
  %v377 = vsel %vm374, %v376, %v372
  %v378 = vmul.f32 1.0, %v377
  %v379 = vrcp.pop %v251
  %v380 = vmul.f32 %v251, %v379
  %v381 = vsub.f32 1.0, %v380
  %v382 = vmul.f32 %v379, %v381
  %v383 = vadd.f32 %v379, %v382
  %vm384 = vweird.f32 %v251
  %vm385 = vweird.f32 %v379
  %vm386 = vmor %vm384, %vm385
  %v387 = vsel %vm386, %v379, %v383
  %v388 = vand.u32 2147483647, %v251
  %vm389 = vcmp.eq.f32.partialorder %v388, 8.507059e+37
  %v390 = vand.u32 %v251, 2147483648
  %v391 = vor.u32 1.1754944e-38, %v390
  %v392 = vsel %vm389, %v391, %v387
  %v393 = vmul.f32 1.0, %v392
  %v394 = vrcp.pop %v252
  %v395 = vmul.f32 %v252, %v394
  %v396 = vsub.f32 1.0, %v395
  %v397 = vmul.f32 %v394, %v396
  %v398 = vadd.f32 %v394, %v397
  %vm399 = vweird.f32 %v252
  %vm400 = vweird.f32 %v394
  %vm401 = vmor %vm399, %vm400
  %v402 = vsel %vm401, %v394, %v398
  %v403 = vand.u32 2147483647, %v252
  %vm404 = vcmp.eq.f32.partialorder %v403, 8.507059e+37
  %v405 = vand.u32 %v252, 2147483648
  %v406 = vor.u32 1.1754944e-38, %v405
  %v407 = vsel %vm404, %v406, %v402
  %v408 = vmul.f32 1.0, %v407
  %v409 = vrcp.pop %v253
  %v410 = vmul.f32 %v253, %v409
  %v411 = vsub.f32 1.0, %v410
  %v412 = vmul.f32 %v409, %v411
  %v413 = vadd.f32 %v409, %v412
  %vm414 = vweird.f32 %v253
  %vm415 = vweird.f32 %v409
  %vm416 = vmor %vm414, %vm415
  %v417 = vsel %vm416, %v409, %v413
  %v418 = vand.u32 2147483647, %v253
  %vm419 = vcmp.eq.f32.partialorder %v418, 8.507059e+37
  %v420 = vand.u32 %v253, 2147483648
  %v421 = vor.u32 1.1754944e-38, %v420
  %v422 = vsel %vm419, %v421, %v417
  %v423 = vmul.f32 1.0, %v422
  %v424 = vrcp.pop %v254
  %v425 = vmul.f32 %v254, %v424
  %v426 = vsub.f32 1.0, %v425
  %v427 = vmul.f32 %v424, %v426
  %v428 = vadd.f32 %v424, %v427
  %vm429 = vweird.f32 %v254
  %vm430 = vweird.f32 %v424
  %vm431 = vmor %vm429, %vm430
  %v432 = vsel %vm431, %v424, %v428
  %v433 = vand.u32 2147483647, %v254
  %vm434 = vcmp.eq.f32.partialorder %v433, 8.507059e+37
  %v435 = vand.u32 %v254, 2147483648
  %v436 = vor.u32 1.1754944e-38, %v435
  %v437 = vsel %vm434, %v436, %v432
  %v438 = vmul.f32 1.0, %v437
  %v439 = vrcp.pop %v255
  %v440 = vmul.f32 %v255, %v439
  %v441 = vsub.f32 1.0, %v440
  %v442 = vmul.f32 %v439, %v441
  %v443 = vadd.f32 %v439, %v442
  %vm444 = vweird.f32 %v255
  %vm445 = vweird.f32 %v439
  %vm446 = vmor %vm444, %vm445
  %v447 = vsel %vm446, %v439, %v443
  %v448 = vand.u32 2147483647, %v255
  %vm449 = vcmp.eq.f32.partialorder %v448, 8.507059e+37
  %v450 = vand.u32 %v255, 2147483648
  %v451 = vor.u32 1.1754944e-38, %v450
  %v452 = vsel %vm449, %v451, %v447
  %v453 = vmul.f32 1.0, %v452
  %v454 = vrcp.pop %v256
  %v455 = vmul.f32 %v256, %v454
  %v456 = vsub.f32 1.0, %v455
  %v457 = vmul.f32 %v454, %v456
  %v458 = vadd.f32 %v454, %v457
  %vm459 = vweird.f32 %v256
  %vm460 = vweird.f32 %v454
  %vm461 = vmor %vm459, %vm460
  %v462 = vsel %vm461, %v454, %v458
  %v463 = vand.u32 2147483647, %v256
  %vm464 = vcmp.eq.f32.partialorder %v463, 8.507059e+37
  %v465 = vand.u32 %v256, 2147483648
  %v466 = vor.u32 1.1754944e-38, %v465
  %v467 = vsel %vm464, %v466, %v462
  %v468 = vmul.f32 1.0, %v467
  %v469 = vrcp.pop %v257
  %v470 = vmul.f32 %v257, %v469
  %v471 = vsub.f32 1.0, %v470
  %v472 = vmul.f32 %v469, %v471
  %v473 = vadd.f32 %v469, %v472
  %vm474 = vweird.f32 %v257
  %vm475 = vweird.f32 %v469
  %vm476 = vmor %vm474, %vm475
  %v477 = vsel %vm476, %v469, %v473
  %v478 = vand.u32 2147483647, %v257
  %vm479 = vcmp.eq.f32.partialorder %v478, 8.507059e+37
  %v480 = vand.u32 %v257, 2147483648
  %v481 = vor.u32 1.1754944e-38, %v480
  %v482 = vsel %vm479, %v481, %v477
  %v483 = vmul.f32 1.0, %v482
  %v484 = vrcp.pop %v258
  %v485 = vmul.f32 %v258, %v484
  %v486 = vsub.f32 1.0, %v485
  %v487 = vmul.f32 %v484, %v486
  %v488 = vadd.f32 %v484, %v487
  %vm489 = vweird.f32 %v258
  %vm490 = vweird.f32 %v484
  %vm491 = vmor %vm489, %vm490
  %v492 = vsel %vm491, %v484, %v488
  %v493 = vand.u32 2147483647, %v258
  %vm494 = vcmp.eq.f32.partialorder %v493, 8.507059e+37
  %v495 = vand.u32 %v258, 2147483648
  %v496 = vor.u32 1.1754944e-38, %v495
  %v497 = vsel %vm494, %v496, %v492
  %v498 = vmul.f32 1.0, %v497
  %v499 = vmul.f32 %v156, %v273
  %v500 = vmul.f32 %v158, %v288
  %v501 = vmul.f32 %v161, %v303
  %v502 = vmul.f32 %v163, %v318
  %v503 = vmul.f32 %v166, %v333
  %v504 = vmul.f32 %v168, %v348
  %v505 = vmul.f32 %v171, %v363
  %v506 = vmul.f32 %v173, %v378
  %v507 = vmul.f32 %v176, %v393
  %v508 = vmul.f32 %v178, %v408
  %v509 = vmul.f32 %v181, %v423
  %v510 = vmul.f32 %v183, %v438
  %v511 = vmul.f32 %v186, %v453
  %v512 = vmul.f32 %v188, %v468
  %v513 = vmul.f32 %v191, %v483
  %v514 = vmul.f32 %v193, %v498
  %515 = vst [vmem:[%s3] sm:$0xff] %v499
  %516 = vst [vmem:[%s3 + $0x8] sm:$0xff] %v500
  %517 = vst [vmem:[%s3 + $0x10] sm:$0xff] %v501
  %518 = vst [vmem:[%s3 + $0x18] sm:$0xff] %v502
  %519 = vst [vmem:[%s3 + $0x20] sm:$0xff] %v503
  %520 = vst [vmem:[%s3 + $0x28] sm:$0xff] %v504
  %521 = vst [vmem:[%s3 + $0x30] sm:$0xff] %v505
  %522 = vst [vmem:[%s3 + $0x38] sm:$0xff] %v506
  %523 = vst [vmem:[%s3 + $0x40] sm:$0xff] %v507
  %524 = vst [vmem:[%s3 + $0x48] sm:$0xff] %v508
  %525 = vst [vmem:[%s3 + $0x50] sm:$0xff] %v509
  %526 = vst [vmem:[%s3 + $0x58] sm:$0xff] %v510
  %527 = vst [vmem:[%s3 + $0x60] sm:$0xff] %v511
  %528 = vst [vmem:[%s3 + $0x68] sm:$0xff] %v512
  %529 = vst [vmem:[%s3 + $0x70] sm:$0xff] %v513
  %530 = vst [vmem:[%s3 + $0x78] sm:$0xff] %v514
  // Predicated region
  $region14: #{custom_effnet_forward.7} parent=0 // pred_check
    _
  $region15: #{custom_effnet_forward.7} parent=0 // pred_check_branch
    %532 = sbr.rel (0) target = $region17
  $region16: #{custom_effnet_forward.7} parent=0 // pred_region
    _
  $region17: #{custom_effnet_forward.7} parent=0 // pred_fallthru
    _
  // Predicated region
  $region18: #{custom_effnet_forward.7} parent=0 // pred_check
    _
  $region19: #{custom_effnet_forward.7} parent=0 // pred_check_branch
    %534 = sbr.rel (0) target = $region21
  $region20: #{custom_effnet_forward.7} parent=0 // pred_region
    _
  $region21: #{custom_effnet_forward.7} parent=0 // pred_fallthru
    _

// kernel: custom_effnet_forward.6
$region0: #{custom_effnet_forward.6}
  #allocation0 [shape = 'u32[]', space=smem, size = 0x4, offset = 0x4, fixed_abs, tag = 'smem constant byte address 0x4 - core index']
  #allocation1 [shape = 'u32[72,128]{1,0:T(1,128)}', space=vmem, size = 0x9000, scoped, tag = 'internal scratch']
  %s0 = inlined_call_operand.vmem [shape: bf16[2,100,128], index: 0, kind: input, shape index: {}]
  %s1 = inlined_call_operand.vmem [shape: bf16[9,128,128], index: 1, kind: input, shape index: {}]
  %s2 = inlined_call_operand.vmem [shape: f32[1,128], index: 2, kind: input, shape index: {}]
  %s3 = inlined_call_operand.vmem [shape: bf16[128,128], index: 3, kind: input, shape index: {}]
  %s4 = inlined_call_operand.vmem [shape: f32[1,128], index: 4, kind: input, shape index: {}]
  %s5 = inlined_call_operand.vmem [shape: bf16[2,78,128], index: 5, kind: output, shape index: {}]
  %s6 = sld [smem:[#allocation0]]
  $region53: #{custom_effnet_forward.6} parent=0
    _
  %s8 = ssub.s32 1, %s6
  %s9 = scalar_select 0, %s8, %s6
  loop: start=0, step=1, limit=4
  $region2: #{custom_effnet_forward.6} parent=0 // loop_pre_header
    _
  $region3: #{custom_effnet_forward.6} parent=0 // loop_header
    %s11 = sphi 0, %s15
    %p12 = scmp.ge.s32.totalorder %s11, 4
    %s21 = sphi 0, %s23
    %s24 = sphi 0, %s21
    %s25 = sphi 0, %s24
    %s41 = sphi 0, %s25
    %s45 = sphi 0, %s45
    %s47 = sphi 0, %s45
    %s48 = sphi 0, %s47
    %s62 = sphi 0, %s48
    %s66 = sphi 0, %s66
    %s68 = sphi 0, %s66
    %s69 = sphi 0, %s68
    %s83 = sphi 0, %s69
    %s87 = sphi 0, %s87
    %s89 = sphi 0, %s87
    %s90 = sphi 0, %s89
    %s104 = sphi 0, %s90
    %s108 = sphi 0, %s108
    %s110 = sphi 0, %s108
    %s111 = sphi 0, %s110
    %s125 = sphi 0, %s111
    %s131 = sphi 0, %s133
    %s134 = sphi 0, %s131
    %s135 = sphi 0, %s134
    %s151 = sphi 0, %s135
  $region4: #{custom_effnet_forward.6} parent=0 // loop_header_branch
    %14 = sbr.rel (%p12) target = $region8
  $region5: #{custom_effnet_forward.6} parent=0 // loop_body
    %s16 = ssub.s32 %s11, 1
    %s17 = ssub.s32 %s11, 2
    %s18 = sadd.s32 %s11, 1
    %s19 = ssub.s32 %s11, %s18
    %p20 = scmp.eq.s32.totalorder %s19, 0
    %s22 = sadd.s32 %s21, 1
    %s23 = scalar_select %p20, %s21, %s22
    %p26 = pneg %p20
    %p27 = scmp.eq.s32.totalorder %s11, 1
    %p28 = por %p26, %p27
    %p29 = scmp.ne.s32.totalorder %s21, %s24
    %p30 = scmp.eq.s32.totalorder %s11, 0
    %p31 = por %p29, %p30
    %p32 = scmp.ne.s32.totalorder %s21, %s24
    %p33 = scmp.eq.s32.totalorder %s16, 1
    %p34 = por %p32, %p33
    %p35 = scmp.ne.s32.totalorder %s24, %s25
    %p36 = scmp.eq.s32.totalorder %s16, 0
    %p37 = por %p35, %p36
    %p38 = scmp.ne.s32.totalorder %s24, %s25
    %p39 = scmp.eq.s32.totalorder %s17, 1
    %p40 = por %p38, %p39
    %p42 = scmp.ne.s32.totalorder %s25, %s41
    %p43 = scmp.eq.s32.totalorder %s17, 0
    %p44 = por %p42, %p43
    %s46 = sadd.s32 %s45, 1
    %p49 = scmp.eq.s32.totalorder %s11, 1
    %p50 = scmp.ne.s32.totalorder %s45, %s47
    %p51 = scmp.eq.s32.totalorder %s11, 0
    %p52 = por %p50, %p51
    %p53 = scmp.ne.s32.totalorder %s45, %s47
    %p54 = scmp.eq.s32.totalorder %s16, 1
    %p55 = por %p53, %p54
    %p56 = scmp.ne.s32.totalorder %s47, %s48
    %p57 = scmp.eq.s32.totalorder %s16, 0
    %p58 = por %p56, %p57
    %p59 = scmp.ne.s32.totalorder %s47, %s48
    %p60 = scmp.eq.s32.totalorder %s17, 1
    %p61 = por %p59, %p60
    %p63 = scmp.ne.s32.totalorder %s48, %s62
    %p64 = scmp.eq.s32.totalorder %s17, 0
    %p65 = por %p63, %p64
    %s67 = sadd.s32 %s66, 1
    %p70 = scmp.eq.s32.totalorder %s11, 1
    %p71 = scmp.ne.s32.totalorder %s66, %s68
    %p72 = scmp.eq.s32.totalorder %s11, 0
    %p73 = por %p71, %p72
    %p74 = scmp.ne.s32.totalorder %s66, %s68
    %p75 = scmp.eq.s32.totalorder %s16, 1
    %p76 = por %p74, %p75
    %p77 = scmp.ne.s32.totalorder %s68, %s69
    %p78 = scmp.eq.s32.totalorder %s16, 0
    %p79 = por %p77, %p78
    %p80 = scmp.ne.s32.totalorder %s68, %s69
    %p81 = scmp.eq.s32.totalorder %s17, 1
    %p82 = por %p80, %p81
    %p84 = scmp.ne.s32.totalorder %s69, %s83
    %p85 = scmp.eq.s32.totalorder %s17, 0
    %p86 = por %p84, %p85
    %s88 = sadd.s32 %s87, 1
    %p91 = scmp.eq.s32.totalorder %s11, 1
    %p92 = scmp.ne.s32.totalorder %s87, %s89
    %p93 = scmp.eq.s32.totalorder %s11, 0
    %p94 = por %p92, %p93
    %p95 = scmp.ne.s32.totalorder %s87, %s89
    %p96 = scmp.eq.s32.totalorder %s16, 1
    %p97 = por %p95, %p96
    %p98 = scmp.ne.s32.totalorder %s89, %s90
    %p99 = scmp.eq.s32.totalorder %s16, 0
    %p100 = por %p98, %p99
    %p101 = scmp.ne.s32.totalorder %s89, %s90
    %p102 = scmp.eq.s32.totalorder %s17, 1
    %p103 = por %p101, %p102
    %p105 = scmp.ne.s32.totalorder %s90, %s104
    %p106 = scmp.eq.s32.totalorder %s17, 0
    %p107 = por %p105, %p106
    %s109 = sadd.s32 %s108, 1
    %p112 = scmp.eq.s32.totalorder %s11, 1
    %p113 = scmp.ne.s32.totalorder %s108, %s110
    %p114 = scmp.eq.s32.totalorder %s11, 0
    %p115 = por %p113, %p114
    %p116 = scmp.ne.s32.totalorder %s108, %s110
    %p117 = scmp.eq.s32.totalorder %s16, 1
    %p118 = por %p116, %p117
    %p119 = scmp.ne.s32.totalorder %s110, %s111
    %p120 = scmp.eq.s32.totalorder %s16, 0
    %p121 = por %p119, %p120
    %p122 = scmp.ne.s32.totalorder %s110, %s111
    %p123 = scmp.eq.s32.totalorder %s17, 1
    %p124 = por %p122, %p123
    %p126 = scmp.ne.s32.totalorder %s111, %s125
    %p127 = scmp.eq.s32.totalorder %s17, 0
    %p128 = por %p126, %p127
    %s129 = ssub.s32 %s11, %s18
    %p130 = scmp.eq.s32.totalorder %s129, 0
    %s132 = sadd.s32 %s131, 1
    %s133 = scalar_select %p130, %s131, %s132
    %p136 = pneg %p130
    %p137 = scmp.eq.s32.totalorder %s11, 1
    %p138 = por %p136, %p137
    %p139 = scmp.ne.s32.totalorder %s131, %s134
    %p140 = scmp.eq.s32.totalorder %s11, 0
    %p141 = por %p139, %p140
    %p142 = scmp.ne.s32.totalorder %s131, %s134
    %p143 = scmp.eq.s32.totalorder %s16, 1
    %p144 = por %p142, %p143
    %p145 = scmp.ne.s32.totalorder %s134, %s135
    %p146 = scmp.eq.s32.totalorder %s16, 0
    %p147 = por %p145, %p146
    %p148 = scmp.ne.s32.totalorder %s134, %s135
    %p149 = scmp.eq.s32.totalorder %s17, 1
    %p150 = por %p148, %p149
    %p152 = scmp.ne.s32.totalorder %s135, %s151
    %p153 = scmp.eq.s32.totalorder %s17, 0
    %p154 = por %p152, %p153
    %p155 = scmp.le.s32.totalorder 1, %s11
    %p156 = scmp.lt.s32.totalorder %s11, 3
    %p157 = pnand %p155, %p156
    %p158 = pneg %p157
    // Predicated region
    $region9: #{custom_effnet_forward.6} parent=5 // pred_check
      _
    $region10: #{custom_effnet_forward.6} parent=5 // pred_check_branch
      %160 = sbr.rel (%p157) target = $region12
    $region11: #{custom_effnet_forward.6} parent=5 // pred_region
      %s161 = ssub.s32 %s11, 1
      // Predicated region
      $region13: #{custom_effnet_forward.6} parent=11 // pred_check
        %p162 = pneg %p58
      $region14: #{custom_effnet_forward.6} parent=11 // pred_check_branch
        %164 = sbr.rel (%p162) target = $region16
      $region15: #{custom_effnet_forward.6} parent=11 // pred_region
        _
      $region16: #{custom_effnet_forward.6} parent=11 // pred_fallthru
        _
      // Predicated region
      $region17: #{custom_effnet_forward.6} parent=11 // pred_check
        %p165 = pneg %p79
      $region18: #{custom_effnet_forward.6} parent=11 // pred_check_branch
        %167 = sbr.rel (%p165) target = $region20
      $region19: #{custom_effnet_forward.6} parent=11 // pred_region
        _
      $region20: #{custom_effnet_forward.6} parent=11 // pred_fallthru
        _
      // Predicated region
      $region21: #{custom_effnet_forward.6} parent=11 // pred_check
        %p168 = pneg %p100
      $region22: #{custom_effnet_forward.6} parent=11 // pred_check_branch
        %170 = sbr.rel (%p168) target = $region24
      $region23: #{custom_effnet_forward.6} parent=11 // pred_region
        _
      $region24: #{custom_effnet_forward.6} parent=11 // pred_fallthru
        _
      // Predicated region
      $region25: #{custom_effnet_forward.6} parent=11 // pred_check
        %p171 = pneg %p121
      $region26: #{custom_effnet_forward.6} parent=11 // pred_check_branch
        %173 = sbr.rel (%p171) target = $region28
      $region27: #{custom_effnet_forward.6} parent=11 // pred_region
        _
      $region28: #{custom_effnet_forward.6} parent=11 // pred_fallthru
        _
    $region12: #{custom_effnet_forward.6} parent=5 // pred_fallthru
      _
    %p174 = scmp.lt.s32.totalorder %s11, 2
    // Predicated region
    $region29: #{custom_effnet_forward.6} parent=5 // pred_check
      %p175 = pneg %p174
    $region30: #{custom_effnet_forward.6} parent=5 // pred_check_branch
      %177 = sbr.rel (%p175) target = $region32
    $region31: #{custom_effnet_forward.6} parent=5 // pred_region
      // Predicated region
      $region33: #{custom_effnet_forward.6} parent=31 // pred_check
        %p178 = pneg %p31
      $region34: #{custom_effnet_forward.6} parent=31 // pred_check_branch
        %180 = sbr.rel (%p178) target = $region36
      $region35: #{custom_effnet_forward.6} parent=31 // pred_region
        %p181 = scmp.lt.s32.totalorder %s11, 1
        %s182 = scalar_select %p181, %s11, 1
        %s183 = smul.addr %s182, 13
        %s184 = smul.addr %s183, 4
        %s185 = scalar_lea.vmem %s0, %s184
      $region36: #{custom_effnet_forward.6} parent=31 // pred_fallthru
        _
    $region32: #{custom_effnet_forward.6} parent=5 // pred_fallthru
      _
    %p186 = scmp.le.s32.totalorder 1, %s11
    %p187 = scmp.lt.s32.totalorder %s11, 3
    %p188 = pnand %p186, %p187
    %p189 = pneg %p188
    // Predicated region
    $region37: #{custom_effnet_forward.6} parent=5 // pred_check
      _
    $region38: #{custom_effnet_forward.6} parent=5 // pred_check_branch
      %191 = sbr.rel (%p188) target = $region40
    $region39: #{custom_effnet_forward.6} parent=5 // pred_region
      %s192 = ssub.s32 %s11, 1
      %p193 = scmp.lt.s32.totalorder %s16, 1
      %s194 = scalar_select %p193, %s16, 1
      %s195 = smul.addr %s194, 13
      %s196 = smul.addr %s195, 4
      %s197 = scalar_lea.vmem %s0, %s196
      %p198 = pneg %p37
      %p199 = pneg %p34
      %p200 = pneg %p58
      %p201 = pneg %p55
      %p202 = pneg %p79
      %p203 = pneg %p76
      %p204 = pneg %p100
      %p205 = pneg %p97
      %p206 = pneg %p121
      %p207 = pneg %p118
      %p208 = pneg %p147
      %p209 = pneg %p144
      %p210 = scmp.lt.s32.totalorder %s16, 1
      %s211 = scalar_select %p210, %s16, 1
      %s212 = smul.addr %s211, 10
      %s213 = smul.addr %s212, 4
      %s214 = scalar_lea.vmem %s5, %s213
      %p215 = scmp.lt.s32.totalorder %s16, 1
      %s216 = scalar_select %p215, %s16, 1
      %s217 = smul.addr %s216, 13
      %s218 = smul.addr %s217, 4
      %s219 = scalar_lea.vmem %s0, %s218
      %p220 = scmp.lt.s32.totalorder %s16, 1
      %s221 = scalar_select %p220, %s16, 1
      %s222 = smul.addr %s221, 10
      %s223 = smul.addr %s222, 4
      %s224 = scalar_lea.vmem %s5, %s223
      %v225 = vld [vmem:[%s219] sm:$0xf]
      %v226 = vld [vmem:[%s219 + $0x4] sm:$0xf]
      %v227 = vld [vmem:[%s219 + $0x8] sm:$0xf]
      %v228 = vld [vmem:[%s219 + $0xc] sm:$0xf]
      %v229 = vld [vmem:[%s219 + $0x10] sm:$0xf]
      %v230 = vld [vmem:[%s219 + $0x14] sm:$0xf]
      %v231 = vld [vmem:[%s219 + $0x18] sm:$0xf]
      %v232 = vld [vmem:[%s219 + $0x1c] sm:$0xf]
      %v233 = vld [vmem:[%s219 + $0x20] sm:$0xf]
      %v234 = vld [vmem:[%s219 + $0x24] sm:$0xf]
      %v235 = vld [vmem:[%s219 + $0x28] sm:$0xf]
      %v236 = vld [vmem:[%s219 + $0x2c] sm:$0xf]
      %v237 = vld [vmem:[%s219 + $0x30] sm:$0x3]
      %v238 = vld [vmem:[%s1] sm:$0xf]
      %v239 = vld [vmem:[%s1 + $0x4] sm:$0xf]
      %v240 = vld [vmem:[%s1 + $0x8] sm:$0xf]
      %v241 = vld [vmem:[%s1 + $0xc] sm:$0xf]
      %v242 = vld [vmem:[%s1 + $0x10] sm:$0xf]
      %v243 = vld [vmem:[%s1 + $0x14] sm:$0xf]
      %v244 = vld [vmem:[%s1 + $0x18] sm:$0xf]
      %v245 = vld [vmem:[%s1 + $0x1c] sm:$0xf]
      %v246 = vld [vmem:[%s1 + $0x20] sm:$0xf]
      %v247 = vld [vmem:[%s1 + $0x24] sm:$0xf]
      %v248 = vld [vmem:[%s1 + $0x28] sm:$0xf]
      %v249 = vld [vmem:[%s1 + $0x2c] sm:$0xf]
      %v250 = vld [vmem:[%s1 + $0x30] sm:$0xf]
      %v251 = vld [vmem:[%s1 + $0x34] sm:$0xf]
      %v252 = vld [vmem:[%s1 + $0x38] sm:$0xf]
      %v253 = vld [vmem:[%s1 + $0x3c] sm:$0xf]
      %s254 = scalar_lea.vmem %s1, 64
      %v255 = vld [vmem:[%s254] sm:$0xf]
      %v256 = vld [vmem:[%s254 + $0x4] sm:$0xf]
      %v257 = vld [vmem:[%s254 + $0x8] sm:$0xf]
      %v258 = vld [vmem:[%s254 + $0xc] sm:$0xf]
      %v259 = vld [vmem:[%s254 + $0x10] sm:$0xf]
      %v260 = vld [vmem:[%s254 + $0x14] sm:$0xf]
      %v261 = vld [vmem:[%s254 + $0x18] sm:$0xf]
      %v262 = vld [vmem:[%s254 + $0x1c] sm:$0xf]
      %v263 = vld [vmem:[%s254 + $0x20] sm:$0xf]
      %v264 = vld [vmem:[%s254 + $0x24] sm:$0xf]
      %v265 = vld [vmem:[%s254 + $0x28] sm:$0xf]
      %v266 = vld [vmem:[%s254 + $0x2c] sm:$0xf]
      %v267 = vld [vmem:[%s254 + $0x30] sm:$0xf]
      %v268 = vld [vmem:[%s254 + $0x34] sm:$0xf]
      %v269 = vld [vmem:[%s254 + $0x38] sm:$0xf]
      %v270 = vld [vmem:[%s254 + $0x3c] sm:$0xf]
      %v281 = vunpack.c.l.b16 %v225
      %v282 = vunpack.c.l.b16 %v226
      %v283 = vunpack.c.l.b16 %v227
      %v284 = vunpack.c.l.b16 %v228
      %v285 = vunpack.c.l.b16 %v229
      %v286 = vunpack.c.l.b16 %v230
      %v287 = vunpack.c.l.b16 %v231
      %v288 = vunpack.c.l.b16 %v232
      %v289 = vunpack.c.l.b16 %v233
      %v290 = vunpack.c.l.b16 %v234
      %v291 = vpack.c.b16 %v282, %v281
      %v292 = vpack.c.b16 %v284, %v283
      %v293 = vpack.c.b16 %v286, %v285
      %v294 = vpack.c.b16 %v288, %v287
      %v295 = vpack.c.b16 %v290, %v289
      %vm296 = vsmask.f32 7424
      %v298 = vshrl.u32 %v291, 16
      %v300 = vshll.u32 %v291, 16
      %v302 = vrot.slane %v300, 1
      %v303 = vor.u32 %v298, %v302
      %v305 = vshll.u32 %v292, 16
      %v307 = vrot.slane %v305, 1
      %v308 = vsel %vm296, %v303, %v307
      %v309 = vshrl.u32 %v292, 16
      %v311 = vor.u32 %v309, %v307
      %v313 = vshll.u32 %v293, 16
      %v315 = vrot.slane %v313, 1
      %v316 = vsel %vm296, %v311, %v315
      %v317 = vshrl.u32 %v293, 16
      %v319 = vor.u32 %v317, %v315
      %v321 = vshll.u32 %v294, 16
      %v323 = vrot.slane %v321, 1
      %v324 = vsel %vm296, %v319, %v323
      %v325 = vshrl.u32 %v294, 16
      %v327 = vor.u32 %v325, %v323
      %v329 = vshll.u32 %v295, 16
      %v331 = vrot.slane %v329, 1
      %v332 = vsel %vm296, %v327, %v331
      %v333 = vshrl.u32 %v295, 16
      %v335 = vor.u32 %v333, %v331
      %v357 = vunpack.c.l.b16 %v255
      %v358 = vunpack.c.l.b16 %v256
      %v359 = vunpack.c.l.b16 %v257
      %v360 = vunpack.c.l.b16 %v258
      %v361 = vunpack.c.l.b16 %v259
      %v362 = vunpack.c.l.b16 %v260
      %v363 = vunpack.c.l.b16 %v261
      %v364 = vunpack.c.l.b16 %v262
      %v365 = vunpack.c.l.b16 %v263
      %v366 = vunpack.c.l.b16 %v264
      %v367 = vunpack.c.l.b16 %v265
      %v368 = vunpack.c.l.b16 %v266
      %v369 = vunpack.c.l.b16 %v267
      %v370 = vunpack.c.l.b16 %v268
      %v371 = vunpack.c.l.b16 %v269
      %v372 = vunpack.c.l.b16 %v270
      %v373 = vpack.c.b16 %v358, %v357
      %v374 = vpack.c.b16 %v360, %v359
      %v375 = vpack.c.b16 %v362, %v361
      %v376 = vpack.c.b16 %v364, %v363
      %v377 = vpack.c.b16 %v366, %v365
      %v378 = vpack.c.b16 %v368, %v367
      %v379 = vpack.c.b16 %v370, %v369
      %v380 = vpack.c.b16 %v372, %v371
      %389 = vmatpush.bf16.msra.mxu0 %v380
      %390 = vmatpush.bf16.msra.mxu0 %v379
      %391 = vmatpush.bf16.msra.mxu0 %v378
      %392 = vmatpush.bf16.msra.mxu0 %v377
      %393 = vmatpush.bf16.msra.mxu0 %v376
      %394 = vmatpush.bf16.msra.mxu0 %v375
      %395 = vmatpush.bf16.msra.mxu0 %v374
      %396 = vmatpush.bf16.msra.mxu0 %v373
      %397 = vmatmul.bf16.gmra.mxu0 %v308
      %v398 = vpop.f32.mrf.mxu0
      %v399 = vadd.f32 0.0, %v398
      %v400 = vpop.f32.mrf.mxu0
      %v401 = vadd.f32 0.0, %v400
      %402 = vmatmul.bf16.gmra.mxu0 %v316
      %v403 = vpop.f32.mrf.mxu0
      %v404 = vadd.f32 0.0, %v403
      %v405 = vpop.f32.mrf.mxu0
      %v406 = vadd.f32 0.0, %v405
      %407 = vmatmul.bf16.gmra.mxu0 %v324
      %v408 = vpop.f32.mrf.mxu0
      %v409 = vadd.f32 0.0, %v408
      %v410 = vpop.f32.mrf.mxu0
      %v411 = vadd.f32 0.0, %v410
      %412 = vmatmul.bf16.gmra.mxu0 %v332
      %v413 = vpop.f32.mrf.mxu0
      %v414 = vadd.f32 0.0, %v413
      %v415 = vpop.f32.mrf.mxu0
      %v416 = vadd.f32 0.0, %v415
      %417 = vmatmul.bf16.gmra.mxu0 %v335
      %v418 = vpop.f32.mrf.mxu0
      %v419 = vadd.f32 0.0, %v418
      %v420 = vpop.f32.mrf.mxu0
      %v421 = vadd.f32 0.0, %v420
      %422 = vdwg.mxu0
      %v444 = vunpack.c.l.b16 %v238
      %v445 = vunpack.c.l.b16 %v239
      %v446 = vunpack.c.l.b16 %v240
      %v447 = vunpack.c.l.b16 %v241
      %v448 = vunpack.c.l.b16 %v242
      %v449 = vunpack.c.l.b16 %v243
      %v450 = vunpack.c.l.b16 %v244
      %v451 = vunpack.c.l.b16 %v245
      %v452 = vunpack.c.l.b16 %v246
      %v453 = vunpack.c.l.b16 %v247
      %v454 = vunpack.c.l.b16 %v248
      %v455 = vunpack.c.l.b16 %v249
      %v456 = vunpack.c.l.b16 %v250
      %v457 = vunpack.c.l.b16 %v251
      %v458 = vunpack.c.l.b16 %v252
      %v459 = vunpack.c.l.b16 %v253
      %v460 = vpack.c.b16 %v445, %v444
      %v461 = vpack.c.b16 %v447, %v446
      %v462 = vpack.c.b16 %v449, %v448
      %v463 = vpack.c.b16 %v451, %v450
      %v464 = vpack.c.b16 %v453, %v452
      %v465 = vpack.c.b16 %v455, %v454
      %v466 = vpack.c.b16 %v457, %v456
      %v467 = vpack.c.b16 %v459, %v458
      %476 = vmatpush.bf16.msra.mxu0 %v467
      %477 = vmatpush.bf16.msra.mxu0 %v466
      %478 = vmatpush.bf16.msra.mxu0 %v465
      %479 = vmatpush.bf16.msra.mxu0 %v464
      %480 = vmatpush.bf16.msra.mxu0 %v463
      %481 = vmatpush.bf16.msra.mxu0 %v462
      %482 = vmatpush.bf16.msra.mxu0 %v461
      %483 = vmatpush.bf16.msra.mxu0 %v460
      %484 = vmatmul.bf16.gmra.mxu0 %v291
      %v485 = vpop.f32.mrf.mxu0
      %v486 = vadd.f32 %v399, %v485
      %v487 = vpop.f32.mrf.mxu0
      %v488 = vadd.f32 %v401, %v487
      %489 = vmatmul.bf16.gmra.mxu0 %v292
      %v490 = vpop.f32.mrf.mxu0
      %v491 = vadd.f32 %v404, %v490
      %v492 = vpop.f32.mrf.mxu0
      %v493 = vadd.f32 %v406, %v492
      %494 = vmatmul.bf16.gmra.mxu0 %v293
      %v495 = vpop.f32.mrf.mxu0
      %v496 = vadd.f32 %v409, %v495
      %v497 = vpop.f32.mrf.mxu0
      %v498 = vadd.f32 %v411, %v497
      %499 = vmatmul.bf16.gmra.mxu0 %v294
      %v500 = vpop.f32.mrf.mxu0
      %v501 = vadd.f32 %v414, %v500
      %v502 = vpop.f32.mrf.mxu0
      %v503 = vadd.f32 %v416, %v502
      %504 = vmatmul.bf16.gmra.mxu0 %v295
      %v505 = vpop.f32.mrf.mxu0
      %v506 = vadd.f32 %v419, %v505
      %v507 = vpop.f32.mrf.mxu0
      %v508 = vadd.f32 %v421, %v507
      %509 = vdwg.mxu0
      %s510 = scalar_lea.vmem %s1, 128
      %v511 = vld [vmem:[%s510] sm:$0xf]
      %v512 = vld [vmem:[%s510 + $0x4] sm:$0xf]
      %v513 = vld [vmem:[%s510 + $0x8] sm:$0xf]
      %v514 = vld [vmem:[%s510 + $0xc] sm:$0xf]
      %v515 = vld [vmem:[%s510 + $0x10] sm:$0xf]
      %v516 = vld [vmem:[%s510 + $0x14] sm:$0xf]
      %v517 = vld [vmem:[%s510 + $0x18] sm:$0xf]
      %v518 = vld [vmem:[%s510 + $0x1c] sm:$0xf]
      %v519 = vld [vmem:[%s510 + $0x20] sm:$0xf]
      %v520 = vld [vmem:[%s510 + $0x24] sm:$0xf]
      %v521 = vld [vmem:[%s510 + $0x28] sm:$0xf]
      %v522 = vld [vmem:[%s510 + $0x2c] sm:$0xf]
      %v523 = vld [vmem:[%s510 + $0x30] sm:$0xf]
      %v524 = vld [vmem:[%s510 + $0x34] sm:$0xf]
      %v525 = vld [vmem:[%s510 + $0x38] sm:$0xf]
      %v526 = vld [vmem:[%s510 + $0x3c] sm:$0xf]
      %vm527 = vcmask 1046528
      %v528 = vrot.slane %v291, 1
      %v529 = vrot.slane %v292, 1
      %v530 = vsel %vm527, %v528, %v529
      %v531 = vrot.slane %v293, 1
      %v532 = vsel %vm527, %v529, %v531
      %v533 = vrot.slane %v294, 1
      %v534 = vsel %vm527, %v531, %v533
      %v535 = vrot.slane %v295, 1
      %v536 = vsel %vm527, %v533, %v535
      %v558 = vunpack.c.l.b16 %v511
      %v559 = vunpack.c.l.b16 %v512
      %v560 = vunpack.c.l.b16 %v513
      %v561 = vunpack.c.l.b16 %v514
      %v562 = vunpack.c.l.b16 %v515
      %v563 = vunpack.c.l.b16 %v516
      %v564 = vunpack.c.l.b16 %v517
      %v565 = vunpack.c.l.b16 %v518
      %v566 = vunpack.c.l.b16 %v519
      %v567 = vunpack.c.l.b16 %v520
      %v568 = vunpack.c.l.b16 %v521
      %v569 = vunpack.c.l.b16 %v522
      %v570 = vunpack.c.l.b16 %v523
      %v571 = vunpack.c.l.b16 %v524
      %v572 = vunpack.c.l.b16 %v525
      %v573 = vunpack.c.l.b16 %v526
      %v574 = vpack.c.b16 %v559, %v558
      %v575 = vpack.c.b16 %v561, %v560
      %v576 = vpack.c.b16 %v563, %v562
      %v577 = vpack.c.b16 %v565, %v564
      %v578 = vpack.c.b16 %v567, %v566
      %v579 = vpack.c.b16 %v569, %v568
      %v580 = vpack.c.b16 %v571, %v570
      %v581 = vpack.c.b16 %v573, %v572
      %590 = vmatpush.bf16.msra.mxu0 %v581
      %591 = vmatpush.bf16.msra.mxu0 %v580
      %592 = vmatpush.bf16.msra.mxu0 %v579
      %593 = vmatpush.bf16.msra.mxu0 %v578
      %594 = vmatpush.bf16.msra.mxu0 %v577
      %595 = vmatpush.bf16.msra.mxu0 %v576
      %596 = vmatpush.bf16.msra.mxu0 %v575
      %597 = vmatpush.bf16.msra.mxu0 %v574
      %598 = vmatmul.bf16.gmra.mxu0 %v530
      %v599 = vpop.f32.mrf.mxu0
      %v600 = vadd.f32 0.0, %v599
      %v601 = vpop.f32.mrf.mxu0
      %v602 = vadd.f32 0.0, %v601
      %603 = vmatmul.bf16.gmra.mxu0 %v532
      %v604 = vpop.f32.mrf.mxu0
      %v605 = vadd.f32 0.0, %v604
      %v606 = vpop.f32.mrf.mxu0
      %v607 = vadd.f32 0.0, %v606
      %608 = vmatmul.bf16.gmra.mxu0 %v534
      %v609 = vpop.f32.mrf.mxu0
      %v610 = vadd.f32 0.0, %v609
      %v611 = vpop.f32.mrf.mxu0
      %v612 = vadd.f32 0.0, %v611
      %613 = vmatmul.bf16.gmra.mxu0 %v536
      %v614 = vpop.f32.mrf.mxu0
      %v615 = vadd.f32 0.0, %v614
      %v616 = vpop.f32.mrf.mxu0
      %v617 = vadd.f32 0.0, %v616
      %618 = vmatmul.bf16.gmra.mxu0 %v535
      %v619 = vpop.f32.mrf.mxu0
      %v620 = vadd.f32 0.0, %v619
      %v621 = vpop.f32.mrf.mxu0
      %v622 = vadd.f32 0.0, %v621
      %623 = vdwg.mxu0
      %v624 = vadd.f32 %v486, %v600
      %v625 = vadd.f32 %v488, %v602
      %v626 = vadd.f32 %v491, %v605
      %v627 = vadd.f32 %v493, %v607
      %v628 = vadd.f32 %v496, %v610
      %v629 = vadd.f32 %v498, %v612
      %v630 = vadd.f32 %v501, %v615
      %v631 = vadd.f32 %v503, %v617
      %v632 = vadd.f32 %v506, %v620
      %v633 = vadd.f32 %v508, %v622
      %s634 = scalar_lea.vmem %s1, 192
      %v635 = vld [vmem:[%s634] sm:$0xf]
      %v636 = vld [vmem:[%s634 + $0x4] sm:$0xf]
      %v637 = vld [vmem:[%s634 + $0x8] sm:$0xf]
      %v638 = vld [vmem:[%s634 + $0xc] sm:$0xf]
      %v639 = vld [vmem:[%s634 + $0x10] sm:$0xf]
      %v640 = vld [vmem:[%s634 + $0x14] sm:$0xf]
      %v641 = vld [vmem:[%s634 + $0x18] sm:$0xf]
      %v642 = vld [vmem:[%s634 + $0x1c] sm:$0xf]
      %v643 = vld [vmem:[%s634 + $0x20] sm:$0xf]
      %v644 = vld [vmem:[%s634 + $0x24] sm:$0xf]
      %v645 = vld [vmem:[%s634 + $0x28] sm:$0xf]
      %v646 = vld [vmem:[%s634 + $0x2c] sm:$0xf]
      %v647 = vld [vmem:[%s634 + $0x30] sm:$0xf]
      %v648 = vld [vmem:[%s634 + $0x34] sm:$0xf]
      %v649 = vld [vmem:[%s634 + $0x38] sm:$0xf]
      %v650 = vld [vmem:[%s634 + $0x3c] sm:$0xf]
      %v652 = vunpack.c.l.b16 %v235
      %v653 = vpack.c.b16 %v283, %v282
      %v654 = vpack.c.b16 %v285, %v284
      %v655 = vpack.c.b16 %v287, %v286
      %v656 = vpack.c.b16 %v289, %v288
      %v657 = vpack.c.b16 %v652, %v290
      %v658 = vrot.slane %v653, 1
      %v659 = vrot.slane %v654, 1
      %v660 = vsel %vm527, %v658, %v659
      %v661 = vrot.slane %v655, 1
      %v662 = vsel %vm527, %v659, %v661
      %v663 = vrot.slane %v656, 1
      %v664 = vsel %vm527, %v661, %v663
      %v665 = vrot.slane %v657, 1
      %v666 = vsel %vm527, %v663, %v665
      %v688 = vunpack.c.l.b16 %v635
      %v689 = vunpack.c.l.b16 %v636
      %v690 = vunpack.c.l.b16 %v637
      %v691 = vunpack.c.l.b16 %v638
      %v692 = vunpack.c.l.b16 %v639
      %v693 = vunpack.c.l.b16 %v640
      %v694 = vunpack.c.l.b16 %v641
      %v695 = vunpack.c.l.b16 %v642
      %v696 = vunpack.c.l.b16 %v643
      %v697 = vunpack.c.l.b16 %v644
      %v698 = vunpack.c.l.b16 %v645
      %v699 = vunpack.c.l.b16 %v646
      %v700 = vunpack.c.l.b16 %v647
      %v701 = vunpack.c.l.b16 %v648
      %v702 = vunpack.c.l.b16 %v649
      %v703 = vunpack.c.l.b16 %v650
      %v704 = vpack.c.b16 %v689, %v688
      %v705 = vpack.c.b16 %v691, %v690
      %v706 = vpack.c.b16 %v693, %v692
      %v707 = vpack.c.b16 %v695, %v694
      %v708 = vpack.c.b16 %v697, %v696
      %v709 = vpack.c.b16 %v699, %v698
      %v710 = vpack.c.b16 %v701, %v700
      %v711 = vpack.c.b16 %v703, %v702
      %720 = vmatpush.bf16.msra.mxu0 %v711
      %721 = vmatpush.bf16.msra.mxu0 %v710
      %722 = vmatpush.bf16.msra.mxu0 %v709
      %723 = vmatpush.bf16.msra.mxu0 %v708
      %724 = vmatpush.bf16.msra.mxu0 %v707
      %725 = vmatpush.bf16.msra.mxu0 %v706
      %726 = vmatpush.bf16.msra.mxu0 %v705
      %727 = vmatpush.bf16.msra.mxu0 %v704
      %728 = vmatmul.bf16.gmra.mxu0 %v660
      %v729 = vpop.f32.mrf.mxu0
      %v730 = vadd.f32 0.0, %v729
      %v731 = vpop.f32.mrf.mxu0
      %v732 = vadd.f32 0.0, %v731
      %733 = vmatmul.bf16.gmra.mxu0 %v662
      %v734 = vpop.f32.mrf.mxu0
      %v735 = vadd.f32 0.0, %v734
      %v736 = vpop.f32.mrf.mxu0
      %v737 = vadd.f32 0.0, %v736
      %738 = vmatmul.bf16.gmra.mxu0 %v664
      %v739 = vpop.f32.mrf.mxu0
      %v740 = vadd.f32 0.0, %v739
      %v741 = vpop.f32.mrf.mxu0
      %v742 = vadd.f32 0.0, %v741
      %743 = vmatmul.bf16.gmra.mxu0 %v666
      %v744 = vpop.f32.mrf.mxu0
      %v745 = vadd.f32 0.0, %v744
      %v746 = vpop.f32.mrf.mxu0
      %v747 = vadd.f32 0.0, %v746
      %748 = vmatmul.bf16.gmra.mxu0 %v665
      %v749 = vpop.f32.mrf.mxu0
      %v750 = vadd.f32 0.0, %v749
      %v751 = vpop.f32.mrf.mxu0
      %v752 = vadd.f32 0.0, %v751
      %753 = vdwg.mxu0
      %v754 = vadd.f32 %v624, %v730
      %v755 = vadd.f32 %v625, %v732
      %v756 = vadd.f32 %v626, %v735
      %v757 = vadd.f32 %v627, %v737
      %v758 = vadd.f32 %v628, %v740
      %v759 = vadd.f32 %v629, %v742
      %v760 = vadd.f32 %v630, %v745
      %v761 = vadd.f32 %v631, %v747
      %v762 = vadd.f32 %v632, %v750
      %v763 = vadd.f32 %v633, %v752
      %s764 = scalar_lea.vmem %s1, 256
      %v765 = vld [vmem:[%s764] sm:$0xf]
      %v766 = vld [vmem:[%s764 + $0x4] sm:$0xf]
      %v767 = vld [vmem:[%s764 + $0x8] sm:$0xf]
      %v768 = vld [vmem:[%s764 + $0xc] sm:$0xf]
      %v769 = vld [vmem:[%s764 + $0x10] sm:$0xf]
      %v770 = vld [vmem:[%s764 + $0x14] sm:$0xf]
      %v771 = vld [vmem:[%s764 + $0x18] sm:$0xf]
      %v772 = vld [vmem:[%s764 + $0x1c] sm:$0xf]
      %v773 = vld [vmem:[%s764 + $0x20] sm:$0xf]
      %v774 = vld [vmem:[%s764 + $0x24] sm:$0xf]
      %v775 = vld [vmem:[%s764 + $0x28] sm:$0xf]
      %v776 = vld [vmem:[%s764 + $0x2c] sm:$0xf]
      %v777 = vld [vmem:[%s764 + $0x30] sm:$0xf]
      %v778 = vld [vmem:[%s764 + $0x34] sm:$0xf]
      %v779 = vld [vmem:[%s764 + $0x38] sm:$0xf]
      %v780 = vld [vmem:[%s764 + $0x3c] sm:$0xf]
      %v782 = vunpack.c.l.b16 %v236
      %v783 = vpack.c.b16 %v782, %v782
      %vm784 = vsmask.f32 6400
      %v786 = vshrl.u32 %v653, 16
      %v788 = vrot.slane %v786, 1
      %v789 = vshll.u32 %v653, 16
      %v791 = vrot.slane %v789, 2
      %v792 = vor.u32 %v788, %v791
      %v794 = vshrl.u32 %v654, 16
      %v796 = vrot.slane %v794, 1
      %v797 = vshll.u32 %v654, 16
      %v799 = vrot.slane %v797, 2
      %v800 = vor.u32 %v796, %v799
      %v801 = vsel %vm784, %v792, %v800
      %v803 = vshrl.u32 %v655, 16
      %v805 = vrot.slane %v803, 1
      %v806 = vshll.u32 %v655, 16
      %v808 = vrot.slane %v806, 2
      %v809 = vor.u32 %v805, %v808
      %v810 = vsel %vm784, %v800, %v809
      %v812 = vshrl.u32 %v656, 16
      %v814 = vrot.slane %v812, 1
      %v815 = vshll.u32 %v656, 16
      %v817 = vrot.slane %v815, 2
      %v818 = vor.u32 %v814, %v817
      %v819 = vsel %vm784, %v809, %v818
      %v821 = vshrl.u32 %v657, 16
      %v823 = vrot.slane %v821, 1
      %v824 = vshll.u32 %v657, 16
      %v826 = vrot.slane %v824, 2
      %v827 = vor.u32 %v823, %v826
      %v828 = vsel %vm784, %v818, %v827
      %v830 = vshll.u32 %v783, 16
      %v832 = vrot.slane %v830, 2
      %v833 = vsel %vm784, %v827, %v832
      %v855 = vunpack.c.l.b16 %v765
      %v856 = vunpack.c.l.b16 %v766
      %v857 = vunpack.c.l.b16 %v767
      %v858 = vunpack.c.l.b16 %v768
      %v859 = vunpack.c.l.b16 %v769
      %v860 = vunpack.c.l.b16 %v770
      %v861 = vunpack.c.l.b16 %v771
      %v862 = vunpack.c.l.b16 %v772
      %v863 = vunpack.c.l.b16 %v773
      %v864 = vunpack.c.l.b16 %v774
      %v865 = vunpack.c.l.b16 %v775
      %v866 = vunpack.c.l.b16 %v776
      %v867 = vunpack.c.l.b16 %v777
      %v868 = vunpack.c.l.b16 %v778
      %v869 = vunpack.c.l.b16 %v779
      %v870 = vunpack.c.l.b16 %v780
      %v871 = vpack.c.b16 %v856, %v855
      %v872 = vpack.c.b16 %v858, %v857
      %v873 = vpack.c.b16 %v860, %v859
      %v874 = vpack.c.b16 %v862, %v861
      %v875 = vpack.c.b16 %v864, %v863
      %v876 = vpack.c.b16 %v866, %v865
      %v877 = vpack.c.b16 %v868, %v867
      %v878 = vpack.c.b16 %v870, %v869
      %887 = vmatpush.bf16.msra.mxu0 %v878
      %888 = vmatpush.bf16.msra.mxu0 %v877
      %889 = vmatpush.bf16.msra.mxu0 %v876
      %890 = vmatpush.bf16.msra.mxu0 %v875
      %891 = vmatpush.bf16.msra.mxu0 %v874
      %892 = vmatpush.bf16.msra.mxu0 %v873
      %893 = vmatpush.bf16.msra.mxu0 %v872
      %894 = vmatpush.bf16.msra.mxu0 %v871
      %895 = vmatmul.bf16.gmra.mxu0 %v801
      %v896 = vpop.f32.mrf.mxu0
      %v897 = vadd.f32 0.0, %v896
      %v898 = vpop.f32.mrf.mxu0
      %v899 = vadd.f32 0.0, %v898
      %900 = vmatmul.bf16.gmra.mxu0 %v810
      %v901 = vpop.f32.mrf.mxu0
      %v902 = vadd.f32 0.0, %v901
      %v903 = vpop.f32.mrf.mxu0
      %v904 = vadd.f32 0.0, %v903
      %905 = vmatmul.bf16.gmra.mxu0 %v819
      %v906 = vpop.f32.mrf.mxu0
      %v907 = vadd.f32 0.0, %v906
      %v908 = vpop.f32.mrf.mxu0
      %v909 = vadd.f32 0.0, %v908
      %910 = vmatmul.bf16.gmra.mxu0 %v828
      %v911 = vpop.f32.mrf.mxu0
      %v912 = vadd.f32 0.0, %v911
      %v913 = vpop.f32.mrf.mxu0
      %v914 = vadd.f32 0.0, %v913
      %915 = vmatmul.bf16.gmra.mxu0 %v833
      %v916 = vpop.f32.mrf.mxu0
      %v917 = vadd.f32 0.0, %v916
      %v918 = vpop.f32.mrf.mxu0
      %v919 = vadd.f32 0.0, %v918
      %920 = vdwg.mxu0
      %v921 = vadd.f32 %v754, %v897
      %v922 = vadd.f32 %v755, %v899
      %v923 = vadd.f32 %v756, %v902
      %v924 = vadd.f32 %v757, %v904
      %v925 = vadd.f32 %v758, %v907
      %v926 = vadd.f32 %v759, %v909
      %v927 = vadd.f32 %v760, %v912
      %v928 = vadd.f32 %v761, %v914
      %v929 = vadd.f32 %v762, %v917
      %v930 = vadd.f32 %v763, %v919
      %s931 = scalar_lea.vmem %s1, 320
      %v932 = vld [vmem:[%s931] sm:$0xf]
      %v933 = vld [vmem:[%s931 + $0x4] sm:$0xf]
      %v934 = vld [vmem:[%s931 + $0x8] sm:$0xf]
      %v935 = vld [vmem:[%s931 + $0xc] sm:$0xf]
      %v936 = vld [vmem:[%s931 + $0x10] sm:$0xf]
      %v937 = vld [vmem:[%s931 + $0x14] sm:$0xf]
      %v938 = vld [vmem:[%s931 + $0x18] sm:$0xf]
      %v939 = vld [vmem:[%s931 + $0x1c] sm:$0xf]
      %v940 = vld [vmem:[%s931 + $0x20] sm:$0xf]
      %v941 = vld [vmem:[%s931 + $0x24] sm:$0xf]
      %v942 = vld [vmem:[%s931 + $0x28] sm:$0xf]
      %v943 = vld [vmem:[%s931 + $0x2c] sm:$0xf]
      %v944 = vld [vmem:[%s931 + $0x30] sm:$0xf]
      %v945 = vld [vmem:[%s931 + $0x34] sm:$0xf]
      %v946 = vld [vmem:[%s931 + $0x38] sm:$0xf]
      %v947 = vld [vmem:[%s931 + $0x3c] sm:$0xf]
      %vm948 = vcmask 1045504
      %v949 = vrot.slane %v653, 2
      %v950 = vrot.slane %v654, 2
      %v951 = vsel %vm948, %v949, %v950
      %v952 = vrot.slane %v655, 2
      %v953 = vsel %vm948, %v950, %v952
      %v954 = vrot.slane %v656, 2
      %v955 = vsel %vm948, %v952, %v954
      %v956 = vrot.slane %v657, 2
      %v957 = vsel %vm948, %v954, %v956
      %v958 = vrot.slane %v783, 2
      %v959 = vsel %vm948, %v956, %v958
      %v981 = vunpack.c.l.b16 %v932
      %v982 = vunpack.c.l.b16 %v933
      %v983 = vunpack.c.l.b16 %v934
      %v984 = vunpack.c.l.b16 %v935
      %v985 = vunpack.c.l.b16 %v936
      %v986 = vunpack.c.l.b16 %v937
      %v987 = vunpack.c.l.b16 %v938
      %v988 = vunpack.c.l.b16 %v939
      %v989 = vunpack.c.l.b16 %v940
      %v990 = vunpack.c.l.b16 %v941
      %v991 = vunpack.c.l.b16 %v942
      %v992 = vunpack.c.l.b16 %v943
      %v993 = vunpack.c.l.b16 %v944
      %v994 = vunpack.c.l.b16 %v945
      %v995 = vunpack.c.l.b16 %v946
      %v996 = vunpack.c.l.b16 %v947
      %v997 = vpack.c.b16 %v982, %v981
      %v998 = vpack.c.b16 %v984, %v983
      %v999 = vpack.c.b16 %v986, %v985
      %v1000 = vpack.c.b16 %v988, %v987
      %v1001 = vpack.c.b16 %v990, %v989
      %v1002 = vpack.c.b16 %v992, %v991
      %v1003 = vpack.c.b16 %v994, %v993
      %v1004 = vpack.c.b16 %v996, %v995
      %1013 = vmatpush.bf16.msra.mxu0 %v1004
      %1014 = vmatpush.bf16.msra.mxu0 %v1003
      %1015 = vmatpush.bf16.msra.mxu0 %v1002
      %1016 = vmatpush.bf16.msra.mxu0 %v1001
      %1017 = vmatpush.bf16.msra.mxu0 %v1000
      %1018 = vmatpush.bf16.msra.mxu0 %v999
      %1019 = vmatpush.bf16.msra.mxu0 %v998
      %1020 = vmatpush.bf16.msra.mxu0 %v997
      %1021 = vmatmul.bf16.gmra.mxu0 %v951
      %v1022 = vpop.f32.mrf.mxu0
      %v1023 = vadd.f32 0.0, %v1022
      %v1024 = vpop.f32.mrf.mxu0
      %v1025 = vadd.f32 0.0, %v1024
      %1026 = vmatmul.bf16.gmra.mxu0 %v953
      %v1027 = vpop.f32.mrf.mxu0
      %v1028 = vadd.f32 0.0, %v1027
      %v1029 = vpop.f32.mrf.mxu0
      %v1030 = vadd.f32 0.0, %v1029
      %1031 = vmatmul.bf16.gmra.mxu0 %v955
      %v1032 = vpop.f32.mrf.mxu0
      %v1033 = vadd.f32 0.0, %v1032
      %v1034 = vpop.f32.mrf.mxu0
      %v1035 = vadd.f32 0.0, %v1034
      %1036 = vmatmul.bf16.gmra.mxu0 %v957
      %v1037 = vpop.f32.mrf.mxu0
      %v1038 = vadd.f32 0.0, %v1037
      %v1039 = vpop.f32.mrf.mxu0
      %v1040 = vadd.f32 0.0, %v1039
      %1041 = vmatmul.bf16.gmra.mxu0 %v959
      %v1042 = vpop.f32.mrf.mxu0
      %v1043 = vadd.f32 0.0, %v1042
      %v1044 = vpop.f32.mrf.mxu0
      %v1045 = vadd.f32 0.0, %v1044
      %1046 = vdwg.mxu0
      %v1047 = vadd.f32 %v921, %v1023
      %v1048 = vadd.f32 %v922, %v1025
      %v1049 = vadd.f32 %v923, %v1028
      %v1050 = vadd.f32 %v924, %v1030
      %v1051 = vadd.f32 %v925, %v1033
      %v1052 = vadd.f32 %v926, %v1035
      %v1053 = vadd.f32 %v927, %v1038
      %v1054 = vadd.f32 %v928, %v1040
      %v1055 = vadd.f32 %v929, %v1043
      %v1056 = vadd.f32 %v930, %v1045
      %s1057 = scalar_lea.vmem %s1, 384
      %v1058 = vld [vmem:[%s1057] sm:$0xf]
      %v1059 = vld [vmem:[%s1057 + $0x4] sm:$0xf]
      %v1060 = vld [vmem:[%s1057 + $0x8] sm:$0xf]
      %v1061 = vld [vmem:[%s1057 + $0xc] sm:$0xf]
      %v1062 = vld [vmem:[%s1057 + $0x10] sm:$0xf]
      %v1063 = vld [vmem:[%s1057 + $0x14] sm:$0xf]
      %v1064 = vld [vmem:[%s1057 + $0x18] sm:$0xf]
      %v1065 = vld [vmem:[%s1057 + $0x1c] sm:$0xf]
      %v1066 = vld [vmem:[%s1057 + $0x20] sm:$0xf]
      %v1067 = vld [vmem:[%s1057 + $0x24] sm:$0xf]
      %v1068 = vld [vmem:[%s1057 + $0x28] sm:$0xf]
      %v1069 = vld [vmem:[%s1057 + $0x2c] sm:$0xf]
      %v1070 = vld [vmem:[%s1057 + $0x30] sm:$0xf]
      %v1071 = vld [vmem:[%s1057 + $0x34] sm:$0xf]
      %v1072 = vld [vmem:[%s1057 + $0x38] sm:$0xf]
      %v1073 = vld [vmem:[%s1057 + $0x3c] sm:$0xf]
      %v1075 = vunpack.c.l.b16 %v237
      %v1076 = vpack.c.b16 %v782, %v652
      %v1077 = vpack.c.b16 %v1075, %v1075
      %v1078 = vrot.slane %v292, 2
      %v1079 = vrot.slane %v293, 2
      %v1080 = vsel %vm948, %v1078, %v1079
      %v1081 = vrot.slane %v294, 2
      %v1082 = vsel %vm948, %v1079, %v1081
      %v1083 = vrot.slane %v295, 2
      %v1084 = vsel %vm948, %v1081, %v1083
      %v1085 = vrot.slane %v1076, 2
      %v1086 = vsel %vm948, %v1083, %v1085
      %v1087 = vrot.slane %v1077, 2
      %v1088 = vsel %vm948, %v1085, %v1087
      %v1110 = vunpack.c.l.b16 %v1058
      %v1111 = vunpack.c.l.b16 %v1059
      %v1112 = vunpack.c.l.b16 %v1060
      %v1113 = vunpack.c.l.b16 %v1061
      %v1114 = vunpack.c.l.b16 %v1062
      %v1115 = vunpack.c.l.b16 %v1063
      %v1116 = vunpack.c.l.b16 %v1064
      %v1117 = vunpack.c.l.b16 %v1065
      %v1118 = vunpack.c.l.b16 %v1066
      %v1119 = vunpack.c.l.b16 %v1067
      %v1120 = vunpack.c.l.b16 %v1068
      %v1121 = vunpack.c.l.b16 %v1069
      %v1122 = vunpack.c.l.b16 %v1070
      %v1123 = vunpack.c.l.b16 %v1071
      %v1124 = vunpack.c.l.b16 %v1072
      %v1125 = vunpack.c.l.b16 %v1073
      %v1126 = vpack.c.b16 %v1111, %v1110
      %v1127 = vpack.c.b16 %v1113, %v1112
      %v1128 = vpack.c.b16 %v1115, %v1114
      %v1129 = vpack.c.b16 %v1117, %v1116
      %v1130 = vpack.c.b16 %v1119, %v1118
      %v1131 = vpack.c.b16 %v1121, %v1120
      %v1132 = vpack.c.b16 %v1123, %v1122
      %v1133 = vpack.c.b16 %v1125, %v1124
      %1142 = vmatpush.bf16.msra.mxu0 %v1133
      %1143 = vmatpush.bf16.msra.mxu0 %v1132
      %1144 = vmatpush.bf16.msra.mxu0 %v1131
      %1145 = vmatpush.bf16.msra.mxu0 %v1130
      %1146 = vmatpush.bf16.msra.mxu0 %v1129
      %1147 = vmatpush.bf16.msra.mxu0 %v1128
      %1148 = vmatpush.bf16.msra.mxu0 %v1127
      %1149 = vmatpush.bf16.msra.mxu0 %v1126
      %1150 = vmatmul.bf16.gmra.mxu0 %v1080
      %v1151 = vpop.f32.mrf.mxu0
      %v1152 = vadd.f32 0.0, %v1151
      %v1153 = vpop.f32.mrf.mxu0
      %v1154 = vadd.f32 0.0, %v1153
      %1155 = vmatmul.bf16.gmra.mxu0 %v1082
      %v1156 = vpop.f32.mrf.mxu0
      %v1157 = vadd.f32 0.0, %v1156
      %v1158 = vpop.f32.mrf.mxu0
      %v1159 = vadd.f32 0.0, %v1158
      %1160 = vmatmul.bf16.gmra.mxu0 %v1084
      %v1161 = vpop.f32.mrf.mxu0
      %v1162 = vadd.f32 0.0, %v1161
      %v1163 = vpop.f32.mrf.mxu0
      %v1164 = vadd.f32 0.0, %v1163
      %1165 = vmatmul.bf16.gmra.mxu0 %v1086
      %v1166 = vpop.f32.mrf.mxu0
      %v1167 = vadd.f32 0.0, %v1166
      %v1168 = vpop.f32.mrf.mxu0
      %v1169 = vadd.f32 0.0, %v1168
      %1170 = vmatmul.bf16.gmra.mxu0 %v1088
      %v1171 = vpop.f32.mrf.mxu0
      %v1172 = vadd.f32 0.0, %v1171
      %v1173 = vpop.f32.mrf.mxu0
      %v1174 = vadd.f32 0.0, %v1173
      %1175 = vdwg.mxu0
      %v1176 = vadd.f32 %v1047, %v1152
      %v1177 = vadd.f32 %v1048, %v1154
      %v1178 = vadd.f32 %v1049, %v1157
      %v1179 = vadd.f32 %v1050, %v1159
      %v1180 = vadd.f32 %v1051, %v1162
      %v1181 = vadd.f32 %v1052, %v1164
      %v1182 = vadd.f32 %v1053, %v1167
      %v1183 = vadd.f32 %v1054, %v1169
      %v1184 = vadd.f32 %v1055, %v1172
      %v1185 = vadd.f32 %v1056, %v1174
      %s1186 = scalar_lea.vmem %s1, 448
      %v1187 = vld [vmem:[%s1186] sm:$0xf]
      %v1188 = vld [vmem:[%s1186 + $0x4] sm:$0xf]
      %v1189 = vld [vmem:[%s1186 + $0x8] sm:$0xf]
      %v1190 = vld [vmem:[%s1186 + $0xc] sm:$0xf]
      %v1191 = vld [vmem:[%s1186 + $0x10] sm:$0xf]
      %v1192 = vld [vmem:[%s1186 + $0x14] sm:$0xf]
      %v1193 = vld [vmem:[%s1186 + $0x18] sm:$0xf]
      %v1194 = vld [vmem:[%s1186 + $0x1c] sm:$0xf]
      %v1195 = vld [vmem:[%s1186 + $0x20] sm:$0xf]
      %v1196 = vld [vmem:[%s1186 + $0x24] sm:$0xf]
      %v1197 = vld [vmem:[%s1186 + $0x28] sm:$0xf]
      %v1198 = vld [vmem:[%s1186 + $0x2c] sm:$0xf]
      %v1199 = vld [vmem:[%s1186 + $0x30] sm:$0xf]
      %v1200 = vld [vmem:[%s1186 + $0x34] sm:$0xf]
      %v1201 = vld [vmem:[%s1186 + $0x38] sm:$0xf]
      %v1202 = vld [vmem:[%s1186 + $0x3c] sm:$0xf]
      %vm1203 = vsmask.f32 5376
      %v1204 = vrot.slane %v309, 2
      %v1205 = vrot.slane %v305, 3
      %v1206 = vor.u32 %v1204, %v1205
      %v1207 = vrot.slane %v317, 2
      %v1208 = vrot.slane %v313, 3
      %v1209 = vor.u32 %v1207, %v1208
      %v1210 = vsel %vm1203, %v1206, %v1209
      %v1211 = vrot.slane %v325, 2
      %v1212 = vrot.slane %v321, 3
      %v1213 = vor.u32 %v1211, %v1212
      %v1214 = vsel %vm1203, %v1209, %v1213
      %v1215 = vrot.slane %v333, 2
      %v1216 = vrot.slane %v329, 3
      %v1217 = vor.u32 %v1215, %v1216
      %v1218 = vsel %vm1203, %v1213, %v1217
      %v1220 = vshrl.u32 %v1076, 16
      %v1222 = vrot.slane %v1220, 2
      %v1223 = vshll.u32 %v1076, 16
      %v1225 = vrot.slane %v1223, 3
      %v1226 = vor.u32 %v1222, %v1225
      %v1227 = vsel %vm1203, %v1217, %v1226
      %v1229 = vshrl.u32 %v1077, 16
      %v1231 = vrot.slane %v1229, 2
      %v1232 = vshll.u32 %v1077, 16
      %v1234 = vrot.slane %v1232, 3
      %v1235 = vor.u32 %v1231, %v1234
      %v1236 = vsel %vm1203, %v1226, %v1235
      %v1258 = vunpack.c.l.b16 %v1187
      %v1259 = vunpack.c.l.b16 %v1188
      %v1260 = vunpack.c.l.b16 %v1189
      %v1261 = vunpack.c.l.b16 %v1190
      %v1262 = vunpack.c.l.b16 %v1191
      %v1263 = vunpack.c.l.b16 %v1192
      %v1264 = vunpack.c.l.b16 %v1193
      %v1265 = vunpack.c.l.b16 %v1194
      %v1266 = vunpack.c.l.b16 %v1195
      %v1267 = vunpack.c.l.b16 %v1196
      %v1268 = vunpack.c.l.b16 %v1197
      %v1269 = vunpack.c.l.b16 %v1198
      %v1270 = vunpack.c.l.b16 %v1199
      %v1271 = vunpack.c.l.b16 %v1200
      %v1272 = vunpack.c.l.b16 %v1201
      %v1273 = vunpack.c.l.b16 %v1202
      %v1274 = vpack.c.b16 %v1259, %v1258
      %v1275 = vpack.c.b16 %v1261, %v1260
      %v1276 = vpack.c.b16 %v1263, %v1262
      %v1277 = vpack.c.b16 %v1265, %v1264
      %v1278 = vpack.c.b16 %v1267, %v1266
      %v1279 = vpack.c.b16 %v1269, %v1268
      %v1280 = vpack.c.b16 %v1271, %v1270
      %v1281 = vpack.c.b16 %v1273, %v1272
      %1290 = vmatpush.bf16.msra.mxu0 %v1281
      %1291 = vmatpush.bf16.msra.mxu0 %v1280
      %1292 = vmatpush.bf16.msra.mxu0 %v1279
      %1293 = vmatpush.bf16.msra.mxu0 %v1278
      %1294 = vmatpush.bf16.msra.mxu0 %v1277
      %1295 = vmatpush.bf16.msra.mxu0 %v1276
      %1296 = vmatpush.bf16.msra.mxu0 %v1275
      %1297 = vmatpush.bf16.msra.mxu0 %v1274
      %1298 = vmatmul.bf16.gmra.mxu0 %v1210
      %v1299 = vpop.f32.mrf.mxu0
      %v1300 = vadd.f32 0.0, %v1299
      %v1301 = vpop.f32.mrf.mxu0
      %v1302 = vadd.f32 0.0, %v1301
      %1303 = vmatmul.bf16.gmra.mxu0 %v1214
      %v1304 = vpop.f32.mrf.mxu0
      %v1305 = vadd.f32 0.0, %v1304
      %v1306 = vpop.f32.mrf.mxu0
      %v1307 = vadd.f32 0.0, %v1306
      %1308 = vmatmul.bf16.gmra.mxu0 %v1218
      %v1309 = vpop.f32.mrf.mxu0
      %v1310 = vadd.f32 0.0, %v1309
      %v1311 = vpop.f32.mrf.mxu0
      %v1312 = vadd.f32 0.0, %v1311
      %1313 = vmatmul.bf16.gmra.mxu0 %v1227
      %v1314 = vpop.f32.mrf.mxu0
      %v1315 = vadd.f32 0.0, %v1314
      %v1316 = vpop.f32.mrf.mxu0
      %v1317 = vadd.f32 0.0, %v1316
      %1318 = vmatmul.bf16.gmra.mxu0 %v1236
      %v1319 = vpop.f32.mrf.mxu0
      %v1320 = vadd.f32 0.0, %v1319
      %v1321 = vpop.f32.mrf.mxu0
      %v1322 = vadd.f32 0.0, %v1321
      %1323 = vdwg.mxu0
      %v1324 = vadd.f32 %v1176, %v1300
      %v1325 = vadd.f32 %v1177, %v1302
      %v1326 = vadd.f32 %v1178, %v1305
      %v1327 = vadd.f32 %v1179, %v1307
      %v1328 = vadd.f32 %v1180, %v1310
      %v1329 = vadd.f32 %v1181, %v1312
      %v1330 = vadd.f32 %v1182, %v1315
      %v1331 = vadd.f32 %v1183, %v1317
      %v1332 = vadd.f32 %v1184, %v1320
      %v1333 = vadd.f32 %v1185, %v1322
      %s1334 = scalar_lea.vmem %s1, 512
      %v1335 = vld [vmem:[%s1334] sm:$0xf]
      %v1336 = vld [vmem:[%s1334 + $0x4] sm:$0xf]
      %v1337 = vld [vmem:[%s1334 + $0x8] sm:$0xf]
      %v1338 = vld [vmem:[%s1334 + $0xc] sm:$0xf]
      %v1339 = vld [vmem:[%s1334 + $0x10] sm:$0xf]
      %v1340 = vld [vmem:[%s1334 + $0x14] sm:$0xf]
      %v1341 = vld [vmem:[%s1334 + $0x18] sm:$0xf]
      %v1342 = vld [vmem:[%s1334 + $0x1c] sm:$0xf]
      %v1343 = vld [vmem:[%s1334 + $0x20] sm:$0xf]
      %v1344 = vld [vmem:[%s1334 + $0x24] sm:$0xf]
      %v1345 = vld [vmem:[%s1334 + $0x28] sm:$0xf]
      %v1346 = vld [vmem:[%s1334 + $0x2c] sm:$0xf]
      %v1347 = vld [vmem:[%s1334 + $0x30] sm:$0xf]
      %v1348 = vld [vmem:[%s1334 + $0x34] sm:$0xf]
      %v1349 = vld [vmem:[%s1334 + $0x38] sm:$0xf]
      %v1350 = vld [vmem:[%s1334 + $0x3c] sm:$0xf]
      %vm1351 = vcmask 1044480
      %v1352 = vrot.slane %v292, 3
      %v1353 = vrot.slane %v293, 3
      %v1354 = vsel %vm1351, %v1352, %v1353
      %v1355 = vrot.slane %v294, 3
      %v1356 = vsel %vm1351, %v1353, %v1355
      %v1357 = vrot.slane %v295, 3
      %v1358 = vsel %vm1351, %v1355, %v1357
      %v1359 = vrot.slane %v1076, 3
      %v1360 = vsel %vm1351, %v1357, %v1359
      %v1361 = vrot.slane %v1077, 3
      %v1362 = vsel %vm1351, %v1359, %v1361
      %v1384 = vunpack.c.l.b16 %v1335
      %v1385 = vunpack.c.l.b16 %v1336
      %v1386 = vunpack.c.l.b16 %v1337
      %v1387 = vunpack.c.l.b16 %v1338
      %v1388 = vunpack.c.l.b16 %v1339
      %v1389 = vunpack.c.l.b16 %v1340
      %v1390 = vunpack.c.l.b16 %v1341
      %v1391 = vunpack.c.l.b16 %v1342
      %v1392 = vunpack.c.l.b16 %v1343
      %v1393 = vunpack.c.l.b16 %v1344
      %v1394 = vunpack.c.l.b16 %v1345
      %v1395 = vunpack.c.l.b16 %v1346
      %v1396 = vunpack.c.l.b16 %v1347
      %v1397 = vunpack.c.l.b16 %v1348
      %v1398 = vunpack.c.l.b16 %v1349
      %v1399 = vunpack.c.l.b16 %v1350
      %v1400 = vpack.c.b16 %v1385, %v1384
      %v1401 = vpack.c.b16 %v1387, %v1386
      %v1402 = vpack.c.b16 %v1389, %v1388
      %v1403 = vpack.c.b16 %v1391, %v1390
      %v1404 = vpack.c.b16 %v1393, %v1392
      %v1405 = vpack.c.b16 %v1395, %v1394
      %v1406 = vpack.c.b16 %v1397, %v1396
      %v1407 = vpack.c.b16 %v1399, %v1398
      %1416 = vmatpush.bf16.msra.mxu0 %v1407
      %1417 = vmatpush.bf16.msra.mxu0 %v1406
      %1418 = vmatpush.bf16.msra.mxu0 %v1405
      %1419 = vmatpush.bf16.msra.mxu0 %v1404
      %1420 = vmatpush.bf16.msra.mxu0 %v1403
      %1421 = vmatpush.bf16.msra.mxu0 %v1402
      %1422 = vmatpush.bf16.msra.mxu0 %v1401
      %1423 = vmatpush.bf16.msra.mxu0 %v1400
      %1424 = vmatmul.bf16.gmra.mxu0 %v1354
      %v1425 = vpop.f32.mrf.mxu0
      %v1426 = vadd.f32 0.0, %v1425
      %v1427 = vpop.f32.mrf.mxu0
      %v1428 = vadd.f32 0.0, %v1427
      %1429 = vmatmul.bf16.gmra.mxu0 %v1356
      %v1430 = vpop.f32.mrf.mxu0
      %v1431 = vadd.f32 0.0, %v1430
      %v1432 = vpop.f32.mrf.mxu0
      %v1433 = vadd.f32 0.0, %v1432
      %1434 = vmatmul.bf16.gmra.mxu0 %v1358
      %v1435 = vpop.f32.mrf.mxu0
      %v1436 = vadd.f32 0.0, %v1435
      %v1437 = vpop.f32.mrf.mxu0
      %v1438 = vadd.f32 0.0, %v1437
      %1439 = vmatmul.bf16.gmra.mxu0 %v1360
      %v1440 = vpop.f32.mrf.mxu0
      %v1441 = vadd.f32 0.0, %v1440
      %v1442 = vpop.f32.mrf.mxu0
      %v1443 = vadd.f32 0.0, %v1442
      %1444 = vmatmul.bf16.gmra.mxu0 %v1362
      %v1445 = vpop.f32.mrf.mxu0
      %v1446 = vadd.f32 0.0, %v1445
      %v1447 = vpop.f32.mrf.mxu0
      %v1448 = vadd.f32 0.0, %v1447
      %1449 = vdwg.mxu0
      %v1450 = vadd.f32 %v1324, %v1426
      %v1451 = vadd.f32 %v1325, %v1428
      %v1452 = vadd.f32 %v1326, %v1431
      %v1453 = vadd.f32 %v1327, %v1433
      %v1454 = vadd.f32 %v1328, %v1436
      %v1455 = vadd.f32 %v1329, %v1438
      %v1456 = vadd.f32 %v1330, %v1441
      %v1457 = vadd.f32 %v1331, %v1443
      %v1458 = vadd.f32 %v1332, %v1446
      %v1459 = vadd.f32 %v1333, %v1448
      %v1460 = vld [vmem:[%s2] sm:$0x1]
      %v1462 = vperm.slane %v1460, 0
      %v1464 = vadd.f32 %v1450, %v1462
      %v1465 = vadd.f32 %v1451, %v1462
      %v1466 = vadd.f32 %v1452, %v1462
      %v1467 = vadd.f32 %v1453, %v1462
      %v1468 = vadd.f32 %v1454, %v1462
      %v1469 = vadd.f32 %v1455, %v1462
      %v1470 = vadd.f32 %v1456, %v1462
      %v1471 = vadd.f32 %v1457, %v1462
      %v1472 = vadd.f32 %v1458, %v1462
      %v1473 = vadd.f32 %v1459, %v1462
      %v1474 = vxor.u32 %v1464, 2147483648
      %v1475 = vxor.u32 %v1465, 2147483648
      %v1476 = vxor.u32 %v1466, 2147483648
      %v1477 = vxor.u32 %v1467, 2147483648
      %v1478 = vxor.u32 %v1468, 2147483648
      %v1479 = vxor.u32 %v1469, 2147483648
      %v1480 = vxor.u32 %v1470, 2147483648
      %v1481 = vxor.u32 %v1471, 2147483648
      %v1482 = vxor.u32 %v1472, 2147483648
      %v1483 = vxor.u32 %v1473, 2147483648
      %v1484 = vmul.f32 %v1474, 1.442695
      %v1485 = vpow.pop %v1484
      %v1486 = vmul.f32 %v1475, 1.442695
      %v1487 = vpow.pop %v1486
      %v1488 = vmul.f32 %v1476, 1.442695
      %v1489 = vpow.pop %v1488
      %v1490 = vmul.f32 %v1477, 1.442695
      %v1491 = vpow.pop %v1490
      %v1492 = vmul.f32 %v1478, 1.442695
      %v1493 = vpow.pop %v1492
      %v1494 = vmul.f32 %v1479, 1.442695
      %v1495 = vpow.pop %v1494
      %v1496 = vmul.f32 %v1480, 1.442695
      %v1497 = vpow.pop %v1496
      %v1498 = vmul.f32 %v1481, 1.442695
      %v1499 = vpow.pop %v1498
      %v1500 = vmul.f32 %v1482, 1.442695
      %v1501 = vpow.pop %v1500
      %v1502 = vmul.f32 %v1483, 1.442695
      %v1503 = vpow.pop %v1502
      %v1504 = vadd.f32 %v1485, 1.0
      %v1505 = vadd.f32 %v1487, 1.0
      %v1506 = vadd.f32 %v1489, 1.0
      %v1507 = vadd.f32 %v1491, 1.0
      %v1508 = vadd.f32 %v1493, 1.0
      %v1509 = vadd.f32 %v1495, 1.0
      %v1510 = vadd.f32 %v1497, 1.0
      %v1511 = vadd.f32 %v1499, 1.0
      %v1512 = vadd.f32 %v1501, 1.0
      %v1513 = vadd.f32 %v1503, 1.0
      %v1514 = vrcp.pop %v1504
      %v1515 = vmul.f32 %v1504, %v1514
      %v1516 = vsub.f32 1.0, %v1515
      %v1517 = vmul.f32 %v1514, %v1516
      %v1518 = vadd.f32 %v1514, %v1517
      %vm1519 = vweird.f32 %v1504
      %vm1520 = vweird.f32 %v1514
      %vm1521 = vmor %vm1519, %vm1520
      %v1522 = vsel %vm1521, %v1514, %v1518
      %v1523 = vand.u32 2147483647, %v1504
      %vm1524 = vcmp.eq.f32.partialorder %v1523, 8.507059e+37
      %v1525 = vand.u32 %v1504, 2147483648
      %v1526 = vor.u32 1.1754944e-38, %v1525
      %v1527 = vsel %vm1524, %v1526, %v1522
      %v1528 = vmul.f32 1.0, %v1527
      %v1529 = vrcp.pop %v1505
      %v1530 = vmul.f32 %v1505, %v1529
      %v1531 = vsub.f32 1.0, %v1530
      %v1532 = vmul.f32 %v1529, %v1531
      %v1533 = vadd.f32 %v1529, %v1532
      %vm1534 = vweird.f32 %v1505
      %vm1535 = vweird.f32 %v1529
      %vm1536 = vmor %vm1534, %vm1535
      %v1537 = vsel %vm1536, %v1529, %v1533
      %v1538 = vand.u32 2147483647, %v1505
      %vm1539 = vcmp.eq.f32.partialorder %v1538, 8.507059e+37
      %v1540 = vand.u32 %v1505, 2147483648
      %v1541 = vor.u32 1.1754944e-38, %v1540
      %v1542 = vsel %vm1539, %v1541, %v1537
      %v1543 = vmul.f32 1.0, %v1542
      %v1544 = vrcp.pop %v1506
      %v1545 = vmul.f32 %v1506, %v1544
      %v1546 = vsub.f32 1.0, %v1545
      %v1547 = vmul.f32 %v1544, %v1546
      %v1548 = vadd.f32 %v1544, %v1547
      %vm1549 = vweird.f32 %v1506
      %vm1550 = vweird.f32 %v1544
      %vm1551 = vmor %vm1549, %vm1550
      %v1552 = vsel %vm1551, %v1544, %v1548
      %v1553 = vand.u32 2147483647, %v1506
      %vm1554 = vcmp.eq.f32.partialorder %v1553, 8.507059e+37
      %v1555 = vand.u32 %v1506, 2147483648
      %v1556 = vor.u32 1.1754944e-38, %v1555
      %v1557 = vsel %vm1554, %v1556, %v1552
      %v1558 = vmul.f32 1.0, %v1557
      %v1559 = vrcp.pop %v1507
      %v1560 = vmul.f32 %v1507, %v1559
      %v1561 = vsub.f32 1.0, %v1560
      %v1562 = vmul.f32 %v1559, %v1561
      %v1563 = vadd.f32 %v1559, %v1562
      %vm1564 = vweird.f32 %v1507
      %vm1565 = vweird.f32 %v1559
      %vm1566 = vmor %vm1564, %vm1565
      %v1567 = vsel %vm1566, %v1559, %v1563
      %v1568 = vand.u32 2147483647, %v1507
      %vm1569 = vcmp.eq.f32.partialorder %v1568, 8.507059e+37
      %v1570 = vand.u32 %v1507, 2147483648
      %v1571 = vor.u32 1.1754944e-38, %v1570
      %v1572 = vsel %vm1569, %v1571, %v1567
      %v1573 = vmul.f32 1.0, %v1572
      %v1574 = vrcp.pop %v1508
      %v1575 = vmul.f32 %v1508, %v1574
      %v1576 = vsub.f32 1.0, %v1575
      %v1577 = vmul.f32 %v1574, %v1576
      %v1578 = vadd.f32 %v1574, %v1577
      %vm1579 = vweird.f32 %v1508
      %vm1580 = vweird.f32 %v1574
      %vm1581 = vmor %vm1579, %vm1580
      %v1582 = vsel %vm1581, %v1574, %v1578
      %v1583 = vand.u32 2147483647, %v1508
      %vm1584 = vcmp.eq.f32.partialorder %v1583, 8.507059e+37
      %v1585 = vand.u32 %v1508, 2147483648
      %v1586 = vor.u32 1.1754944e-38, %v1585
      %v1587 = vsel %vm1584, %v1586, %v1582
      %v1588 = vmul.f32 1.0, %v1587
      %v1589 = vrcp.pop %v1509
      %v1590 = vmul.f32 %v1509, %v1589
      %v1591 = vsub.f32 1.0, %v1590
      %v1592 = vmul.f32 %v1589, %v1591
      %v1593 = vadd.f32 %v1589, %v1592
      %vm1594 = vweird.f32 %v1509
      %vm1595 = vweird.f32 %v1589
      %vm1596 = vmor %vm1594, %vm1595
      %v1597 = vsel %vm1596, %v1589, %v1593
      %v1598 = vand.u32 2147483647, %v1509
      %vm1599 = vcmp.eq.f32.partialorder %v1598, 8.507059e+37
      %v1600 = vand.u32 %v1509, 2147483648
      %v1601 = vor.u32 1.1754944e-38, %v1600
      %v1602 = vsel %vm1599, %v1601, %v1597
      %v1603 = vmul.f32 1.0, %v1602
      %v1604 = vrcp.pop %v1510
      %v1605 = vmul.f32 %v1510, %v1604
      %v1606 = vsub.f32 1.0, %v1605
      %v1607 = vmul.f32 %v1604, %v1606
      %v1608 = vadd.f32 %v1604, %v1607
      %vm1609 = vweird.f32 %v1510
      %vm1610 = vweird.f32 %v1604
      %vm1611 = vmor %vm1609, %vm1610
      %v1612 = vsel %vm1611, %v1604, %v1608
      %v1613 = vand.u32 2147483647, %v1510
      %vm1614 = vcmp.eq.f32.partialorder %v1613, 8.507059e+37
      %v1615 = vand.u32 %v1510, 2147483648
      %v1616 = vor.u32 1.1754944e-38, %v1615
      %v1617 = vsel %vm1614, %v1616, %v1612
      %v1618 = vmul.f32 1.0, %v1617
      %v1619 = vrcp.pop %v1511
      %v1620 = vmul.f32 %v1511, %v1619
      %v1621 = vsub.f32 1.0, %v1620
      %v1622 = vmul.f32 %v1619, %v1621
      %v1623 = vadd.f32 %v1619, %v1622
      %vm1624 = vweird.f32 %v1511
      %vm1625 = vweird.f32 %v1619
      %vm1626 = vmor %vm1624, %vm1625
      %v1627 = vsel %vm1626, %v1619, %v1623
      %v1628 = vand.u32 2147483647, %v1511
      %vm1629 = vcmp.eq.f32.partialorder %v1628, 8.507059e+37
      %v1630 = vand.u32 %v1511, 2147483648
      %v1631 = vor.u32 1.1754944e-38, %v1630
      %v1632 = vsel %vm1629, %v1631, %v1627
      %v1633 = vmul.f32 1.0, %v1632
      %v1634 = vrcp.pop %v1512
      %v1635 = vmul.f32 %v1512, %v1634
      %v1636 = vsub.f32 1.0, %v1635
      %v1637 = vmul.f32 %v1634, %v1636
      %v1638 = vadd.f32 %v1634, %v1637
      %vm1639 = vweird.f32 %v1512
      %vm1640 = vweird.f32 %v1634
      %vm1641 = vmor %vm1639, %vm1640
      %v1642 = vsel %vm1641, %v1634, %v1638
      %v1643 = vand.u32 2147483647, %v1512
      %vm1644 = vcmp.eq.f32.partialorder %v1643, 8.507059e+37
      %v1645 = vand.u32 %v1512, 2147483648
      %v1646 = vor.u32 1.1754944e-38, %v1645
      %v1647 = vsel %vm1644, %v1646, %v1642
      %v1648 = vmul.f32 1.0, %v1647
      %v1649 = vrcp.pop %v1513
      %v1650 = vmul.f32 %v1513, %v1649
      %v1651 = vsub.f32 1.0, %v1650
      %v1652 = vmul.f32 %v1649, %v1651
      %v1653 = vadd.f32 %v1649, %v1652
      %vm1654 = vweird.f32 %v1513
      %vm1655 = vweird.f32 %v1649
      %vm1656 = vmor %vm1654, %vm1655
      %v1657 = vsel %vm1656, %v1649, %v1653
      %v1658 = vand.u32 2147483647, %v1513
      %vm1659 = vcmp.eq.f32.partialorder %v1658, 8.507059e+37
      %v1660 = vand.u32 %v1513, 2147483648
      %v1661 = vor.u32 1.1754944e-38, %v1660
      %v1662 = vsel %vm1659, %v1661, %v1657
      %v1663 = vmul.f32 1.0, %v1662
      %v1664 = vmul.f32 %v1464, %v1528
      %v1665 = vmul.f32 %v1465, %v1543
      %v1666 = vmul.f32 %v1466, %v1558
      %v1667 = vmul.f32 %v1467, %v1573
      %v1668 = vmul.f32 %v1468, %v1588
      %v1669 = vmul.f32 %v1469, %v1603
      %v1670 = vmul.f32 %v1470, %v1618
      %v1671 = vmul.f32 %v1471, %v1633
      %v1672 = vmul.f32 %v1472, %v1648
      %v1673 = vmul.f32 %v1473, %v1663
      %v1674 = vpack.c.bf16 %v1665, %v1664
      %v1675 = vpack.c.bf16 %v1667, %v1666
      %v1676 = vpack.c.bf16 %v1669, %v1668
      %v1677 = vpack.c.bf16 %v1671, %v1670
      %v1678 = vpack.c.bf16 %v1673, %v1672
      %v1679 = vld [vmem:[%s3] sm:$0xf]
      %v1680 = vld [vmem:[%s3 + $0x4] sm:$0xf]
      %v1681 = vld [vmem:[%s3 + $0x8] sm:$0xf]
      %v1682 = vld [vmem:[%s3 + $0xc] sm:$0xf]
      %v1683 = vld [vmem:[%s3 + $0x10] sm:$0xf]
      %v1684 = vld [vmem:[%s3 + $0x14] sm:$0xf]
      %v1685 = vld [vmem:[%s3 + $0x18] sm:$0xf]
      %v1686 = vld [vmem:[%s3 + $0x1c] sm:$0xf]
      %v1687 = vld [vmem:[%s3 + $0x20] sm:$0xf]
      %v1688 = vld [vmem:[%s3 + $0x24] sm:$0xf]
      %v1689 = vld [vmem:[%s3 + $0x28] sm:$0xf]
      %v1690 = vld [vmem:[%s3 + $0x2c] sm:$0xf]
      %v1691 = vld [vmem:[%s3 + $0x30] sm:$0xf]
      %v1692 = vld [vmem:[%s3 + $0x34] sm:$0xf]
      %v1693 = vld [vmem:[%s3 + $0x38] sm:$0xf]
      %v1694 = vld [vmem:[%s3 + $0x3c] sm:$0xf]
      %v1695 = vld [vmem:[%s4] sm:$0x1]
      %v1697 = vperm.slane %v1695, 0
      %v1715 = vunpack.c.l.b16 %v1679
      %v1716 = vunpack.c.l.b16 %v1680
      %v1717 = vunpack.c.l.b16 %v1681
      %v1718 = vunpack.c.l.b16 %v1682
      %v1719 = vunpack.c.l.b16 %v1683
      %v1720 = vunpack.c.l.b16 %v1684
      %v1721 = vunpack.c.l.b16 %v1685
      %v1722 = vunpack.c.l.b16 %v1686
      %v1723 = vunpack.c.l.b16 %v1687
      %v1724 = vunpack.c.l.b16 %v1688
      %v1725 = vunpack.c.l.b16 %v1689
      %v1726 = vunpack.c.l.b16 %v1690
      %v1727 = vunpack.c.l.b16 %v1691
      %v1728 = vunpack.c.l.b16 %v1692
      %v1729 = vunpack.c.l.b16 %v1693
      %v1730 = vunpack.c.l.b16 %v1694
      %v1731 = vpack.c.b16 %v1716, %v1715
      %v1732 = vpack.c.b16 %v1718, %v1717
      %v1733 = vpack.c.b16 %v1720, %v1719
      %v1734 = vpack.c.b16 %v1722, %v1721
      %v1735 = vpack.c.b16 %v1724, %v1723
      %v1736 = vpack.c.b16 %v1726, %v1725
      %v1737 = vpack.c.b16 %v1728, %v1727
      %v1738 = vpack.c.b16 %v1730, %v1729
      %1747 = vmatpush.bf16.msra.mxu0 %v1738
      %1748 = vmatpush.bf16.msra.mxu0 %v1737
      %1749 = vmatpush.bf16.msra.mxu0 %v1736
      %1750 = vmatpush.bf16.msra.mxu0 %v1735
      %1751 = vmatpush.bf16.msra.mxu0 %v1734
      %1752 = vmatpush.bf16.msra.mxu0 %v1733
      %1753 = vmatpush.bf16.msra.mxu0 %v1732
      %1754 = vmatpush.bf16.msra.mxu0 %v1731
      %1755 = vmatmul.bf16.gmra.mxu0 %v1674
      %v1756 = vpop.f32.mrf.mxu0
      %v1757 = vadd.f32 %v1697, %v1756
      %v1758 = vpop.f32.mrf.mxu0
      %v1759 = vadd.f32 %v1697, %v1758
      %1760 = vmatmul.bf16.gmra.mxu0 %v1675
      %v1761 = vpop.f32.mrf.mxu0
      %v1762 = vadd.f32 %v1697, %v1761
      %v1763 = vpop.f32.mrf.mxu0
      %v1764 = vadd.f32 %v1697, %v1763
      %1765 = vmatmul.bf16.gmra.mxu0 %v1676
      %v1766 = vpop.f32.mrf.mxu0
      %v1767 = vadd.f32 %v1697, %v1766
      %v1768 = vpop.f32.mrf.mxu0
      %v1769 = vadd.f32 %v1697, %v1768
      %1770 = vmatmul.bf16.gmra.mxu0 %v1677
      %v1771 = vpop.f32.mrf.mxu0
      %v1772 = vadd.f32 %v1697, %v1771
      %v1773 = vpop.f32.mrf.mxu0
      %v1774 = vadd.f32 %v1697, %v1773
      %1775 = vmatmul.bf16.gmra.mxu0 %v1678
      %v1776 = vpop.f32.mrf.mxu0
      %v1777 = vadd.f32 %v1697, %v1776
      %v1778 = vpop.f32.mrf.mxu0
      %v1779 = vadd.f32 %v1697, %v1778
      %1780 = vdwg.mxu0
      %v1781 = vpack.c.bf16 %v1757, %v1757
      %v1782 = vpack.c.bf16 %v1759, %v1759
      %v1783 = vpack.c.bf16 %v1762, %v1762
      %v1784 = vpack.c.bf16 %v1764, %v1764
      %v1785 = vpack.c.bf16 %v1767, %v1767
      %v1786 = vpack.c.bf16 %v1769, %v1769
      %v1787 = vpack.c.bf16 %v1772, %v1772
      %v1788 = vpack.c.bf16 %v1774, %v1774
      %v1789 = vpack.c.bf16 %v1777, %v1777
      %v1790 = vpack.c.bf16 %v1779, %v1779
      %1791 = vst [vmem:[%s224] sm:$0xf] %v1781
      %1792 = vst [vmem:[%s224 + $0x4] sm:$0xf] %v1782
      %1793 = vst [vmem:[%s224 + $0x8] sm:$0xf] %v1783
      %1794 = vst [vmem:[%s224 + $0xc] sm:$0xf] %v1784
      %1795 = vst [vmem:[%s224 + $0x10] sm:$0xf] %v1785
      %1796 = vst [vmem:[%s224 + $0x14] sm:$0xf] %v1786
      %1797 = vst [vmem:[%s224 + $0x18] sm:$0xf] %v1787
      %1798 = vst [vmem:[%s224 + $0x1c] sm:$0xf] %v1788
      %1799 = vst [vmem:[%s224 + $0x20] sm:$0xf] %v1789
      %1800 = vst [vmem:[%s224 + $0x24] sm:$0x7] %v1790
      %p1801 = scmp.lt.s32.totalorder %s16, 1
      %s1802 = scalar_select %p1801, %s16, 1
      %s1803 = smul.addr %s1802, 10
      %s1804 = smul.addr %s1803, 4
      %s1805 = scalar_lea.vmem %s5, %s1804
      // Predicated region
      $region41: #{custom_effnet_forward.6} parent=39 // pred_check
        %p1806 = pneg %p144
      $region42: #{custom_effnet_forward.6} parent=39 // pred_check_branch
        %1808 = sbr.rel (%p1806) target = $region44
      $region43: #{custom_effnet_forward.6} parent=39 // pred_region
        _
      $region44: #{custom_effnet_forward.6} parent=39 // pred_fallthru
        _
    $region40: #{custom_effnet_forward.6} parent=5 // pred_fallthru
      _
    %p1809 = scmp.le.s32.totalorder 2, %s11
    // Predicated region
    $region45: #{custom_effnet_forward.6} parent=5 // pred_check
      %p1810 = pneg %p1809
    $region46: #{custom_effnet_forward.6} parent=5 // pred_check_branch
      %1812 = sbr.rel (%p1810) target = $region48
    $region47: #{custom_effnet_forward.6} parent=5 // pred_region
      %s1813 = ssub.s32 %s11, 2
      // Predicated region
      $region49: #{custom_effnet_forward.6} parent=47 // pred_check
        %p1814 = pneg %p150
      $region50: #{custom_effnet_forward.6} parent=47 // pred_check_branch
        %1816 = sbr.rel (%p1814) target = $region52
      $region51: #{custom_effnet_forward.6} parent=47 // pred_region
        %p1817 = scmp.lt.s32.totalorder %s17, 1
        %s1818 = scalar_select %p1817, %s17, 1
        %s1819 = smul.addr %s1818, 10
        %s1820 = smul.addr %s1819, 4
        %s1821 = scalar_lea.vmem %s5, %s1820
      $region52: #{custom_effnet_forward.6} parent=47 // pred_fallthru
        _
    $region48: #{custom_effnet_forward.6} parent=5 // pred_fallthru
      _
  $region6: #{custom_effnet_forward.6} parent=0 // loop_footer
    %s15 = sadd.s32 1, %s11
  $region7: #{custom_effnet_forward.6} parent=0 // loop_footer_branch
    %10 = sbr.rel target = $region3
  $region8: #{custom_effnet_forward.6} parent=0 // loop_exit
    _

// kernel: custom_effnet_forward.8
$region0: #{custom_effnet_forward.8}
  #allocation0 [shape = 'u32[]', space=smem, size = 0x4, offset = 0x4, fixed_abs, tag = 'smem constant byte address 0x4 - core index']
  #allocation1 [shape = 'u32[72,128]{1,0:T(1,128)}', space=vmem, size = 0x9000, scoped, tag = 'internal scratch']
  %s0 = inlined_call_operand.vmem [shape: f32[2,25,128], index: 0, kind: input, shape index: {}]
  %s1 = inlined_call_operand.vmem [shape: f32[2,25,128], index: 1, kind: input, shape index: {}]
  %s2 = inlined_call_operand.vmem [shape: f32[2,25,128], index: 2, kind: input, shape index: {}]
  %s3 = inlined_call_operand.vmem [shape: f32[2,25,128], index: 3, kind: input, shape index: {}]
  %s4 = inlined_call_operand.vmem [shape: f32[9,128], index: 4, kind: input, shape index: {}]
  %s5 = inlined_call_operand.vmem [shape: f32[1,128], index: 5, kind: input, shape index: {}]
  %s6 = inlined_call_operand.vmem [shape: f32[2,19,128], index: 6, kind: output, shape index: {}]
  %s7 = sld [smem:[#allocation0]]
  $region57: #{custom_effnet_forward.8} parent=0
    _
  %s9 = ssub.s32 1, %s7
  %s10 = scalar_select 0, %s9, %s7
  loop: start=0, step=1, limit=4
  $region2: #{custom_effnet_forward.8} parent=0 // loop_pre_header
    _
  $region3: #{custom_effnet_forward.8} parent=0 // loop_header
    %s12 = sphi 0, %s16
    %p13 = scmp.ge.s32.totalorder %s12, 4
    %s22 = sphi 0, %s24
    %s25 = sphi 0, %s22
    %s26 = sphi 0, %s25
    %s42 = sphi 0, %s26
    %s48 = sphi 0, %s50
    %s51 = sphi 0, %s48
    %s52 = sphi 0, %s51
    %s68 = sphi 0, %s52
    %s74 = sphi 0, %s76
    %s77 = sphi 0, %s74
    %s78 = sphi 0, %s77
    %s94 = sphi 0, %s78
    %s100 = sphi 0, %s102
    %s103 = sphi 0, %s100
    %s104 = sphi 0, %s103
    %s120 = sphi 0, %s104
    %s124 = sphi 0, %s124
    %s126 = sphi 0, %s124
    %s127 = sphi 0, %s126
    %s141 = sphi 0, %s127
    %s145 = sphi 0, %s145
    %s147 = sphi 0, %s145
    %s148 = sphi 0, %s147
    %s162 = sphi 0, %s148
    %s168 = sphi 0, %s170
    %s171 = sphi 0, %s168
    %s172 = sphi 0, %s171
    %s188 = sphi 0, %s172
  $region4: #{custom_effnet_forward.8} parent=0 // loop_header_branch
    %15 = sbr.rel (%p13) target = $region8
  $region5: #{custom_effnet_forward.8} parent=0 // loop_body
    %s17 = ssub.s32 %s12, 1
    %s18 = ssub.s32 %s12, 2
    %s19 = sadd.s32 %s12, 1
    %s20 = ssub.s32 %s12, %s19
    %p21 = scmp.eq.s32.totalorder %s20, 0
    %s23 = sadd.s32 %s22, 1
    %s24 = scalar_select %p21, %s22, %s23
    %p27 = pneg %p21
    %p28 = scmp.eq.s32.totalorder %s12, 1
    %p29 = por %p27, %p28
    %p30 = scmp.ne.s32.totalorder %s22, %s25
    %p31 = scmp.eq.s32.totalorder %s12, 0
    %p32 = por %p30, %p31
    %p33 = scmp.ne.s32.totalorder %s22, %s25
    %p34 = scmp.eq.s32.totalorder %s17, 1
    %p35 = por %p33, %p34
    %p36 = scmp.ne.s32.totalorder %s25, %s26
    %p37 = scmp.eq.s32.totalorder %s17, 0
    %p38 = por %p36, %p37
    %p39 = scmp.ne.s32.totalorder %s25, %s26
    %p40 = scmp.eq.s32.totalorder %s18, 1
    %p41 = por %p39, %p40
    %p43 = scmp.ne.s32.totalorder %s26, %s42
    %p44 = scmp.eq.s32.totalorder %s18, 0
    %p45 = por %p43, %p44
    %s46 = ssub.s32 %s12, %s19
    %p47 = scmp.eq.s32.totalorder %s46, 0
    %s49 = sadd.s32 %s48, 1
    %s50 = scalar_select %p47, %s48, %s49
    %p53 = pneg %p47
    %p54 = scmp.eq.s32.totalorder %s12, 1
    %p55 = por %p53, %p54
    %p56 = scmp.ne.s32.totalorder %s48, %s51
    %p57 = scmp.eq.s32.totalorder %s12, 0
    %p58 = por %p56, %p57
    %p59 = scmp.ne.s32.totalorder %s48, %s51
    %p60 = scmp.eq.s32.totalorder %s17, 1
    %p61 = por %p59, %p60
    %p62 = scmp.ne.s32.totalorder %s51, %s52
    %p63 = scmp.eq.s32.totalorder %s17, 0
    %p64 = por %p62, %p63
    %p65 = scmp.ne.s32.totalorder %s51, %s52
    %p66 = scmp.eq.s32.totalorder %s18, 1
    %p67 = por %p65, %p66
    %p69 = scmp.ne.s32.totalorder %s52, %s68
    %p70 = scmp.eq.s32.totalorder %s18, 0
    %p71 = por %p69, %p70
    %s72 = ssub.s32 %s12, %s19
    %p73 = scmp.eq.s32.totalorder %s72, 0
    %s75 = sadd.s32 %s74, 1
    %s76 = scalar_select %p73, %s74, %s75
    %p79 = pneg %p73
    %p80 = scmp.eq.s32.totalorder %s12, 1
    %p81 = por %p79, %p80
    %p82 = scmp.ne.s32.totalorder %s74, %s77
    %p83 = scmp.eq.s32.totalorder %s12, 0
    %p84 = por %p82, %p83
    %p85 = scmp.ne.s32.totalorder %s74, %s77
    %p86 = scmp.eq.s32.totalorder %s17, 1
    %p87 = por %p85, %p86
    %p88 = scmp.ne.s32.totalorder %s77, %s78
    %p89 = scmp.eq.s32.totalorder %s17, 0
    %p90 = por %p88, %p89
    %p91 = scmp.ne.s32.totalorder %s77, %s78
    %p92 = scmp.eq.s32.totalorder %s18, 1
    %p93 = por %p91, %p92
    %p95 = scmp.ne.s32.totalorder %s78, %s94
    %p96 = scmp.eq.s32.totalorder %s18, 0
    %p97 = por %p95, %p96
    %s98 = ssub.s32 %s12, %s19
    %p99 = scmp.eq.s32.totalorder %s98, 0
    %s101 = sadd.s32 %s100, 1
    %s102 = scalar_select %p99, %s100, %s101
    %p105 = pneg %p99
    %p106 = scmp.eq.s32.totalorder %s12, 1
    %p107 = por %p105, %p106
    %p108 = scmp.ne.s32.totalorder %s100, %s103
    %p109 = scmp.eq.s32.totalorder %s12, 0
    %p110 = por %p108, %p109
    %p111 = scmp.ne.s32.totalorder %s100, %s103
    %p112 = scmp.eq.s32.totalorder %s17, 1
    %p113 = por %p111, %p112
    %p114 = scmp.ne.s32.totalorder %s103, %s104
    %p115 = scmp.eq.s32.totalorder %s17, 0
    %p116 = por %p114, %p115
    %p117 = scmp.ne.s32.totalorder %s103, %s104
    %p118 = scmp.eq.s32.totalorder %s18, 1
    %p119 = por %p117, %p118
    %p121 = scmp.ne.s32.totalorder %s104, %s120
    %p122 = scmp.eq.s32.totalorder %s18, 0
    %p123 = por %p121, %p122
    %s125 = sadd.s32 %s124, 1
    %p128 = scmp.eq.s32.totalorder %s12, 1
    %p129 = scmp.ne.s32.totalorder %s124, %s126
    %p130 = scmp.eq.s32.totalorder %s12, 0
    %p131 = por %p129, %p130
    %p132 = scmp.ne.s32.totalorder %s124, %s126
    %p133 = scmp.eq.s32.totalorder %s17, 1
    %p134 = por %p132, %p133
    %p135 = scmp.ne.s32.totalorder %s126, %s127
    %p136 = scmp.eq.s32.totalorder %s17, 0
    %p137 = por %p135, %p136
    %p138 = scmp.ne.s32.totalorder %s126, %s127
    %p139 = scmp.eq.s32.totalorder %s18, 1
    %p140 = por %p138, %p139
    %p142 = scmp.ne.s32.totalorder %s127, %s141
    %p143 = scmp.eq.s32.totalorder %s18, 0
    %p144 = por %p142, %p143
    %s146 = sadd.s32 %s145, 1
    %p149 = scmp.eq.s32.totalorder %s12, 1
    %p150 = scmp.ne.s32.totalorder %s145, %s147
    %p151 = scmp.eq.s32.totalorder %s12, 0
    %p152 = por %p150, %p151
    %p153 = scmp.ne.s32.totalorder %s145, %s147
    %p154 = scmp.eq.s32.totalorder %s17, 1
    %p155 = por %p153, %p154
    %p156 = scmp.ne.s32.totalorder %s147, %s148
    %p157 = scmp.eq.s32.totalorder %s17, 0
    %p158 = por %p156, %p157
    %p159 = scmp.ne.s32.totalorder %s147, %s148
    %p160 = scmp.eq.s32.totalorder %s18, 1
    %p161 = por %p159, %p160
    %p163 = scmp.ne.s32.totalorder %s148, %s162
    %p164 = scmp.eq.s32.totalorder %s18, 0
    %p165 = por %p163, %p164
    %s166 = ssub.s32 %s12, %s19
    %p167 = scmp.eq.s32.totalorder %s166, 0
    %s169 = sadd.s32 %s168, 1
    %s170 = scalar_select %p167, %s168, %s169
    %p173 = pneg %p167
    %p174 = scmp.eq.s32.totalorder %s12, 1
    %p175 = por %p173, %p174
    %p176 = scmp.ne.s32.totalorder %s168, %s171
    %p177 = scmp.eq.s32.totalorder %s12, 0
    %p178 = por %p176, %p177
    %p179 = scmp.ne.s32.totalorder %s168, %s171
    %p180 = scmp.eq.s32.totalorder %s17, 1
    %p181 = por %p179, %p180
    %p182 = scmp.ne.s32.totalorder %s171, %s172
    %p183 = scmp.eq.s32.totalorder %s17, 0
    %p184 = por %p182, %p183
    %p185 = scmp.ne.s32.totalorder %s171, %s172
    %p186 = scmp.eq.s32.totalorder %s18, 1
    %p187 = por %p185, %p186
    %p189 = scmp.ne.s32.totalorder %s172, %s188
    %p190 = scmp.eq.s32.totalorder %s18, 0
    %p191 = por %p189, %p190
    %p192 = scmp.le.s32.totalorder 1, %s12
    %p193 = scmp.lt.s32.totalorder %s12, 3
    %p194 = pnand %p192, %p193
    %p195 = pneg %p194
    // Predicated region
    $region9: #{custom_effnet_forward.8} parent=5 // pred_check
      _
    $region10: #{custom_effnet_forward.8} parent=5 // pred_check_branch
      %197 = sbr.rel (%p194) target = $region12
    $region11: #{custom_effnet_forward.8} parent=5 // pred_region
      %s198 = ssub.s32 %s12, 1
      // Predicated region
      $region13: #{custom_effnet_forward.8} parent=11 // pred_check
        %p199 = pneg %p137
      $region14: #{custom_effnet_forward.8} parent=11 // pred_check_branch
        %201 = sbr.rel (%p199) target = $region16
      $region15: #{custom_effnet_forward.8} parent=11 // pred_region
        _
      $region16: #{custom_effnet_forward.8} parent=11 // pred_fallthru
        _
      // Predicated region
      $region17: #{custom_effnet_forward.8} parent=11 // pred_check
        %p202 = pneg %p158
      $region18: #{custom_effnet_forward.8} parent=11 // pred_check_branch
        %204 = sbr.rel (%p202) target = $region20
      $region19: #{custom_effnet_forward.8} parent=11 // pred_region
        _
      $region20: #{custom_effnet_forward.8} parent=11 // pred_fallthru
        _
    $region12: #{custom_effnet_forward.8} parent=5 // pred_fallthru
      _
    %p205 = scmp.lt.s32.totalorder %s12, 2
    // Predicated region
    $region21: #{custom_effnet_forward.8} parent=5 // pred_check
      %p206 = pneg %p205
    $region22: #{custom_effnet_forward.8} parent=5 // pred_check_branch
      %208 = sbr.rel (%p206) target = $region24
    $region23: #{custom_effnet_forward.8} parent=5 // pred_region
      // Predicated region
      $region25: #{custom_effnet_forward.8} parent=23 // pred_check
        %p209 = pneg %p32
      $region26: #{custom_effnet_forward.8} parent=23 // pred_check_branch
        %211 = sbr.rel (%p209) target = $region28
      $region27: #{custom_effnet_forward.8} parent=23 // pred_region
        %p212 = scmp.lt.s32.totalorder %s12, 1
        %s213 = scalar_select %p212, %s12, 1
        %s214 = smul.addr %s213, 4
        %s215 = smul.addr %s214, 8
        %s216 = scalar_lea.vmem %s0, %s215
      $region28: #{custom_effnet_forward.8} parent=23 // pred_fallthru
        _
      // Predicated region
      $region29: #{custom_effnet_forward.8} parent=23 // pred_check
        %p217 = pneg %p58
      $region30: #{custom_effnet_forward.8} parent=23 // pred_check_branch
        %219 = sbr.rel (%p217) target = $region32
      $region31: #{custom_effnet_forward.8} parent=23 // pred_region
        %p220 = scmp.lt.s32.totalorder %s12, 1
        %s221 = scalar_select %p220, %s12, 1
        %s222 = smul.addr %s221, 4
        %s223 = smul.addr %s222, 8
        %s224 = scalar_lea.vmem %s1, %s223
      $region32: #{custom_effnet_forward.8} parent=23 // pred_fallthru
        _
      // Predicated region
      $region33: #{custom_effnet_forward.8} parent=23 // pred_check
        %p225 = pneg %p84
      $region34: #{custom_effnet_forward.8} parent=23 // pred_check_branch
        %227 = sbr.rel (%p225) target = $region36
      $region35: #{custom_effnet_forward.8} parent=23 // pred_region
        %p228 = scmp.lt.s32.totalorder %s12, 1
        %s229 = scalar_select %p228, %s12, 1
        %s230 = smul.addr %s229, 4
        %s231 = smul.addr %s230, 8
        %s232 = scalar_lea.vmem %s2, %s231
      $region36: #{custom_effnet_forward.8} parent=23 // pred_fallthru
        _
      // Predicated region
      $region37: #{custom_effnet_forward.8} parent=23 // pred_check
        %p233 = pneg %p110
      $region38: #{custom_effnet_forward.8} parent=23 // pred_check_branch
        %235 = sbr.rel (%p233) target = $region40
      $region39: #{custom_effnet_forward.8} parent=23 // pred_region
        %p236 = scmp.lt.s32.totalorder %s12, 1
        %s237 = scalar_select %p236, %s12, 1
        %s238 = smul.addr %s237, 4
        %s239 = smul.addr %s238, 8
        %s240 = scalar_lea.vmem %s3, %s239
      $region40: #{custom_effnet_forward.8} parent=23 // pred_fallthru
        _
    $region24: #{custom_effnet_forward.8} parent=5 // pred_fallthru
      _
    %p241 = scmp.le.s32.totalorder 1, %s12
    %p242 = scmp.lt.s32.totalorder %s12, 3
    %p243 = pnand %p241, %p242
    %p244 = pneg %p243
    // Predicated region
    $region41: #{custom_effnet_forward.8} parent=5 // pred_check
      _
    $region42: #{custom_effnet_forward.8} parent=5 // pred_check_branch
      %246 = sbr.rel (%p243) target = $region44
    $region43: #{custom_effnet_forward.8} parent=5 // pred_region
      %s247 = ssub.s32 %s12, 1
      %p248 = scmp.lt.s32.totalorder %s17, 1
      %s249 = scalar_select %p248, %s17, 1
      %s250 = smul.addr %s249, 4
      %s251 = smul.addr %s250, 8
      %s252 = scalar_lea.vmem %s0, %s251
      %p253 = pneg %p38
      %p254 = pneg %p35
      %p255 = scmp.lt.s32.totalorder %s17, 1
      %s256 = scalar_select %p255, %s17, 1
      %s257 = smul.addr %s256, 4
      %s258 = smul.addr %s257, 8
      %s259 = scalar_lea.vmem %s1, %s258
      %p260 = pneg %p64
      %p261 = pneg %p61
      %p262 = scmp.lt.s32.totalorder %s17, 1
      %s263 = scalar_select %p262, %s17, 1
      %s264 = smul.addr %s263, 4
      %s265 = smul.addr %s264, 8
      %s266 = scalar_lea.vmem %s2, %s265
      %p267 = pneg %p90
      %p268 = pneg %p87
      %p269 = scmp.lt.s32.totalorder %s17, 1
      %s270 = scalar_select %p269, %s17, 1
      %s271 = smul.addr %s270, 4
      %s272 = smul.addr %s271, 8
      %s273 = scalar_lea.vmem %s3, %s272
      %p274 = pneg %p116
      %p275 = pneg %p113
      %p276 = pneg %p137
      %p277 = pneg %p134
      %p278 = pneg %p158
      %p279 = pneg %p155
      %p280 = pneg %p184
      %p281 = pneg %p181
      %p282 = scmp.lt.s32.totalorder %s17, 1
      %s283 = scalar_select %p282, %s17, 1
      %s284 = smul.addr %s283, 3
      %s285 = smul.addr %s284, 8
      %s286 = scalar_lea.vmem %s6, %s285
      %p287 = scmp.lt.s32.totalorder %s17, 1
      %s288 = scalar_select %p287, %s17, 1
      %s289 = smul.addr %s288, 4
      %s290 = smul.addr %s289, 8
      %s291 = scalar_lea.vmem %s0, %s290
      %p292 = scmp.lt.s32.totalorder %s17, 1
      %s293 = scalar_select %p292, %s17, 1
      %s294 = smul.addr %s293, 4
      %s295 = smul.addr %s294, 8
      %s296 = scalar_lea.vmem %s1, %s295
      %p297 = scmp.lt.s32.totalorder %s17, 1
      %s298 = scalar_select %p297, %s17, 1
      %s299 = smul.addr %s298, 4
      %s300 = smul.addr %s299, 8
      %s301 = scalar_lea.vmem %s2, %s300
      %p302 = scmp.lt.s32.totalorder %s17, 1
      %s303 = scalar_select %p302, %s17, 1
      %s304 = smul.addr %s303, 4
      %s305 = smul.addr %s304, 8
      %s306 = scalar_lea.vmem %s3, %s305
      %p307 = scmp.lt.s32.totalorder %s17, 1
      %s308 = scalar_select %p307, %s17, 1
      %s309 = smul.addr %s308, 3
      %s310 = smul.addr %s309, 8
      %s311 = scalar_lea.vmem %s6, %s310
      %v312 = vld [vmem:[%s291] sm:$0xff]
      %v313 = vld [vmem:[%s291 + $0x8] sm:$0xff]
      %v314 = vld [vmem:[%s291 + $0x10] sm:$0xff]
      %v315 = vld [vmem:[%s291 + $0x18] sm:$0x1]
      %v316 = vld [vmem:[%s296] sm:$0xff]
      %v317 = vld [vmem:[%s296 + $0x8] sm:$0xff]
      %v318 = vld [vmem:[%s296 + $0x10] sm:$0xff]
      %v319 = vld [vmem:[%s301] sm:$0xff]
      %v320 = vld [vmem:[%s301 + $0x8] sm:$0xff]
      %v321 = vld [vmem:[%s301 + $0x10] sm:$0xff]
      %v322 = vld [vmem:[%s306] sm:$0xff]
      %v323 = vld [vmem:[%s306 + $0x8] sm:$0xff]
      %v324 = vld [vmem:[%s306 + $0x10] sm:$0xff]
      %v325 = vld [vmem:[%s4] sm:$0x1]
      %v326 = vperm.slane %v325, 0
      %v327 = vmul.f32 %v312, %v326
      %v328 = vmul.f32 %v313, %v326
      %v329 = vmul.f32 %v314, %v326
      %v330 = vadd.f32 %v327, 0.0
      %v331 = vadd.f32 %v328, 0.0
      %v332 = vadd.f32 %v329, 0.0
      %v333 = vld [vmem:[%s4 + $0x1] sm:$0x1]
      %v334 = vperm.slane %v333, 0
      %v335 = vmul.f32 %v316, %v334
      %v336 = vmul.f32 %v317, %v334
      %v337 = vmul.f32 %v318, %v334
      %v338 = vadd.f32 %v330, %v335
      %v339 = vadd.f32 %v331, %v336
      %v340 = vadd.f32 %v332, %v337
      %v341 = vld [vmem:[%s4 + $0x2] sm:$0x1]
      %v342 = vperm.slane %v341, 0
      %v343 = vmul.f32 %v312, %v342
      %v344 = vmul.f32 %v313, %v342
      %v345 = vmul.f32 %v314, %v342
      %vm349 = vcmask 1046528
      %v350 = vrot.slane %v343, 1
      %v351 = vrot.slane %v344, 1
      %v352 = vsel %vm349, %v350, %v351
      %v353 = vrot.slane %v345, 1
      %v354 = vsel %vm349, %v351, %v353
      %v358 = vadd.f32 %v338, %v352
      %v359 = vadd.f32 %v339, %v354
      %v360 = vadd.f32 %v340, %v353
      %v361 = vld [vmem:[%s4 + $0x3] sm:$0x1]
      %v362 = vperm.slane %v361, 0
      %v363 = vmul.f32 %v319, %v362
      %v364 = vmul.f32 %v320, %v362
      %v365 = vmul.f32 %v321, %v362
      %v366 = vadd.f32 %v358, %v363
      %v367 = vadd.f32 %v359, %v364
      %v368 = vadd.f32 %v360, %v365
      %v369 = vld [vmem:[%s4 + $0x4] sm:$0x1]
      %v370 = vperm.slane %v369, 0
      %v371 = vmul.f32 %v322, %v370
      %v372 = vmul.f32 %v323, %v370
      %v373 = vmul.f32 %v324, %v370
      %v374 = vadd.f32 %v366, %v371
      %v375 = vadd.f32 %v367, %v372
      %v376 = vadd.f32 %v368, %v373
      %v377 = vld [vmem:[%s4 + $0x5] sm:$0x1]
      %v378 = vperm.slane %v377, 0
      %v379 = vmul.f32 %v319, %v378
      %v380 = vmul.f32 %v320, %v378
      %v381 = vmul.f32 %v321, %v378
      %v385 = vrot.slane %v379, 1
      %v386 = vrot.slane %v380, 1
      %v387 = vsel %vm349, %v385, %v386
      %v388 = vrot.slane %v381, 1
      %v389 = vsel %vm349, %v386, %v388
      %v393 = vadd.f32 %v374, %v387
      %v394 = vadd.f32 %v375, %v389
      %v395 = vadd.f32 %v376, %v388
      %v396 = vld [vmem:[%s4 + $0x6] sm:$0x1]
      %v397 = vperm.slane %v396, 0
      %v398 = vmul.f32 %v312, %v397
      %v399 = vmul.f32 %v313, %v397
      %v400 = vmul.f32 %v314, %v397
      %vm404 = vcmask 1042432
      %v405 = vrot.slane %v398, 5
      %v406 = vrot.slane %v399, 5
      %v407 = vsel %vm404, %v405, %v406
      %v408 = vrot.slane %v400, 5
      %v409 = vsel %vm404, %v406, %v408
      %v413 = vadd.f32 %v393, %v407
      %v414 = vadd.f32 %v394, %v409
      %v415 = vadd.f32 %v395, %v408
      %v416 = vld [vmem:[%s4 + $0x7] sm:$0x1]
      %v417 = vperm.slane %v416, 0
      %v418 = vmul.f32 %v316, %v417
      %v419 = vmul.f32 %v317, %v417
      %v420 = vmul.f32 %v318, %v417
      %v424 = vrot.slane %v418, 5
      %v425 = vrot.slane %v419, 5
      %v426 = vsel %vm404, %v424, %v425
      %v427 = vrot.slane %v420, 5
      %v428 = vsel %vm404, %v425, %v427
      %v432 = vadd.f32 %v413, %v426
      %v433 = vadd.f32 %v414, %v428
      %v434 = vadd.f32 %v415, %v427
      %v435 = vld [vmem:[%s4 + $0x8] sm:$0x1]
      %v436 = vperm.slane %v435, 0
      %v437 = vmul.f32 %v312, %v436
      %v438 = vmul.f32 %v313, %v436
      %v439 = vmul.f32 %v314, %v436
      %v440 = vmul.f32 %v315, %v436
      %vm445 = vcmask 1041408
      %v446 = vrot.slane %v437, 6
      %v447 = vrot.slane %v438, 6
      %v448 = vsel %vm445, %v446, %v447
      %v449 = vrot.slane %v439, 6
      %v450 = vsel %vm445, %v447, %v449
      %v451 = vrot.slane %v440, 6
      %v452 = vsel %vm445, %v449, %v451
      %v456 = vadd.f32 %v432, %v448
      %v457 = vadd.f32 %v433, %v450
      %v458 = vadd.f32 %v434, %v452
      %v459 = vld [vmem:[%s5] sm:$0x1]
      %v461 = vperm.slane %v459, 0
      %v463 = vadd.f32 %v456, %v461
      %v464 = vadd.f32 %v457, %v461
      %v465 = vadd.f32 %v458, %v461
      %v466 = vxor.u32 %v463, 2147483648
      %v467 = vxor.u32 %v464, 2147483648
      %v468 = vxor.u32 %v465, 2147483648
      %v469 = vmul.f32 %v466, 1.442695
      %v470 = vpow.pop %v469
      %v471 = vmul.f32 %v467, 1.442695
      %v472 = vpow.pop %v471
      %v473 = vmul.f32 %v468, 1.442695
      %v474 = vpow.pop %v473
      %v475 = vadd.f32 %v470, 1.0
      %v476 = vadd.f32 %v472, 1.0
      %v477 = vadd.f32 %v474, 1.0
      %v478 = vrcp.pop %v475
      %v479 = vmul.f32 %v475, %v478
      %v480 = vsub.f32 1.0, %v479
      %v481 = vmul.f32 %v478, %v480
      %v482 = vadd.f32 %v478, %v481
      %vm483 = vweird.f32 %v475
      %vm484 = vweird.f32 %v478
      %vm485 = vmor %vm483, %vm484
      %v486 = vsel %vm485, %v478, %v482
      %v487 = vand.u32 2147483647, %v475
      %vm488 = vcmp.eq.f32.partialorder %v487, 8.507059e+37
      %v489 = vand.u32 %v475, 2147483648
      %v490 = vor.u32 1.1754944e-38, %v489
      %v491 = vsel %vm488, %v490, %v486
      %v492 = vmul.f32 1.0, %v491
      %v493 = vrcp.pop %v476
      %v494 = vmul.f32 %v476, %v493
      %v495 = vsub.f32 1.0, %v494
      %v496 = vmul.f32 %v493, %v495
      %v497 = vadd.f32 %v493, %v496
      %vm498 = vweird.f32 %v476
      %vm499 = vweird.f32 %v493
      %vm500 = vmor %vm498, %vm499
      %v501 = vsel %vm500, %v493, %v497
      %v502 = vand.u32 2147483647, %v476
      %vm503 = vcmp.eq.f32.partialorder %v502, 8.507059e+37
      %v504 = vand.u32 %v476, 2147483648
      %v505 = vor.u32 1.1754944e-38, %v504
      %v506 = vsel %vm503, %v505, %v501
      %v507 = vmul.f32 1.0, %v506
      %v508 = vrcp.pop %v477
      %v509 = vmul.f32 %v477, %v508
      %v510 = vsub.f32 1.0, %v509
      %v511 = vmul.f32 %v508, %v510
      %v512 = vadd.f32 %v508, %v511
      %vm513 = vweird.f32 %v477
      %vm514 = vweird.f32 %v508
      %vm515 = vmor %vm513, %vm514
      %v516 = vsel %vm515, %v508, %v512
      %v517 = vand.u32 2147483647, %v477
      %vm518 = vcmp.eq.f32.partialorder %v517, 8.507059e+37
      %v519 = vand.u32 %v477, 2147483648
      %v520 = vor.u32 1.1754944e-38, %v519
      %v521 = vsel %vm518, %v520, %v516
      %v522 = vmul.f32 1.0, %v521
      %v523 = vmul.f32 %v463, %v492
      %v524 = vmul.f32 %v464, %v507
      %v525 = vmul.f32 %v465, %v522
      %526 = vst [vmem:[%s311] sm:$0xff] %v523
      %527 = vst [vmem:[%s311 + $0x8] sm:$0xff] %v524
      %528 = vst [vmem:[%s311 + $0x10] sm:$0x7] %v525
      %p529 = scmp.lt.s32.totalorder %s17, 1
      %s530 = scalar_select %p529, %s17, 1
      %s531 = smul.addr %s530, 3
      %s532 = smul.addr %s531, 8
      %s533 = scalar_lea.vmem %s6, %s532
      // Predicated region
      $region45: #{custom_effnet_forward.8} parent=43 // pred_check
        %p534 = pneg %p181
      $region46: #{custom_effnet_forward.8} parent=43 // pred_check_branch
        %536 = sbr.rel (%p534) target = $region48
      $region47: #{custom_effnet_forward.8} parent=43 // pred_region
        _
      $region48: #{custom_effnet_forward.8} parent=43 // pred_fallthru
        _
    $region44: #{custom_effnet_forward.8} parent=5 // pred_fallthru
      _
    %p537 = scmp.le.s32.totalorder 2, %s12
    // Predicated region
    $region49: #{custom_effnet_forward.8} parent=5 // pred_check
      %p538 = pneg %p537
    $region50: #{custom_effnet_forward.8} parent=5 // pred_check_branch
      %540 = sbr.rel (%p538) target = $region52
    $region51: #{custom_effnet_forward.8} parent=5 // pred_region
      %s541 = ssub.s32 %s12, 2
      // Predicated region
      $region53: #{custom_effnet_forward.8} parent=51 // pred_check
        %p542 = pneg %p187
      $region54: #{custom_effnet_forward.8} parent=51 // pred_check_branch
        %544 = sbr.rel (%p542) target = $region56
      $region55: #{custom_effnet_forward.8} parent=51 // pred_region
        %p545 = scmp.lt.s32.totalorder %s18, 1
        %s546 = scalar_select %p545, %s18, 1
        %s547 = smul.addr %s546, 3
        %s548 = smul.addr %s547, 8
        %s549 = scalar_lea.vmem %s6, %s548
      $region56: #{custom_effnet_forward.8} parent=51 // pred_fallthru
        _
    $region52: #{custom_effnet_forward.8} parent=5 // pred_fallthru
      _
  $region6: #{custom_effnet_forward.8} parent=0 // loop_footer
    %s16 = sadd.s32 1, %s12
  $region7: #{custom_effnet_forward.8} parent=0 // loop_footer_branch
    %11 = sbr.rel target = $region3
  $region8: #{custom_effnet_forward.8} parent=0 // loop_exit
    _

// kernel: custom_effnet_forward.9
$region0: #{custom_effnet_forward.9}
  #allocation0 [shape = 'u32[]', space=smem, size = 0x4, offset = 0x4, fixed_abs, tag = 'smem constant byte address 0x4 - core index']
  #allocation1 [shape = 'u32[72,128]{1,0:T(1,128)}', space=vmem, size = 0x9000, scoped, tag = 'internal scratch']
  %s0 = inlined_call_operand.vmem [shape: f32[2,16,128], index: 0, kind: input, shape index: {}]
  %s1 = inlined_call_operand.vmem [shape: bf16[128,128], index: 1, kind: input, shape index: {}]
  %s2 = inlined_call_operand.vmem [shape: f32[1,128], index: 2, kind: input, shape index: {}]
  %s3 = inlined_call_operand.vmem [shape: bf16[128,128], index: 3, kind: input, shape index: {}]
  %s4 = inlined_call_operand.vmem [shape: f32[1,128], index: 4, kind: input, shape index: {}]
  %s5 = inlined_call_operand.vmem [shape: bf16[128,128], index: 5, kind: input, shape index: {}]
  %s6 = inlined_call_operand.vmem [shape: f32[1,128], index: 6, kind: input, shape index: {}]
  %s7 = inlined_call_operand.vmem [shape: bf16[128,128], index: 7, kind: input, shape index: {}]
  %s8 = inlined_call_operand.vmem [shape: f32[1,128], index: 8, kind: input, shape index: {}]
  %s9 = inlined_call_operand.vmem [shape: bf16[128,128], index: 9, kind: input, shape index: {}]
  %s10 = inlined_call_operand.vmem [shape: f32[1,128], index: 10, kind: input, shape index: {}]
  %s11 = inlined_call_operand.hbm [shape: f32[2,1,128], index: 11, kind: output, shape index: {}]
  %s12 = sld [smem:[#allocation0]]
  $region77: #{custom_effnet_forward.9} parent=0
    _
  %s14 = ssub.s32 1, %s12
  %s15 = scalar_select 0, %s14, %s12
  $region1: #{custom_effnet_forward.9} parent=0
    #allocation2 [shape = 'u8[1024]{0}', space=vmem, size = 0x400, scoped, tag = 'output window, operand 0']
    #allocation3 [shape = 's32[2]{0}', space=sflag, size = 0x8, scoped, tag = 'scoped memory for custom_effnet_forward.9']
    %16 = vsyncpa [#allocation3], 0
    %s17 = scalar_lea.sflag [#allocation3], 1
    %18 = vsyncpa %s17, 0
    loop: start=0, step=1, limit=4
    $region2: #{custom_effnet_forward.9} parent=1 // loop_pre_header
      _
    $region3: #{custom_effnet_forward.9} parent=1 // loop_header
      %s20 = sphi 0, %s24
      %p21 = scmp.ge.s32.totalorder %s20, 4
      %s30 = sphi 0, %s32
      %s33 = sphi 0, %s30
      %s34 = sphi 0, %s33
      %s50 = sphi 0, %s34
      %s54 = sphi 0, %s54
      %s56 = sphi 0, %s54
      %s57 = sphi 0, %s56
      %s71 = sphi 0, %s57
      %s75 = sphi 0, %s75
      %s77 = sphi 0, %s75
      %s78 = sphi 0, %s77
      %s92 = sphi 0, %s78
      %s96 = sphi 0, %s96
      %s98 = sphi 0, %s96
      %s99 = sphi 0, %s98
      %s113 = sphi 0, %s99
      %s117 = sphi 0, %s117
      %s119 = sphi 0, %s117
      %s120 = sphi 0, %s119
      %s134 = sphi 0, %s120
      %s138 = sphi 0, %s138
      %s140 = sphi 0, %s138
      %s141 = sphi 0, %s140
      %s155 = sphi 0, %s141
      %s159 = sphi 0, %s159
      %s161 = sphi 0, %s159
      %s162 = sphi 0, %s161
      %s176 = sphi 0, %s162
      %s180 = sphi 0, %s180
      %s182 = sphi 0, %s180
      %s183 = sphi 0, %s182
      %s197 = sphi 0, %s183
      %s201 = sphi 0, %s201
      %s203 = sphi 0, %s201
      %s204 = sphi 0, %s203
      %s218 = sphi 0, %s204
      %s222 = sphi 0, %s222
      %s224 = sphi 0, %s222
      %s225 = sphi 0, %s224
      %s239 = sphi 0, %s225
      %s243 = sphi 0, %s243
      %s245 = sphi 0, %s243
      %s246 = sphi 0, %s245
      %s260 = sphi 0, %s246
      %s266 = sphi 0, %s268
      %s269 = sphi 0, %s266
      %s270 = sphi 0, %s269
      %s286 = sphi 0, %s270
    $region4: #{custom_effnet_forward.9} parent=1 // loop_header_branch
      %23 = sbr.rel (%p21) target = $region8
    $region5: #{custom_effnet_forward.9} parent=1 // loop_body
      %s25 = ssub.s32 %s20, 1
      %s26 = ssub.s32 %s20, 2
      %s27 = sadd.s32 %s20, 1
      %s28 = ssub.s32 %s20, %s27
      %p29 = scmp.eq.s32.totalorder %s28, 0
      %s31 = sadd.s32 %s30, 1
      %s32 = scalar_select %p29, %s30, %s31
      %p35 = pneg %p29
      %p36 = scmp.eq.s32.totalorder %s20, 1
      %p37 = por %p35, %p36
      %p38 = scmp.ne.s32.totalorder %s30, %s33
      %p39 = scmp.eq.s32.totalorder %s20, 0
      %p40 = por %p38, %p39
      %p41 = scmp.ne.s32.totalorder %s30, %s33
      %p42 = scmp.eq.s32.totalorder %s25, 1
      %p43 = por %p41, %p42
      %p44 = scmp.ne.s32.totalorder %s33, %s34
      %p45 = scmp.eq.s32.totalorder %s25, 0
      %p46 = por %p44, %p45
      %p47 = scmp.ne.s32.totalorder %s33, %s34
      %p48 = scmp.eq.s32.totalorder %s26, 1
      %p49 = por %p47, %p48
      %p51 = scmp.ne.s32.totalorder %s34, %s50
      %p52 = scmp.eq.s32.totalorder %s26, 0
      %p53 = por %p51, %p52
      %s55 = sadd.s32 %s54, 1
      %p58 = scmp.eq.s32.totalorder %s20, 1
      %p59 = scmp.ne.s32.totalorder %s54, %s56
      %p60 = scmp.eq.s32.totalorder %s20, 0
      %p61 = por %p59, %p60
      %p62 = scmp.ne.s32.totalorder %s54, %s56
      %p63 = scmp.eq.s32.totalorder %s25, 1
      %p64 = por %p62, %p63
      %p65 = scmp.ne.s32.totalorder %s56, %s57
      %p66 = scmp.eq.s32.totalorder %s25, 0
      %p67 = por %p65, %p66
      %p68 = scmp.ne.s32.totalorder %s56, %s57
      %p69 = scmp.eq.s32.totalorder %s26, 1
      %p70 = por %p68, %p69
      %p72 = scmp.ne.s32.totalorder %s57, %s71
      %p73 = scmp.eq.s32.totalorder %s26, 0
      %p74 = por %p72, %p73
      %s76 = sadd.s32 %s75, 1
      %p79 = scmp.eq.s32.totalorder %s20, 1
      %p80 = scmp.ne.s32.totalorder %s75, %s77
      %p81 = scmp.eq.s32.totalorder %s20, 0
      %p82 = por %p80, %p81
      %p83 = scmp.ne.s32.totalorder %s75, %s77
      %p84 = scmp.eq.s32.totalorder %s25, 1
      %p85 = por %p83, %p84
      %p86 = scmp.ne.s32.totalorder %s77, %s78
      %p87 = scmp.eq.s32.totalorder %s25, 0
      %p88 = por %p86, %p87
      %p89 = scmp.ne.s32.totalorder %s77, %s78
      %p90 = scmp.eq.s32.totalorder %s26, 1
      %p91 = por %p89, %p90
      %p93 = scmp.ne.s32.totalorder %s78, %s92
      %p94 = scmp.eq.s32.totalorder %s26, 0
      %p95 = por %p93, %p94
      %s97 = sadd.s32 %s96, 1
      %p100 = scmp.eq.s32.totalorder %s20, 1
      %p101 = scmp.ne.s32.totalorder %s96, %s98
      %p102 = scmp.eq.s32.totalorder %s20, 0
      %p103 = por %p101, %p102
      %p104 = scmp.ne.s32.totalorder %s96, %s98
      %p105 = scmp.eq.s32.totalorder %s25, 1
      %p106 = por %p104, %p105
      %p107 = scmp.ne.s32.totalorder %s98, %s99
      %p108 = scmp.eq.s32.totalorder %s25, 0
      %p109 = por %p107, %p108
      %p110 = scmp.ne.s32.totalorder %s98, %s99
      %p111 = scmp.eq.s32.totalorder %s26, 1
      %p112 = por %p110, %p111
      %p114 = scmp.ne.s32.totalorder %s99, %s113
      %p115 = scmp.eq.s32.totalorder %s26, 0
      %p116 = por %p114, %p115
      %s118 = sadd.s32 %s117, 1
      %p121 = scmp.eq.s32.totalorder %s20, 1
      %p122 = scmp.ne.s32.totalorder %s117, %s119
      %p123 = scmp.eq.s32.totalorder %s20, 0
      %p124 = por %p122, %p123
      %p125 = scmp.ne.s32.totalorder %s117, %s119
      %p126 = scmp.eq.s32.totalorder %s25, 1
      %p127 = por %p125, %p126
      %p128 = scmp.ne.s32.totalorder %s119, %s120
      %p129 = scmp.eq.s32.totalorder %s25, 0
      %p130 = por %p128, %p129
      %p131 = scmp.ne.s32.totalorder %s119, %s120
      %p132 = scmp.eq.s32.totalorder %s26, 1
      %p133 = por %p131, %p132
      %p135 = scmp.ne.s32.totalorder %s120, %s134
      %p136 = scmp.eq.s32.totalorder %s26, 0
      %p137 = por %p135, %p136
      %s139 = sadd.s32 %s138, 1
      %p142 = scmp.eq.s32.totalorder %s20, 1
      %p143 = scmp.ne.s32.totalorder %s138, %s140
      %p144 = scmp.eq.s32.totalorder %s20, 0
      %p145 = por %p143, %p144
      %p146 = scmp.ne.s32.totalorder %s138, %s140
      %p147 = scmp.eq.s32.totalorder %s25, 1
      %p148 = por %p146, %p147
      %p149 = scmp.ne.s32.totalorder %s140, %s141
      %p150 = scmp.eq.s32.totalorder %s25, 0
      %p151 = por %p149, %p150
      %p152 = scmp.ne.s32.totalorder %s140, %s141
      %p153 = scmp.eq.s32.totalorder %s26, 1
      %p154 = por %p152, %p153
      %p156 = scmp.ne.s32.totalorder %s141, %s155
      %p157 = scmp.eq.s32.totalorder %s26, 0
      %p158 = por %p156, %p157
      %s160 = sadd.s32 %s159, 1
      %p163 = scmp.eq.s32.totalorder %s20, 1
      %p164 = scmp.ne.s32.totalorder %s159, %s161
      %p165 = scmp.eq.s32.totalorder %s20, 0
      %p166 = por %p164, %p165
      %p167 = scmp.ne.s32.totalorder %s159, %s161
      %p168 = scmp.eq.s32.totalorder %s25, 1
      %p169 = por %p167, %p168
      %p170 = scmp.ne.s32.totalorder %s161, %s162
      %p171 = scmp.eq.s32.totalorder %s25, 0
      %p172 = por %p170, %p171
      %p173 = scmp.ne.s32.totalorder %s161, %s162
      %p174 = scmp.eq.s32.totalorder %s26, 1
      %p175 = por %p173, %p174
      %p177 = scmp.ne.s32.totalorder %s162, %s176
      %p178 = scmp.eq.s32.totalorder %s26, 0
      %p179 = por %p177, %p178
      %s181 = sadd.s32 %s180, 1
      %p184 = scmp.eq.s32.totalorder %s20, 1
      %p185 = scmp.ne.s32.totalorder %s180, %s182
      %p186 = scmp.eq.s32.totalorder %s20, 0
      %p187 = por %p185, %p186
      %p188 = scmp.ne.s32.totalorder %s180, %s182
      %p189 = scmp.eq.s32.totalorder %s25, 1
      %p190 = por %p188, %p189
      %p191 = scmp.ne.s32.totalorder %s182, %s183
      %p192 = scmp.eq.s32.totalorder %s25, 0
      %p193 = por %p191, %p192
      %p194 = scmp.ne.s32.totalorder %s182, %s183
      %p195 = scmp.eq.s32.totalorder %s26, 1
      %p196 = por %p194, %p195
      %p198 = scmp.ne.s32.totalorder %s183, %s197
      %p199 = scmp.eq.s32.totalorder %s26, 0
      %p200 = por %p198, %p199
      %s202 = sadd.s32 %s201, 1
      %p205 = scmp.eq.s32.totalorder %s20, 1
      %p206 = scmp.ne.s32.totalorder %s201, %s203
      %p207 = scmp.eq.s32.totalorder %s20, 0
      %p208 = por %p206, %p207
      %p209 = scmp.ne.s32.totalorder %s201, %s203
      %p210 = scmp.eq.s32.totalorder %s25, 1
      %p211 = por %p209, %p210
      %p212 = scmp.ne.s32.totalorder %s203, %s204
      %p213 = scmp.eq.s32.totalorder %s25, 0
      %p214 = por %p212, %p213
      %p215 = scmp.ne.s32.totalorder %s203, %s204
      %p216 = scmp.eq.s32.totalorder %s26, 1
      %p217 = por %p215, %p216
      %p219 = scmp.ne.s32.totalorder %s204, %s218
      %p220 = scmp.eq.s32.totalorder %s26, 0
      %p221 = por %p219, %p220
      %s223 = sadd.s32 %s222, 1
      %p226 = scmp.eq.s32.totalorder %s20, 1
      %p227 = scmp.ne.s32.totalorder %s222, %s224
      %p228 = scmp.eq.s32.totalorder %s20, 0
      %p229 = por %p227, %p228
      %p230 = scmp.ne.s32.totalorder %s222, %s224
      %p231 = scmp.eq.s32.totalorder %s25, 1
      %p232 = por %p230, %p231
      %p233 = scmp.ne.s32.totalorder %s224, %s225
      %p234 = scmp.eq.s32.totalorder %s25, 0
      %p235 = por %p233, %p234
      %p236 = scmp.ne.s32.totalorder %s224, %s225
      %p237 = scmp.eq.s32.totalorder %s26, 1
      %p238 = por %p236, %p237
      %p240 = scmp.ne.s32.totalorder %s225, %s239
      %p241 = scmp.eq.s32.totalorder %s26, 0
      %p242 = por %p240, %p241
      %s244 = sadd.s32 %s243, 1
      %p247 = scmp.eq.s32.totalorder %s20, 1
      %p248 = scmp.ne.s32.totalorder %s243, %s245
      %p249 = scmp.eq.s32.totalorder %s20, 0
      %p250 = por %p248, %p249
      %p251 = scmp.ne.s32.totalorder %s243, %s245
      %p252 = scmp.eq.s32.totalorder %s25, 1
      %p253 = por %p251, %p252
      %p254 = scmp.ne.s32.totalorder %s245, %s246
      %p255 = scmp.eq.s32.totalorder %s25, 0
      %p256 = por %p254, %p255
      %p257 = scmp.ne.s32.totalorder %s245, %s246
      %p258 = scmp.eq.s32.totalorder %s26, 1
      %p259 = por %p257, %p258
      %p261 = scmp.ne.s32.totalorder %s246, %s260
      %p262 = scmp.eq.s32.totalorder %s26, 0
      %p263 = por %p261, %p262
      %s264 = ssub.s32 %s20, %s27
      %p265 = scmp.eq.s32.totalorder %s264, 0
      %s267 = sadd.s32 %s266, 1
      %s268 = scalar_select %p265, %s266, %s267
      %p271 = pneg %p265
      %p272 = scmp.eq.s32.totalorder %s20, 1
      %p273 = por %p271, %p272
      %p274 = scmp.ne.s32.totalorder %s266, %s269
      %p275 = scmp.eq.s32.totalorder %s20, 0
      %p276 = por %p274, %p275
      %p277 = scmp.ne.s32.totalorder %s266, %s269
      %p278 = scmp.eq.s32.totalorder %s25, 1
      %p279 = por %p277, %p278
      %p280 = scmp.ne.s32.totalorder %s269, %s270
      %p281 = scmp.eq.s32.totalorder %s25, 0
      %p282 = por %p280, %p281
      %p283 = scmp.ne.s32.totalorder %s269, %s270
      %p284 = scmp.eq.s32.totalorder %s26, 1
      %p285 = por %p283, %p284
      %p287 = scmp.ne.s32.totalorder %s270, %s286
      %p288 = scmp.eq.s32.totalorder %s26, 0
      %p289 = por %p287, %p288
      %p290 = scmp.le.s32.totalorder 1, %s20
      %p291 = scmp.lt.s32.totalorder %s20, 3
      %p292 = pnand %p290, %p291
      %p293 = pneg %p292
      // Predicated region
      $region9: #{custom_effnet_forward.9} parent=5 // pred_check
        _
      $region10: #{custom_effnet_forward.9} parent=5 // pred_check_branch
        %295 = sbr.rel (%p292) target = $region12
      $region11: #{custom_effnet_forward.9} parent=5 // pred_region
        %s296 = ssub.s32 %s20, 1
        // Predicated region
        $region13: #{custom_effnet_forward.9} parent=11 // pred_check
          %p297 = pneg %p67
        $region14: #{custom_effnet_forward.9} parent=11 // pred_check_branch
          %299 = sbr.rel (%p297) target = $region16
        $region15: #{custom_effnet_forward.9} parent=11 // pred_region
          _
        $region16: #{custom_effnet_forward.9} parent=11 // pred_fallthru
          _
        // Predicated region
        $region17: #{custom_effnet_forward.9} parent=11 // pred_check
          %p300 = pneg %p88
        $region18: #{custom_effnet_forward.9} parent=11 // pred_check_branch
          %302 = sbr.rel (%p300) target = $region20
        $region19: #{custom_effnet_forward.9} parent=11 // pred_region
          _
        $region20: #{custom_effnet_forward.9} parent=11 // pred_fallthru
          _
        // Predicated region
        $region21: #{custom_effnet_forward.9} parent=11 // pred_check
          %p303 = pneg %p109
        $region22: #{custom_effnet_forward.9} parent=11 // pred_check_branch
          %305 = sbr.rel (%p303) target = $region24
        $region23: #{custom_effnet_forward.9} parent=11 // pred_region
          _
        $region24: #{custom_effnet_forward.9} parent=11 // pred_fallthru
          _
        // Predicated region
        $region25: #{custom_effnet_forward.9} parent=11 // pred_check
          %p306 = pneg %p130
        $region26: #{custom_effnet_forward.9} parent=11 // pred_check_branch
          %308 = sbr.rel (%p306) target = $region28
        $region27: #{custom_effnet_forward.9} parent=11 // pred_region
          _
        $region28: #{custom_effnet_forward.9} parent=11 // pred_fallthru
          _
        // Predicated region
        $region29: #{custom_effnet_forward.9} parent=11 // pred_check
          %p309 = pneg %p151
        $region30: #{custom_effnet_forward.9} parent=11 // pred_check_branch
          %311 = sbr.rel (%p309) target = $region32
        $region31: #{custom_effnet_forward.9} parent=11 // pred_region
          _
        $region32: #{custom_effnet_forward.9} parent=11 // pred_fallthru
          _
        // Predicated region
        $region33: #{custom_effnet_forward.9} parent=11 // pred_check
          %p312 = pneg %p172
        $region34: #{custom_effnet_forward.9} parent=11 // pred_check_branch
          %314 = sbr.rel (%p312) target = $region36
        $region35: #{custom_effnet_forward.9} parent=11 // pred_region
          _
        $region36: #{custom_effnet_forward.9} parent=11 // pred_fallthru
          _
        // Predicated region
        $region37: #{custom_effnet_forward.9} parent=11 // pred_check
          %p315 = pneg %p193
        $region38: #{custom_effnet_forward.9} parent=11 // pred_check_branch
          %317 = sbr.rel (%p315) target = $region40
        $region39: #{custom_effnet_forward.9} parent=11 // pred_region
          _
        $region40: #{custom_effnet_forward.9} parent=11 // pred_fallthru
          _
        // Predicated region
        $region41: #{custom_effnet_forward.9} parent=11 // pred_check
          %p318 = pneg %p214
        $region42: #{custom_effnet_forward.9} parent=11 // pred_check_branch
          %320 = sbr.rel (%p318) target = $region44
        $region43: #{custom_effnet_forward.9} parent=11 // pred_region
          _
        $region44: #{custom_effnet_forward.9} parent=11 // pred_fallthru
          _
        // Predicated region
        $region45: #{custom_effnet_forward.9} parent=11 // pred_check
          %p321 = pneg %p235
        $region46: #{custom_effnet_forward.9} parent=11 // pred_check_branch
          %323 = sbr.rel (%p321) target = $region48
        $region47: #{custom_effnet_forward.9} parent=11 // pred_region
          _
        $region48: #{custom_effnet_forward.9} parent=11 // pred_fallthru
          _
        // Predicated region
        $region49: #{custom_effnet_forward.9} parent=11 // pred_check
          %p324 = pneg %p256
        $region50: #{custom_effnet_forward.9} parent=11 // pred_check_branch
          %326 = sbr.rel (%p324) target = $region52
        $region51: #{custom_effnet_forward.9} parent=11 // pred_region
          _
        $region52: #{custom_effnet_forward.9} parent=11 // pred_fallthru
          _
      $region12: #{custom_effnet_forward.9} parent=5 // pred_fallthru
        _
      %p327 = scmp.lt.s32.totalorder %s20, 2
      // Predicated region
      $region53: #{custom_effnet_forward.9} parent=5 // pred_check
        %p328 = pneg %p327
      $region54: #{custom_effnet_forward.9} parent=5 // pred_check_branch
        %330 = sbr.rel (%p328) target = $region56
      $region55: #{custom_effnet_forward.9} parent=5 // pred_region
        // Predicated region
        $region57: #{custom_effnet_forward.9} parent=55 // pred_check
          %p331 = pneg %p40
        $region58: #{custom_effnet_forward.9} parent=55 // pred_check_branch
          %333 = sbr.rel (%p331) target = $region60
        $region59: #{custom_effnet_forward.9} parent=55 // pred_region
          %p334 = scmp.lt.s32.totalorder %s20, 1
          %s335 = scalar_select %p334, %s20, 1
          %s336 = smul.addr %s335, 2
          %s337 = smul.addr %s336, 8
          %s338 = scalar_lea.vmem %s0, %s337
        $region60: #{custom_effnet_forward.9} parent=55 // pred_fallthru
          _
      $region56: #{custom_effnet_forward.9} parent=5 // pred_fallthru
        _
      %p339 = scmp.le.s32.totalorder 1, %s20
      %p340 = scmp.lt.s32.totalorder %s20, 3
      %p341 = pnand %p339, %p340
      %p342 = pneg %p341
      // Predicated region
      $region61: #{custom_effnet_forward.9} parent=5 // pred_check
        _
      $region62: #{custom_effnet_forward.9} parent=5 // pred_check_branch
        %344 = sbr.rel (%p341) target = $region64
      $region63: #{custom_effnet_forward.9} parent=5 // pred_region
        %s345 = ssub.s32 %s20, 1
        %p346 = scmp.lt.s32.totalorder %s25, 1
        %s347 = scalar_select %p346, %s25, 1
        %s348 = smul.addr %s347, 2
        %s349 = smul.addr %s348, 8
        %s350 = scalar_lea.vmem %s0, %s349
        %p351 = pneg %p46
        %p352 = pneg %p43
        %p353 = pneg %p67
        %p354 = pneg %p64
        %p355 = pneg %p88
        %p356 = pneg %p85
        %p357 = pneg %p109
        %p358 = pneg %p106
        %p359 = pneg %p130
        %p360 = pneg %p127
        %p361 = pneg %p151
        %p362 = pneg %p148
        %p363 = pneg %p172
        %p364 = pneg %p169
        %p365 = pneg %p193
        %p366 = pneg %p190
        %p367 = pneg %p214
        %p368 = pneg %p211
        %p369 = pneg %p235
        %p370 = pneg %p232
        %p371 = pneg %p256
        %p372 = pneg %p253
        %p373 = pneg %p282
        %p374 = pneg %p279
        %s375 = sand.u32 %s269, 1
        %s376 = scalar_lea.sflag [#allocation3], %s375
        %s377 = sand.u32 %s269, 1
        %s378 = scalar_lea.vmem [#allocation2], %s377
        %p379 = scmp.lt.s32.totalorder %s25, 1
        %s380 = scalar_select %p379, %s25, 1
        %s381 = smul.addr %s380, 2
        %s382 = smul.addr %s381, 8
        %s383 = scalar_lea.vmem %s0, %s382
        %v384 = vld [vmem:[%s383] sm:$0xff]
        %v385 = vld [vmem:[%s383 + $0x8] sm:$0xff]
        %v386 = vadd.f32 %v384, %v385
        %v387 = vrot.slane %v386, 4
        %v388 = vadd.f32 %v386, %v387
        %v389 = vrot.slane %v388, 2
        %v390 = vadd.f32 %v388, %v389
        %v391 = vrot.slane %v390, 1
        %v392 = vadd.f32 %v390, %v391
        %v393 = vrcp.pop 16.0
        %v394 = vmul.f32 16.0, %v393
        %v395 = vsub.f32 1.0, %v394
        %v396 = vmul.f32 %v393, %v395
        %v397 = vadd.f32 %v393, %v396
        %vm398 = vweird.f32 %v393
        %v399 = vsel %vm398, %v393, %v397
        %v400 = vmul.f32 %v392, %v399
        %v401 = vpack.c.bf16 %v400, %v400
        %v402 = vld [vmem:[%s1] sm:$0xf]
        %v403 = vld [vmem:[%s1 + $0x4] sm:$0xf]
        %v404 = vld [vmem:[%s1 + $0x8] sm:$0xf]
        %v405 = vld [vmem:[%s1 + $0xc] sm:$0xf]
        %v406 = vld [vmem:[%s1 + $0x10] sm:$0xf]
        %v407 = vld [vmem:[%s1 + $0x14] sm:$0xf]
        %v408 = vld [vmem:[%s1 + $0x18] sm:$0xf]
        %v409 = vld [vmem:[%s1 + $0x1c] sm:$0xf]
        %v410 = vld [vmem:[%s1 + $0x20] sm:$0xf]
        %v411 = vld [vmem:[%s1 + $0x24] sm:$0xf]
        %v412 = vld [vmem:[%s1 + $0x28] sm:$0xf]
        %v413 = vld [vmem:[%s1 + $0x2c] sm:$0xf]
        %v414 = vld [vmem:[%s1 + $0x30] sm:$0xf]
        %v415 = vld [vmem:[%s1 + $0x34] sm:$0xf]
        %v416 = vld [vmem:[%s1 + $0x38] sm:$0xf]
        %v417 = vld [vmem:[%s1 + $0x3c] sm:$0xf]
        %v418 = vld [vmem:[%s2] sm:$0x1]
        %v435 = vunpack.c.l.b16 %v402
        %v436 = vunpack.c.l.b16 %v403
        %v437 = vunpack.c.l.b16 %v404
        %v438 = vunpack.c.l.b16 %v405
        %v439 = vunpack.c.l.b16 %v406
        %v440 = vunpack.c.l.b16 %v407
        %v441 = vunpack.c.l.b16 %v408
        %v442 = vunpack.c.l.b16 %v409
        %v443 = vunpack.c.l.b16 %v410
        %v444 = vunpack.c.l.b16 %v411
        %v445 = vunpack.c.l.b16 %v412
        %v446 = vunpack.c.l.b16 %v413
        %v447 = vunpack.c.l.b16 %v414
        %v448 = vunpack.c.l.b16 %v415
        %v449 = vunpack.c.l.b16 %v416
        %v450 = vunpack.c.l.b16 %v417
        %v451 = vpack.c.b16 %v436, %v435
        %v452 = vpack.c.b16 %v438, %v437
        %v453 = vpack.c.b16 %v440, %v439
        %v454 = vpack.c.b16 %v442, %v441
        %v455 = vpack.c.b16 %v444, %v443
        %v456 = vpack.c.b16 %v446, %v445
        %v457 = vpack.c.b16 %v448, %v447
        %v458 = vpack.c.b16 %v450, %v449
        %467 = vmatpush.bf16.msra.mxu0 %v458
        %468 = vmatpush.bf16.msra.mxu0 %v457
        %469 = vmatpush.bf16.msra.mxu0 %v456
        %470 = vmatpush.bf16.msra.mxu0 %v455
        %471 = vmatpush.bf16.msra.mxu0 %v454
        %472 = vmatpush.bf16.msra.mxu0 %v453
        %473 = vmatpush.bf16.msra.mxu0 %v452
        %474 = vmatpush.bf16.msra.mxu0 %v451
        %475 = vmatmul.bf16.gmra.mxu0 %v401
        %v476 = vpop.f32.mrf.mxu0
        %v477 = vadd.f32 %v418, %v476
        %v478 = vpop.f32.mrf.mxu0
        %479 = vdwg.mxu0
        %v480 = vxor.u32 %v477, 2147483648
        %v481 = vmul.f32 %v480, 1.442695
        %v482 = vpow.pop %v481
        %v483 = vadd.f32 %v482, 1.0
        %v484 = vrcp.pop %v483
        %v485 = vmul.f32 %v483, %v484
        %v486 = vsub.f32 1.0, %v485
        %v487 = vmul.f32 %v484, %v486
        %v488 = vadd.f32 %v484, %v487
        %vm489 = vweird.f32 %v483
        %vm490 = vweird.f32 %v484
        %vm491 = vmor %vm489, %vm490
        %v492 = vsel %vm491, %v484, %v488
        %v493 = vand.u32 2147483647, %v483
        %vm494 = vcmp.eq.f32.partialorder %v493, 8.507059e+37
        %v495 = vand.u32 %v483, 2147483648
        %v496 = vor.u32 1.1754944e-38, %v495
        %v497 = vsel %vm494, %v496, %v492
        %v498 = vmul.f32 1.0, %v497
        %v499 = vmul.f32 %v477, %v498
        %v500 = vpack.c.bf16 %v499, %v499
        %v501 = vld [vmem:[%s3] sm:$0xf]
        %v502 = vld [vmem:[%s3 + $0x4] sm:$0xf]
        %v503 = vld [vmem:[%s3 + $0x8] sm:$0xf]
        %v504 = vld [vmem:[%s3 + $0xc] sm:$0xf]
        %v505 = vld [vmem:[%s3 + $0x10] sm:$0xf]
        %v506 = vld [vmem:[%s3 + $0x14] sm:$0xf]
        %v507 = vld [vmem:[%s3 + $0x18] sm:$0xf]
        %v508 = vld [vmem:[%s3 + $0x1c] sm:$0xf]
        %v509 = vld [vmem:[%s3 + $0x20] sm:$0xf]
        %v510 = vld [vmem:[%s3 + $0x24] sm:$0xf]
        %v511 = vld [vmem:[%s3 + $0x28] sm:$0xf]
        %v512 = vld [vmem:[%s3 + $0x2c] sm:$0xf]
        %v513 = vld [vmem:[%s3 + $0x30] sm:$0xf]
        %v514 = vld [vmem:[%s3 + $0x34] sm:$0xf]
        %v515 = vld [vmem:[%s3 + $0x38] sm:$0xf]
        %v516 = vld [vmem:[%s3 + $0x3c] sm:$0xf]
        %v517 = vld [vmem:[%s4] sm:$0x1]
        %v534 = vunpack.c.l.b16 %v501
        %v535 = vunpack.c.l.b16 %v502
        %v536 = vunpack.c.l.b16 %v503
        %v537 = vunpack.c.l.b16 %v504
        %v538 = vunpack.c.l.b16 %v505
        %v539 = vunpack.c.l.b16 %v506
        %v540 = vunpack.c.l.b16 %v507
        %v541 = vunpack.c.l.b16 %v508
        %v542 = vunpack.c.l.b16 %v509
        %v543 = vunpack.c.l.b16 %v510
        %v544 = vunpack.c.l.b16 %v511
        %v545 = vunpack.c.l.b16 %v512
        %v546 = vunpack.c.l.b16 %v513
        %v547 = vunpack.c.l.b16 %v514
        %v548 = vunpack.c.l.b16 %v515
        %v549 = vunpack.c.l.b16 %v516
        %v550 = vpack.c.b16 %v535, %v534
        %v551 = vpack.c.b16 %v537, %v536
        %v552 = vpack.c.b16 %v539, %v538
        %v553 = vpack.c.b16 %v541, %v540
        %v554 = vpack.c.b16 %v543, %v542
        %v555 = vpack.c.b16 %v545, %v544
        %v556 = vpack.c.b16 %v547, %v546
        %v557 = vpack.c.b16 %v549, %v548
        %566 = vmatpush.bf16.msra.mxu0 %v557
        %567 = vmatpush.bf16.msra.mxu0 %v556
        %568 = vmatpush.bf16.msra.mxu0 %v555
        %569 = vmatpush.bf16.msra.mxu0 %v554
        %570 = vmatpush.bf16.msra.mxu0 %v553
        %571 = vmatpush.bf16.msra.mxu0 %v552
        %572 = vmatpush.bf16.msra.mxu0 %v551
        %573 = vmatpush.bf16.msra.mxu0 %v550
        %574 = vmatmul.bf16.gmra.mxu0 %v500
        %v575 = vpop.f32.mrf.mxu0
        %v576 = vadd.f32 %v517, %v575
        %v577 = vpop.f32.mrf.mxu0
        %578 = vdwg.mxu0
        %v579 = vxor.u32 %v576, 2147483648
        %v580 = vmul.f32 %v579, 1.442695
        %v581 = vpow.pop %v580
        %v582 = vadd.f32 %v581, 1.0
        %v583 = vrcp.pop %v582
        %v584 = vmul.f32 %v582, %v583
        %v585 = vsub.f32 1.0, %v584
        %v586 = vmul.f32 %v583, %v585
        %v587 = vadd.f32 %v583, %v586
        %vm588 = vweird.f32 %v582
        %vm589 = vweird.f32 %v583
        %vm590 = vmor %vm588, %vm589
        %v591 = vsel %vm590, %v583, %v587
        %v592 = vand.u32 2147483647, %v582
        %vm593 = vcmp.eq.f32.partialorder %v592, 8.507059e+37
        %v594 = vand.u32 %v582, 2147483648
        %v595 = vor.u32 1.1754944e-38, %v594
        %v596 = vsel %vm593, %v595, %v591
        %v597 = vmul.f32 1.0, %v596
        %v598 = vperm.slane %v597, 0
        %v599 = vmul.f32 %v384, %v598
        %v600 = vmul.f32 %v385, %v598
        %v601 = vpack.c.bf16 %v600, %v599
        %v602 = vld [vmem:[%s5] sm:$0xf]
        %v603 = vld [vmem:[%s5 + $0x4] sm:$0xf]
        %v604 = vld [vmem:[%s5 + $0x8] sm:$0xf]
        %v605 = vld [vmem:[%s5 + $0xc] sm:$0xf]
        %v606 = vld [vmem:[%s5 + $0x10] sm:$0xf]
        %v607 = vld [vmem:[%s5 + $0x14] sm:$0xf]
        %v608 = vld [vmem:[%s5 + $0x18] sm:$0xf]
        %v609 = vld [vmem:[%s5 + $0x1c] sm:$0xf]
        %v610 = vld [vmem:[%s5 + $0x20] sm:$0xf]
        %v611 = vld [vmem:[%s5 + $0x24] sm:$0xf]
        %v612 = vld [vmem:[%s5 + $0x28] sm:$0xf]
        %v613 = vld [vmem:[%s5 + $0x2c] sm:$0xf]
        %v614 = vld [vmem:[%s5 + $0x30] sm:$0xf]
        %v615 = vld [vmem:[%s5 + $0x34] sm:$0xf]
        %v616 = vld [vmem:[%s5 + $0x38] sm:$0xf]
        %v617 = vld [vmem:[%s5 + $0x3c] sm:$0xf]
        %v618 = vld [vmem:[%s6] sm:$0x1]
        %v620 = vperm.slane %v618, 0
        %v638 = vunpack.c.l.b16 %v602
        %v639 = vunpack.c.l.b16 %v603
        %v640 = vunpack.c.l.b16 %v604
        %v641 = vunpack.c.l.b16 %v605
        %v642 = vunpack.c.l.b16 %v606
        %v643 = vunpack.c.l.b16 %v607
        %v644 = vunpack.c.l.b16 %v608
        %v645 = vunpack.c.l.b16 %v609
        %v646 = vunpack.c.l.b16 %v610
        %v647 = vunpack.c.l.b16 %v611
        %v648 = vunpack.c.l.b16 %v612
        %v649 = vunpack.c.l.b16 %v613
        %v650 = vunpack.c.l.b16 %v614
        %v651 = vunpack.c.l.b16 %v615
        %v652 = vunpack.c.l.b16 %v616
        %v653 = vunpack.c.l.b16 %v617
        %v654 = vpack.c.b16 %v639, %v638
        %v655 = vpack.c.b16 %v641, %v640
        %v656 = vpack.c.b16 %v643, %v642
        %v657 = vpack.c.b16 %v645, %v644
        %v658 = vpack.c.b16 %v647, %v646
        %v659 = vpack.c.b16 %v649, %v648
        %v660 = vpack.c.b16 %v651, %v650
        %v661 = vpack.c.b16 %v653, %v652
        %670 = vmatpush.bf16.msra.mxu0 %v661
        %671 = vmatpush.bf16.msra.mxu0 %v660
        %672 = vmatpush.bf16.msra.mxu0 %v659
        %673 = vmatpush.bf16.msra.mxu0 %v658
        %674 = vmatpush.bf16.msra.mxu0 %v657
        %675 = vmatpush.bf16.msra.mxu0 %v656
        %676 = vmatpush.bf16.msra.mxu0 %v655
        %677 = vmatpush.bf16.msra.mxu0 %v654
        %678 = vmatmul.bf16.gmra.mxu0 %v601
        %v679 = vpop.f32.mrf.mxu0
        %v680 = vadd.f32 %v620, %v679
        %v681 = vpop.f32.mrf.mxu0
        %v682 = vadd.f32 %v620, %v681
        %683 = vdwg.mxu0
        %v684 = vpack.c.bf16 %v682, %v680
        %v685 = vld [vmem:[%s7] sm:$0xf]
        %v686 = vld [vmem:[%s7 + $0x4] sm:$0xf]
        %v687 = vld [vmem:[%s7 + $0x8] sm:$0xf]
        %v688 = vld [vmem:[%s7 + $0xc] sm:$0xf]
        %v689 = vld [vmem:[%s7 + $0x10] sm:$0xf]
        %v690 = vld [vmem:[%s7 + $0x14] sm:$0xf]
        %v691 = vld [vmem:[%s7 + $0x18] sm:$0xf]
        %v692 = vld [vmem:[%s7 + $0x1c] sm:$0xf]
        %v693 = vld [vmem:[%s7 + $0x20] sm:$0xf]
        %v694 = vld [vmem:[%s7 + $0x24] sm:$0xf]
        %v695 = vld [vmem:[%s7 + $0x28] sm:$0xf]
        %v696 = vld [vmem:[%s7 + $0x2c] sm:$0xf]
        %v697 = vld [vmem:[%s7 + $0x30] sm:$0xf]
        %v698 = vld [vmem:[%s7 + $0x34] sm:$0xf]
        %v699 = vld [vmem:[%s7 + $0x38] sm:$0xf]
        %v700 = vld [vmem:[%s7 + $0x3c] sm:$0xf]
        %v701 = vld [vmem:[%s8] sm:$0x1]
        %v703 = vperm.slane %v701, 0
        %v721 = vunpack.c.l.b16 %v685
        %v722 = vunpack.c.l.b16 %v686
        %v723 = vunpack.c.l.b16 %v687
        %v724 = vunpack.c.l.b16 %v688
        %v725 = vunpack.c.l.b16 %v689
        %v726 = vunpack.c.l.b16 %v690
        %v727 = vunpack.c.l.b16 %v691
        %v728 = vunpack.c.l.b16 %v692
        %v729 = vunpack.c.l.b16 %v693
        %v730 = vunpack.c.l.b16 %v694
        %v731 = vunpack.c.l.b16 %v695
        %v732 = vunpack.c.l.b16 %v696
        %v733 = vunpack.c.l.b16 %v697
        %v734 = vunpack.c.l.b16 %v698
        %v735 = vunpack.c.l.b16 %v699
        %v736 = vunpack.c.l.b16 %v700
        %v737 = vpack.c.b16 %v722, %v721
        %v738 = vpack.c.b16 %v724, %v723
        %v739 = vpack.c.b16 %v726, %v725
        %v740 = vpack.c.b16 %v728, %v727
        %v741 = vpack.c.b16 %v730, %v729
        %v742 = vpack.c.b16 %v732, %v731
        %v743 = vpack.c.b16 %v734, %v733
        %v744 = vpack.c.b16 %v736, %v735
        %753 = vmatpush.bf16.msra.mxu0 %v744
        %754 = vmatpush.bf16.msra.mxu0 %v743
        %755 = vmatpush.bf16.msra.mxu0 %v742
        %756 = vmatpush.bf16.msra.mxu0 %v741
        %757 = vmatpush.bf16.msra.mxu0 %v740
        %758 = vmatpush.bf16.msra.mxu0 %v739
        %759 = vmatpush.bf16.msra.mxu0 %v738
        %760 = vmatpush.bf16.msra.mxu0 %v737
        %761 = vmatmul.bf16.gmra.mxu0 %v684
        %v762 = vpop.f32.mrf.mxu0
        %v763 = vadd.f32 %v703, %v762
        %v764 = vpop.f32.mrf.mxu0
        %v765 = vadd.f32 %v703, %v764
        %766 = vdwg.mxu0
        %v767 = vxor.u32 %v763, 2147483648
        %v768 = vxor.u32 %v765, 2147483648
        %v769 = vmul.f32 %v767, 1.442695
        %v770 = vpow.pop %v769
        %v771 = vmul.f32 %v768, 1.442695
        %v772 = vpow.pop %v771
        %v773 = vadd.f32 %v770, 1.0
        %v774 = vadd.f32 %v772, 1.0
        %v775 = vrcp.pop %v773
        %v776 = vmul.f32 %v773, %v775
        %v777 = vsub.f32 1.0, %v776
        %v778 = vmul.f32 %v775, %v777
        %v779 = vadd.f32 %v775, %v778
        %vm780 = vweird.f32 %v773
        %vm781 = vweird.f32 %v775
        %vm782 = vmor %vm780, %vm781
        %v783 = vsel %vm782, %v775, %v779
        %v784 = vand.u32 2147483647, %v773
        %vm785 = vcmp.eq.f32.partialorder %v784, 8.507059e+37
        %v786 = vand.u32 %v773, 2147483648
        %v787 = vor.u32 1.1754944e-38, %v786
        %v788 = vsel %vm785, %v787, %v783
        %v789 = vmul.f32 1.0, %v788
        %v790 = vrcp.pop %v774
        %v791 = vmul.f32 %v774, %v790
        %v792 = vsub.f32 1.0, %v791
        %v793 = vmul.f32 %v790, %v792
        %v794 = vadd.f32 %v790, %v793
        %vm795 = vweird.f32 %v774
        %vm796 = vweird.f32 %v790
        %vm797 = vmor %vm795, %vm796
        %v798 = vsel %vm797, %v790, %v794
        %v799 = vand.u32 2147483647, %v774
        %vm800 = vcmp.eq.f32.partialorder %v799, 8.507059e+37
        %v801 = vand.u32 %v774, 2147483648
        %v802 = vor.u32 1.1754944e-38, %v801
        %v803 = vsel %vm800, %v802, %v798
        %v804 = vmul.f32 1.0, %v803
        %v805 = vmul.f32 %v763, %v789
        %v806 = vmul.f32 %v765, %v804
        %v807 = vadd.f32 %v805, %v806
        %v808 = vrot.slane %v807, 4
        %v809 = vadd.f32 %v807, %v808
        %v810 = vrot.slane %v809, 2
        %v811 = vadd.f32 %v809, %v810
        %v812 = vrot.slane %v811, 1
        %v813 = vadd.f32 %v811, %v812
        %v814 = vmul.f32 %v813, %v399
        %v815 = vpack.c.bf16 %v814, %v814
        %v816 = vld [vmem:[%s9] sm:$0xf]
        %v817 = vld [vmem:[%s9 + $0x4] sm:$0xf]
        %v818 = vld [vmem:[%s9 + $0x8] sm:$0xf]
        %v819 = vld [vmem:[%s9 + $0xc] sm:$0xf]
        %v820 = vld [vmem:[%s9 + $0x10] sm:$0xf]
        %v821 = vld [vmem:[%s9 + $0x14] sm:$0xf]
        %v822 = vld [vmem:[%s9 + $0x18] sm:$0xf]
        %v823 = vld [vmem:[%s9 + $0x1c] sm:$0xf]
        %v824 = vld [vmem:[%s9 + $0x20] sm:$0xf]
        %v825 = vld [vmem:[%s9 + $0x24] sm:$0xf]
        %v826 = vld [vmem:[%s9 + $0x28] sm:$0xf]
        %v827 = vld [vmem:[%s9 + $0x2c] sm:$0xf]
        %v828 = vld [vmem:[%s9 + $0x30] sm:$0xf]
        %v829 = vld [vmem:[%s9 + $0x34] sm:$0xf]
        %v830 = vld [vmem:[%s9 + $0x38] sm:$0xf]
        %v831 = vld [vmem:[%s9 + $0x3c] sm:$0xf]
        %v832 = vld [vmem:[%s10] sm:$0x1]
        %v849 = vunpack.c.l.b16 %v816
        %v850 = vunpack.c.l.b16 %v817
        %v851 = vunpack.c.l.b16 %v818
        %v852 = vunpack.c.l.b16 %v819
        %v853 = vunpack.c.l.b16 %v820
        %v854 = vunpack.c.l.b16 %v821
        %v855 = vunpack.c.l.b16 %v822
        %v856 = vunpack.c.l.b16 %v823
        %v857 = vunpack.c.l.b16 %v824
        %v858 = vunpack.c.l.b16 %v825
        %v859 = vunpack.c.l.b16 %v826
        %v860 = vunpack.c.l.b16 %v827
        %v861 = vunpack.c.l.b16 %v828
        %v862 = vunpack.c.l.b16 %v829
        %v863 = vunpack.c.l.b16 %v830
        %v864 = vunpack.c.l.b16 %v831
        %v865 = vpack.c.b16 %v850, %v849
        %v866 = vpack.c.b16 %v852, %v851
        %v867 = vpack.c.b16 %v854, %v853
        %v868 = vpack.c.b16 %v856, %v855
        %v869 = vpack.c.b16 %v858, %v857
        %v870 = vpack.c.b16 %v860, %v859
        %v871 = vpack.c.b16 %v862, %v861
        %v872 = vpack.c.b16 %v864, %v863
        %881 = vmatpush.bf16.msra.mxu0 %v872
        %882 = vmatpush.bf16.msra.mxu0 %v871
        %883 = vmatpush.bf16.msra.mxu0 %v870
        %884 = vmatpush.bf16.msra.mxu0 %v869
        %885 = vmatpush.bf16.msra.mxu0 %v868
        %886 = vmatpush.bf16.msra.mxu0 %v867
        %887 = vmatpush.bf16.msra.mxu0 %v866
        %888 = vmatpush.bf16.msra.mxu0 %v865
        %889 = vmatmul.bf16.gmra.mxu0 %v815
        %v890 = vpop.f32.mrf.mxu0
        %v891 = vadd.f32 %v832, %v890
        %v892 = vpop.f32.mrf.mxu0
        %893 = vdwg.mxu0
        %894 = vst [vmem:[%s378] sm:$0x1] %v891
        %s895 = sand.u32 %s269, 1
        %s896 = scalar_lea.sflag [#allocation3], %s895
        %s897 = sand.u32 %s269, 1
        %s898 = scalar_lea.vmem [#allocation2], %s897
        // Predicated region
        $region65: #{custom_effnet_forward.9} parent=63 // pred_check
          %p899 = pneg %p279
        $region66: #{custom_effnet_forward.9} parent=63 // pred_check_branch
          %901 = sbr.rel (%p899) target = $region68
        $region67: #{custom_effnet_forward.9} parent=63 // pred_region
          %903 = vsyncadd %s896, 0
          %s904 = scalar_lea.hbm %s11, %s25
          %s906 = sshll.u32 %s898, 4
          %s907 = int_to_ptr.vmem [resolvable:$true] %s906
          %s908 = sshll.u32 %s904, 4
          %s909 = int_to_ptr.hbm [resolvable:$true] %s908
          %911 = dma.vmem_to_hbm [thread:$0]  %s907, 16, %s909, %s896
        $region68: #{custom_effnet_forward.9} parent=63 // pred_fallthru
          _
      $region64: #{custom_effnet_forward.9} parent=5 // pred_fallthru
        _
      %p912 = scmp.le.s32.totalorder 2, %s20
      // Predicated region
      $region69: #{custom_effnet_forward.9} parent=5 // pred_check
        %p913 = pneg %p912
      $region70: #{custom_effnet_forward.9} parent=5 // pred_check_branch
        %915 = sbr.rel (%p913) target = $region72
      $region71: #{custom_effnet_forward.9} parent=5 // pred_region
        %s916 = ssub.s32 %s20, 2
        // Predicated region
        $region73: #{custom_effnet_forward.9} parent=71 // pred_check
          %p917 = pneg %p285
        $region74: #{custom_effnet_forward.9} parent=71 // pred_check_branch
          %919 = sbr.rel (%p917) target = $region76
        $region75: #{custom_effnet_forward.9} parent=71 // pred_region
          %s920 = sand.u32 %s270, 1
          %s921 = scalar_lea.sflag [#allocation3], %s920
          %s922 = sand.u32 %s270, 1
          %s923 = scalar_lea.vmem [#allocation2], %s922
          %925 = dma.done %s921, 16
        $region76: #{custom_effnet_forward.9} parent=71 // pred_fallthru
          _
      $region72: #{custom_effnet_forward.9} parent=5 // pred_fallthru
        _
    $region6: #{custom_effnet_forward.9} parent=1 // loop_footer
      %s24 = sadd.s32 1, %s20
    $region7: #{custom_effnet_forward.9} parent=1 // loop_footer_branch
      %19 = sbr.rel target = $region3
    $region8: #{custom_effnet_forward.9} parent=1 // loop_exit
      _
    %926 = vsyncpa [#allocation3], 1
    %s927 = scalar_lea.sflag [#allocation3], 1
    %928 = vsyncpa %s927, 1

</llo_original>
